<compile_context>
chip_gen: v7x
topology: tpu7x:2x2x1
jax: 0.10.0
libtpu: 0.0.40
codegen_flags: <defaults>
</compile_context>

<pallas_src>
import functools
import math

import jax
import jax.numpy as jnp
from jax.experimental import pallas as pl
from jax.experimental.pallas import tpu as pltpu


def _round_up(n, m):
    return ((n + m - 1) // m) * m


_LANE_TILE = 512  # pixel-block width (lanes); multiple of 128, v7x-safe


# ----------------------------- Pallas kernels -------------------------------
def _conv1x1_kernel(x_ref, w_ref, b_ref, o_ref):
    # x: (1, Cin, T) f32   w: (Cout, Cin) bf16   b: (Cout, 1) f32
    x = x_ref[0].astype(jnp.bfloat16)
    acc = jnp.dot(w_ref[...], x, preferred_element_type=jnp.float32)
    o_ref[0] = (acc + b_ref[...]).astype(o_ref.dtype)


def _conv1x1_add_kernel(x_ref, w_ref, b_ref, a_ref, o_ref):
    # Fused lateral 1x1 conv + bias + top-down add:  o = w @ x + b + a
    x = x_ref[0].astype(jnp.bfloat16)
    acc = jnp.dot(w_ref[...], x, preferred_element_type=jnp.float32)
    o_ref[0] = (acc + b_ref[...] + a_ref[0]).astype(o_ref.dtype)


def _conv3x3_kernel(x0_ref, x1_ref, w_ref, b_ref, o_ref, col_ref, *, wp, tile):
    # 3x3 "same" conv on a flattened, zero-padded (Cin, Hp*Wp) slab.
    # x0: current `tile`-wide pixel block; x1: only the halo lanes of the next
    # block.  The 9 taps (lane shifts s = dy*wp + dx) are static slices of the
    # (Cin, tile + halo) window, written into a (9*Cin, tile) bf16 VMEM scratch
    # and contracted in a single K = 9*Cin MXU matmul with f32 accumulation.
    cin = x0_ref.shape[1]
    x = jnp.concatenate([x0_ref[0], x1_ref[0]], axis=-1).astype(jnp.bfloat16)
    for dy in range(3):
        for dx in range(3):
            s = dy * wp + dx
            tap = dy * 3 + dx
            col_ref[tap * cin:(tap + 1) * cin, :] = x[:, s:s + tile]
    acc = jnp.dot(w_ref[...], col_ref[...], preferred_element_type=jnp.float32)
    o_ref[0] = (acc + b_ref[...]).astype(o_ref.dtype)


# ----------------------------- Pallas wrappers -------------------------------
def conv1x1_nchw(x, w_oi, b, add=None, *, tile=_LANE_TILE):
    """1x1 conv on NCHW (optionally fused with an elementwise add).

    x: (B, Cin, H, W),  w_oi: (Cout, Cin),  b: (Cout,),  add: (B, Cout, H, W).
    """
    B, Cin, H, W = x.shape
    Cout = w_oi.shape[0]
    n = H * W
    t = min(tile, _round_up(n, 128))
    n_pad = _round_up(n, t)
    xf = jnp.pad(x.reshape(B, Cin, n), ((0, 0), (0, 0), (0, n_pad - n)))
    w_bf = w_oi.astype(jnp.bfloat16)
    b2 = b.reshape(Cout, 1)

    grid = (B, n_pad // t)
    x_spec = pl.BlockSpec((1, Cin, t), lambda bb, i: (bb, 0, i))
    w_spec = pl.BlockSpec((Cout, Cin), lambda bb, i: (0, 0))
    b_spec = pl.BlockSpec((Cout, 1), lambda bb, i: (0, 0))
    o_spec = pl.BlockSpec((1, Cout, t), lambda bb, i: (bb, 0, i))
    out_shape = jax.ShapeDtypeStruct((B, Cout, n_pad), x.dtype)
    params = pltpu.CompilerParams(dimension_semantics=("parallel", "parallel"))

    if add is None:
        out = pl.pallas_call(
            _conv1x1_kernel, out_shape=out_shape, grid=grid,
            in_specs=[x_spec, w_spec, b_spec], out_specs=o_spec,
            compiler_params=params,
        )(xf, w_bf, b2)
    else:
        af = jnp.pad(add.reshape(B, Cout, n), ((0, 0), (0, 0), (0, n_pad - n)))
        a_spec = pl.BlockSpec((1, Cout, t), lambda bb, i: (bb, 0, i))
        out = pl.pallas_call(
            _conv1x1_add_kernel, out_shape=out_shape, grid=grid,
            in_specs=[x_spec, w_spec, b_spec, a_spec], out_specs=o_spec,
            compiler_params=params,
        )(xf, w_bf, b2, af)
    return out[:, :, :n].reshape(B, Cout, H, W)


def conv3x3_nchw(x, w_hwio, b, *, tile=_LANE_TILE):
    """3x3 conv, stride 1, padding 1, on NCHW.  w: (3,3,Cin,Cout), b: (Cout,)."""
    B, Cin, H, W = x.shape
    Cout = w_hwio.shape[-1]
    assert Cin % 8 == 0 and Cout % 8 == 0, "FPN channels must be multiples of 8"

    hp, wp = H + 2, W + 2
    n0 = hp * wp
    halo = _round_up(2 * wp + 2, 128)                 # lanes of look-ahead needed
    t = min(tile, _round_up(n0, halo))
    t = _round_up(t, halo)                            # t % halo == 0 (halo block indexing)
    n_out = _round_up(n0, t)
    n_in = n_out + halo                               # only `halo` trailing zero lanes

    xp = jnp.pad(x, ((0, 0), (0, 0), (1, 1), (1, 1)))
    xf = jnp.pad(xp.reshape(B, Cin, n0), ((0, 0), (0, 0), (0, n_in - n0)))
    wm = jnp.transpose(w_hwio, (3, 0, 1, 2)).reshape(Cout, 9 * Cin).astype(jnp.bfloat16)
    b2 = b.reshape(Cout, 1)

    bpt = t // halo
    grid = (B, n_out // t)
    x0_spec = pl.BlockSpec((1, Cin, t), lambda bb, i: (bb, 0, i))
    x1_spec = pl.BlockSpec((1, Cin, halo), lambda bb, i: (bb, 0, (i + 1) * bpt))
    w_spec = pl.BlockSpec((Cout, 9 * Cin), lambda bb, i: (0, 0))
    b_spec = pl.BlockSpec((Cout, 1), lambda bb, i: (0, 0))
    o_spec = pl.BlockSpec((1, Cout, t), lambda bb, i: (bb, 0, i))

    out = pl.pallas_call(
        functools.partial(_conv3x3_kernel, wp=wp, tile=t),
        out_shape=jax.ShapeDtypeStruct((B, Cout, n_out), x.dtype),
        grid=grid,
        in_specs=[x0_spec, x1_spec, w_spec, b_spec],
        out_specs=o_spec,
        scratch_shapes=[pltpu.VMEM((9 * Cin, t), jnp.bfloat16)],
        compiler_params=pltpu.CompilerParams(
            dimension_semantics=("parallel", "parallel")),
    )(xf, xf, wm, b2)

    # flat index p = h*wp + w  ->  keep h < H, w < W
    out = out[:, :, :H * wp].reshape(B, Cout, H, wp)[:, :, :, :W]
    return out


def nearest_resize_nchw(x, out_h, out_w):
    """F.interpolate(..., mode='nearest') semantics: src = floor(dst*in/out)."""
    B, C, H, W = x.shape
    if out_h == 2 * H and out_w == 2 * W:
        # exact 2x: cheap repeat via broadcast/reshape (no gathers)
        y = jnp.broadcast_to(x[:, :, :, None, :, None], (B, C, H, 2, W, 2))
        return y.reshape(B, C, 2 * H, 2 * W)
    idx_h = (jnp.arange(out_h) * H) // out_h
    idx_w = (jnp.arange(out_w) * W) // out_w
    return x[:, :, idx_h][:, :, :, idx_w]


# -------------------------- synthetic backbone --------------------------------
# TODO(synk): pretrained torchvision regnet_y_32gf + feature_extraction graph has
# no Pallas equivalent; replaced by a deterministic synthetic strided-conv
# backbone (plain XLA, NCHW end-to-end so no layout transposes are needed)
# producing c3/c4/c5 at strides 8/16/32 with scaled-down channel counts.
def _conv2d_ref(x_nchw, w_hwio, b, stride):
    y = jax.lax.conv_general_dilated(
        x_nchw, w_hwio, (stride, stride), ((1, 1), (1, 1)),
        dimension_numbers=("NCHW", "HWIO", "NCHW"))
    return y + b[None, :, None, None]


def backbone_forward(bb_params, images_nchw):
    x = images_nchw
    x = jax.nn.relu(_conv2d_ref(x, *bb_params["stem"], stride=2))     # H/2
    x = jax.nn.relu(_conv2d_ref(x, *bb_params["block1"], stride=2))   # H/4
    c3 = jax.nn.relu(_conv2d_ref(x, *bb_params["block2"], stride=2))  # H/8
    c4 = jax.nn.relu(_conv2d_ref(c3, *bb_params["block3"], stride=2)) # H/16
    c5 = jax.nn.relu(_conv2d_ref(c4, *bb_params["block4"], stride=2)) # H/32
    return {"c3": c3, "c4": c4, "c5": c5}


# ------------------------------- FPN forward ----------------------------------
def fpn_forward(fpn_params, c3, c4, c5):
    """Exact structure of DetectorBackboneWithFPN.forward (NCHW throughout)."""
    p5_lat = conv1x1_nchw(c5, *fpn_params["conv5"])
    p5_up = nearest_resize_nchw(p5_lat, c4.shape[2], c4.shape[3])
    p5 = conv3x3_nchw(p5_lat, *fpn_params["conv_out5"])

    p4_lat = conv1x1_nchw(c4, *fpn_params["conv4"], add=p5_up)  # lateral + add fused
    p4_up = nearest_resize_nchw(p4_lat, c3.shape[2], c3.shape[3])
    p4 = conv3x3_nchw(p4_lat, *fpn_params["conv_out4"])

    p3_lat = conv1x1_nchw(c3, *fpn_params["conv3"], add=p4_up)  # lateral + add fused
    p3 = conv3x3_nchw(p3_lat, *fpn_params["conv_out3"])

    return {"p3": p3, "p4": p4, "p5": p5}


def detector_backbone_with_fpn_forward(params, images_nchw):
    feats = backbone_forward(params["backbone"], images_nchw)
    fpn = fpn_forward(params["fpn"], feats["c3"], feats["c4"], feats["c5"])
    return fpn, feats


# --------------------------- pure-JAX reference --------------------------------
# bf16-aware reference: inputs/weights are rounded to bf16 exactly like the
# kernels feed the MXU; accumulation stays f32 (HIGHEST precision).
def fpn_reference(fpn_params, c3, c4, c5):
    hi = jax.lax.Precision.HIGHEST
    q = lambda a: a.astype(jnp.bfloat16).astype(jnp.float32)

    def conv1(x, w, b):                       # w: (Cout, Cin)
        return (jnp.einsum("bchw,oc->bohw", q(x), q(w), precision=hi)
                + b[None, :, None, None])

    def conv3(x, w, b):                       # w: (3,3,Cin,Cout)
        y = jax.lax.conv_general_dilated(
            q(x), q(w), (1, 1), ((1, 1), (1, 1)),
            dimension_numbers=("NCHW", "HWIO", "NCHW"), precision=hi)
        return y + b[None, :, None, None]

    p5_lat = conv1(c5, *fpn_params["conv5"])
    p5_up = nearest_resize_nchw(p5_lat, c4.shape[2], c4.shape[3])
    p5 = conv3(p5_lat, *fpn_params["conv_out5"])
    p4 = p5_up + conv1(c4, *fpn_params["conv4"])
    p4_up = nearest_resize_nchw(p4, c3.shape[2], c3.shape[3])
    p4 = conv3(p4, *fpn_params["conv_out4"])
    p3 = conv1(c3, *fpn_params["conv3"]) + p4_up
    p3 = conv3(p3, *fpn_params["conv_out3"])
    return {"p3": p3, "p4": p4, "p5": p5}


# ------------------------------ param init ------------------------------------
def _init_conv(key, kh, kw, cin, cout):
    kw_key, kb_key = jax.random.split(key)
    fan_in = cin * kh * kw
    w = jax.random.normal(kw_key, (kh, kw, cin, cout), jnp.float32) / math.sqrt(fan_in)
    b = jax.random.normal(kb_key, (cout,), jnp.float32) * 0.01
    return w, b


def init_params(key, out_channels, c3_ch, c4_ch, c5_ch):
    keys = jax.random.split(key, 11)
    backbone = {
        "stem":   _init_conv(keys[0], 3, 3, 3, 8),
        "block1": _init_conv(keys[1], 3, 3, 8, 16),
        "block2": _init_conv(keys[2], 3, 3, 16, c3_ch),
        "block3": _init_conv(keys[3], 3, 3, c3_ch, c4_ch),
        "block4": _init_conv(keys[4], 3, 3, c4_ch, c5_ch),
    }

    def pw(k, cin):
        w, b = _init_conv(k, 1, 1, cin, out_channels)
        return jnp.transpose(w[0, 0]), b          # store 1x1 weights as (Cout, Cin)

    fpn = {
        "conv5": pw(keys[5], c5_ch),
        "conv4": pw(keys[6], c4_ch),
        "conv3": pw(keys[7], c3_ch),
        "conv_out5": _init_conv(keys[8], 3, 3, out_channels, out_channels),
        "conv_out4": _init_conv(keys[9], 3, 3, out_channels, out_channels),
        "conv_out3": _init_conv(keys[10], 3, 3, out_channels, out_channels),
    }
    return {"backbone": backbone, "fpn": fpn}


if __name__ == "__main__":
    B, H, W = 2, 64, 64            # images: (B, 3, H, W), H/W divisible by 32
    out_channels = 64
    c3_ch, c4_ch, c5_ch = 16, 32, 64

    key = jax.random.PRNGKey(0)
    k_img, k_par = jax.random.split(key)
    images = jax.random.normal(k_img, (B, 3, H, W), jnp.float32)   # NCHW like PyTorch
    params = init_params(k_par, out_channels, c3_ch, c4_ch, c5_ch)

    fwd = jax.jit(detector_backbone_with_fpn_forward)
    fpn_feats, backbone_feats = fwd(params, images)
    jax.block_until_ready(fpn_feats)

    # sanity: shapes / strides match the module's contract
    assert fpn_feats["p3"].shape == (B, out_channels, H // 8, W // 8)
    assert fpn_feats["p4"].shape == (B, out_channels, H // 16, W // 16)
    assert fpn_feats["p5"].shape == (B, out_channels, H // 32, W // 32)

    # numerical check of the Pallas FPN path against a bf16-aware JAX reference
    ref = fpn_reference(params["fpn"], backbone_feats["c3"],
                        backbone_feats["c4"], backbone_feats["c5"])
    for name in ("p3", "p4", "p5"):
        assert jnp.allclose(fpn_feats[name], ref[name], atol=5e-3, rtol=5e-3), name

    print("KERNEL_OK")
</pallas_src>

<mosaic_0001>
module attributes {stable_mosaic.version = 11 : i64} {
  func.func @_conv1x1_kernel(%arg0: i32, %arg1: i32, %arg2: memref<1x64x128xf32, #tpu.memory_space<vmem>>, %arg3: memref<64x64xbf16, #tpu.memory_space<vmem>>, %arg4: memref<64x1xf32, #tpu.memory_space<vmem>>, %arg5: memref<1x64x128xf32, #tpu.memory_space<vmem>>) attributes {dimension_semantics = [#tpu.dimension_semantics<parallel>, #tpu.dimension_semantics<parallel>], iteration_bounds = array<i64: 2, 1>, scalar_prefetch = 0 : i64, scratch_operands = 0 : i64, tpu.core_type = #tpu.core_type<tc>, window_params = [{transform_indices = @transform_0, window_bounds = array<i64: 1, 64, 128>}, {pipeline_mode = #tpu.pipeline_mode<synchronous>, transform_indices = @transform_1, window_bounds = array<i64: 64, 64>}, {pipeline_mode = #tpu.pipeline_mode<synchronous>, transform_indices = @transform_2, window_bounds = array<i64: 64, 1>}, {transform_indices = @transform_3, window_bounds = array<i64: 1, 64, 128>}]} {
    %c0 = arith.constant 0 : index
    %c0_0 = arith.constant 0 : index
    %c0_1 = arith.constant 0 : index
    %0 = vector.load %arg2[%c0, %c0_0, %c0_1] : memref<1x64x128xf32, #tpu.memory_space<vmem>>, vector<1x64x128xf32>
    %1 = vector.shape_cast %0 : vector<1x64x128xf32> to vector<64x128xf32>
    %2 = arith.truncf %1 : vector<64x128xf32> to vector<64x128xbf16>
    %c0_2 = arith.constant 0 : index
    %c0_3 = arith.constant 0 : index
    %3 = vector.load %arg3[%c0_2, %c0_3] : memref<64x64xbf16, #tpu.memory_space<vmem>>, vector<64x64xbf16>
    %cst = arith.constant dense<0.000000e+00> : vector<64x128xf32>
    %4 = tpu.matmul %3, %2, %cst {dimension_numbers = #tpu.dot_dimension_numbers<[1], [0], [0], [1], [0, 0, 1, 1], [], []>} : vector<64x64xbf16>, vector<64x128xbf16>, vector<64x128xf32> -> vector<64x128xf32>
    %c0_4 = arith.constant 0 : index
    %c0_5 = arith.constant 0 : index
    %5 = vector.load %arg4[%c0_4, %c0_5] : memref<64x1xf32, #tpu.memory_space<vmem>>, vector<64x1xf32>
    %6 = vector.broadcast %5 : vector<64x1xf32> to vector<64x128xf32>
    %7 = arith.addf %4, %6 : vector<64x128xf32>
    %c0_6 = arith.constant 0 : index
    %c0_7 = arith.constant 0 : index
    %c0_8 = arith.constant 0 : index
    %8 = vector.load %arg5[%c0_6, %c0_7, %c0_8] : memref<1x64x128xf32, #tpu.memory_space<vmem>>, vector<1x64x128xf32>
    %9 = vector.shape_cast %8 : vector<1x64x128xf32> to vector<64x128xf32>
    %10 = vector.shape_cast %7 : vector<64x128xf32> to vector<1x64x128xf32>
    tpu.vector_store %arg5[%c0_6, %c0_7, %c0_8], %10 {strides = array<i32>} : memref<1x64x128xf32, #tpu.memory_space<vmem>>, vector<1x64x128xf32>,
    return
  }
  func.func @transform_0(%arg0: i32, %arg1: i32) -> (i32, i32, i32) {
    %c0_i32 = arith.constant 0 : i32
    %c0_i32_0 = arith.constant 0 : i32
    return %arg0, %c0_i32, %arg1 : i32, i32, i32
  }
  func.func @transform_1(%arg0: i32, %arg1: i32) -> (i32, i32) {
    %c0_i32 = arith.constant 0 : i32
    %c0_i32_0 = arith.constant 0 : i32
    %c0_i32_1 = arith.constant 0 : i32
    return %c0_i32, %c0_i32_0 : i32, i32
  }
  func.func @transform_2(%arg0: i32, %arg1: i32) -> (i32, i32) {
    %c0_i32 = arith.constant 0 : i32
    %c0_i32_0 = arith.constant 0 : i32
    %c0_i32_1 = arith.constant 0 : i32
    return %c0_i32, %c0_i32_0 : i32, i32
  }
  func.func @transform_3(%arg0: i32, %arg1: i32) -> (i32, i32, i32) {
    %c0_i32 = arith.constant 0 : i32
    %c0_i32_0 = arith.constant 0 : i32
    return %arg0, %c0_i32, %arg1 : i32, i32, i32
  }
}

module attributes {stable_mosaic.version = 11 : i64} {
  func.func @_conv1x1_add_kernel(%arg0: i32, %arg1: i32, %arg2: memref<1x32x128xf32, #tpu.memory_space<vmem>>, %arg3: memref<64x32xbf16, #tpu.memory_space<vmem>>, %arg4: memref<64x1xf32, #tpu.memory_space<vmem>>, %arg5: memref<1x64x128xf32, #tpu.memory_space<vmem>>, %arg6: memref<1x64x128xf32, #tpu.memory_space<vmem>>) attributes {dimension_semantics = [#tpu.dimension_semantics<parallel>, #tpu.dimension_semantics<parallel>], iteration_bounds = array<i64: 2, 1>, scalar_prefetch = 0 : i64, scratch_operands = 0 : i64, tpu.core_type = #tpu.core_type<tc>, window_params = [{transform_indices = @transform_0, window_bounds = array<i64: 1, 32, 128>}, {pipeline_mode = #tpu.pipeline_mode<synchronous>, transform_indices = @transform_1, window_bounds = array<i64: 64, 32>}, {pipeline_mode = #tpu.pipeline_mode<synchronous>, transform_indices = @transform_2, window_bounds = array<i64: 64, 1>}, {transform_indices = @transform_3, window_bounds = array<i64: 1, 64, 128>}, {transform_indices = @transform_4, window_bounds = array<i64: 1, 64, 128>}]} {
    %c0 = arith.constant 0 : index
    %c0_0 = arith.constant 0 : index
    %c0_1 = arith.constant 0 : index
    %0 = vector.load %arg2[%c0, %c0_0, %c0_1] : memref<1x32x128xf32, #tpu.memory_space<vmem>>, vector<1x32x128xf32>
    %1 = vector.shape_cast %0 : vector<1x32x128xf32> to vector<32x128xf32>
    %2 = arith.truncf %1 : vector<32x128xf32> to vector<32x128xbf16>
    %c0_2 = arith.constant 0 : index
    %c0_3 = arith.constant 0 : index
    %3 = vector.load %arg3[%c0_2, %c0_3] : memref<64x32xbf16, #tpu.memory_space<vmem>>, vector<64x32xbf16>
    %cst = arith.constant dense<0.000000e+00> : vector<64x128xf32>
    %4 = tpu.matmul %3, %2, %cst {dimension_numbers = #tpu.dot_dimension_numbers<[1], [0], [0], [1], [0, 0, 1, 1], [], []>} : vector<64x32xbf16>, vector<32x128xbf16>, vector<64x128xf32> -> vector<64x128xf32>
    %c0_4 = arith.constant 0 : index
    %c0_5 = arith.constant 0 : index
    %5 = vector.load %arg4[%c0_4, %c0_5] : memref<64x1xf32, #tpu.memory_space<vmem>>, vector<64x1xf32>
    %6 = vector.broadcast %5 : vector<64x1xf32> to vector<64x128xf32>
    %7 = arith.addf %4, %6 : vector<64x128xf32>
    %c0_6 = arith.constant 0 : index
    %c0_7 = arith.constant 0 : index
    %c0_8 = arith.constant 0 : index
    %8 = vector.load %arg5[%c0_6, %c0_7, %c0_8] : memref<1x64x128xf32, #tpu.memory_space<vmem>>, vector<1x64x128xf32>
    %9 = vector.shape_cast %8 : vector<1x64x128xf32> to vector<64x128xf32>
    %10 = arith.addf %7, %9 : vector<64x128xf32>
    %c0_9 = arith.constant 0 : index
    %c0_10 = arith.constant 0 : index
    %c0_11 = arith.constant 0 : index
    %11 = vector.load %arg6[%c0_9, %c0_10, %c0_11] : memref<1x64x128xf32, #tpu.memory_space<vmem>>, vector<1x64x128xf32>
    %12 = vector.shape_cast %11 : vector<1x64x128xf32> to vector<64x128xf32>
    %13 = vector.shape_cast %10 : vector<64x128xf32> to vector<1x64x128xf32>
    tpu.vector_store %arg6[%c0_9, %c0_10, %c0_11], %13 {strides = array<i32>} : memref<1x64x128xf32, #tpu.memory_space<vmem>>, vector<1x64x128xf32>,
    return
  }
  func.func @transform_0(%arg0: i32, %arg1: i32) -> (i32, i32, i32) {
    %c0_i32 = arith.constant 0 : i32
    %c0_i32_0 = arith.constant 0 : i32
    return %arg0, %c0_i32, %arg1 : i32, i32, i32
  }
  func.func @transform_1(%arg0: i32, %arg1: i32) -> (i32, i32) {
    %c0_i32 = arith.constant 0 : i32
    %c0_i32_0 = arith.constant 0 : i32
    %c0_i32_1 = arith.constant 0 : i32
    return %c0_i32, %c0_i32_0 : i32, i32
  }
  func.func @transform_2(%arg0: i32, %arg1: i32) -> (i32, i32) {
    %c0_i32 = arith.constant 0 : i32
    %c0_i32_0 = arith.constant 0 : i32
    %c0_i32_1 = arith.constant 0 : i32
    return %c0_i32, %c0_i32_0 : i32, i32
  }
  func.func @transform_3(%arg0: i32, %arg1: i32) -> (i32, i32, i32) {
    %c0_i32 = arith.constant 0 : i32
    %c0_i32_0 = arith.constant 0 : i32
    return %arg0, %c0_i32, %arg1 : i32, i32, i32
  }
  func.func @transform_4(%arg0: i32, %arg1: i32) -> (i32, i32, i32) {
    %c0_i32 = arith.constant 0 : i32
    %c0_i32_0 = arith.constant 0 : i32
    return %arg0, %c0_i32, %arg1 : i32, i32, i32
  }
}

module attributes {stable_mosaic.version = 11 : i64} {
  func.func @_conv1x1_add_kernel(%arg0: i32, %arg1: i32, %arg2: memref<1x16x128xf32, #tpu.memory_space<vmem>>, %arg3: memref<64x16xbf16, #tpu.memory_space<vmem>>, %arg4: memref<64x1xf32, #tpu.memory_space<vmem>>, %arg5: memref<1x64x128xf32, #tpu.memory_space<vmem>>, %arg6: memref<1x64x128xf32, #tpu.memory_space<vmem>>) attributes {dimension_semantics = [#tpu.dimension_semantics<parallel>, #tpu.dimension_semantics<parallel>], iteration_bounds = array<i64: 2, 1>, scalar_prefetch = 0 : i64, scratch_operands = 0 : i64, tpu.core_type = #tpu.core_type<tc>, window_params = [{transform_indices = @transform_0, window_bounds = array<i64: 1, 16, 128>}, {pipeline_mode = #tpu.pipeline_mode<synchronous>, transform_indices = @transform_1, window_bounds = array<i64: 64, 16>}, {pipeline_mode = #tpu.pipeline_mode<synchronous>, transform_indices = @transform_2, window_bounds = array<i64: 64, 1>}, {transform_indices = @transform_3, window_bounds = array<i64: 1, 64, 128>}, {transform_indices = @transform_4, window_bounds = array<i64: 1, 64, 128>}]} {
    %c0 = arith.constant 0 : index
    %c0_0 = arith.constant 0 : index
    %c0_1 = arith.constant 0 : index
    %0 = vector.load %arg2[%c0, %c0_0, %c0_1] : memref<1x16x128xf32, #tpu.memory_space<vmem>>, vector<1x16x128xf32>
    %1 = vector.shape_cast %0 : vector<1x16x128xf32> to vector<16x128xf32>
    %2 = arith.truncf %1 : vector<16x128xf32> to vector<16x128xbf16>
    %c0_2 = arith.constant 0 : index
    %c0_3 = arith.constant 0 : index
    %3 = vector.load %arg3[%c0_2, %c0_3] : memref<64x16xbf16, #tpu.memory_space<vmem>>, vector<64x16xbf16>
    %cst = arith.constant dense<0.000000e+00> : vector<64x128xf32>
    %4 = tpu.matmul %3, %2, %cst {dimension_numbers = #tpu.dot_dimension_numbers<[1], [0], [0], [1], [0, 0, 1, 1], [], []>} : vector<64x16xbf16>, vector<16x128xbf16>, vector<64x128xf32> -> vector<64x128xf32>
    %c0_4 = arith.constant 0 : index
    %c0_5 = arith.constant 0 : index
    %5 = vector.load %arg4[%c0_4, %c0_5] : memref<64x1xf32, #tpu.memory_space<vmem>>, vector<64x1xf32>
    %6 = vector.broadcast %5 : vector<64x1xf32> to vector<64x128xf32>
    %7 = arith.addf %4, %6 : vector<64x128xf32>
    %c0_6 = arith.constant 0 : index
    %c0_7 = arith.constant 0 : index
    %c0_8 = arith.constant 0 : index
    %8 = vector.load %arg5[%c0_6, %c0_7, %c0_8] : memref<1x64x128xf32, #tpu.memory_space<vmem>>, vector<1x64x128xf32>
    %9 = vector.shape_cast %8 : vector<1x64x128xf32> to vector<64x128xf32>
    %10 = arith.addf %7, %9 : vector<64x128xf32>
    %c0_9 = arith.constant 0 : index
    %c0_10 = arith.constant 0 : index
    %c0_11 = arith.constant 0 : index
    %11 = vector.load %arg6[%c0_9, %c0_10, %c0_11] : memref<1x64x128xf32, #tpu.memory_space<vmem>>, vector<1x64x128xf32>
    %12 = vector.shape_cast %11 : vector<1x64x128xf32> to vector<64x128xf32>
    %13 = vector.shape_cast %10 : vector<64x128xf32> to vector<1x64x128xf32>
    tpu.vector_store %arg6[%c0_9, %c0_10, %c0_11], %13 {strides = array<i32>} : memref<1x64x128xf32, #tpu.memory_space<vmem>>, vector<1x64x128xf32>,
    return
  }
  func.func @transform_0(%arg0: i32, %arg1: i32) -> (i32, i32, i32) {
    %c0_i32 = arith.constant 0 : i32
    %c0_i32_0 = arith.constant 0 : i32
    return %arg0, %c0_i32, %arg1 : i32, i32, i32
  }
  func.func @transform_1(%arg0: i32, %arg1: i32) -> (i32, i32) {
    %c0_i32 = arith.constant 0 : i32
    %c0_i32_0 = arith.constant 0 : i32
    %c0_i32_1 = arith.constant 0 : i32
    return %c0_i32, %c0_i32_0 : i32, i32
  }
  func.func @transform_2(%arg0: i32, %arg1: i32) -> (i32, i32) {
    %c0_i32 = arith.constant 0 : i32
    %c0_i32_0 = arith.constant 0 : i32
    %c0_i32_1 = arith.constant 0 : i32
    return %c0_i32, %c0_i32_0 : i32, i32
  }
  func.func @transform_3(%arg0: i32, %arg1: i32) -> (i32, i32, i32) {
    %c0_i32 = arith.constant 0 : i32
    %c0_i32_0 = arith.constant 0 : i32
    return %arg0, %c0_i32, %arg1 : i32, i32, i32
  }
  func.func @transform_4(%arg0: i32, %arg1: i32) -> (i32, i32, i32) {
    %c0_i32 = arith.constant 0 : i32
    %c0_i32_0 = arith.constant 0 : i32
    return %arg0, %c0_i32, %arg1 : i32, i32, i32
  }
}

module attributes {stable_mosaic.version = 11 : i64} {
  func.func @_conv3x3_kernel(%arg0: i32, %arg1: i32, %arg2: memref<1x64x128xf32, #tpu.memory_space<vmem>>, %arg3: memref<1x64x128xf32, #tpu.memory_space<vmem>>, %arg4: memref<64x576xbf16, #tpu.memory_space<vmem>>, %arg5: memref<64x1xf32, #tpu.memory_space<vmem>>, %arg6: memref<1x64x128xf32, #tpu.memory_space<vmem>>, %arg7: memref<576x128xbf16, #tpu.memory_space<vmem>>) attributes {dimension_semantics = [#tpu.dimension_semantics<parallel>, #tpu.dimension_semantics<parallel>], iteration_bounds = array<i64: 2, 1>, scalar_prefetch = 0 : i64, scratch_operands = 1 : i64, tpu.core_type = #tpu.core_type<tc>, window_params = [{transform_indices = @transform_0, window_bounds = array<i64: 1, 64, 128>}, {transform_indices = @transform_1, window_bounds = array<i64: 1, 64, 128>}, {pipeline_mode = #tpu.pipeline_mode<synchronous>, transform_indices = @transform_2, window_bounds = array<i64: 64, 576>}, {pipeline_mode = #tpu.pipeline_mode<synchronous>, transform_indices = @transform_3, window_bounds = array<i64: 64, 1>}, {transform_indices = @transform_4, window_bounds = array<i64: 1, 64, 128>}]} {
    %c0 = arith.constant 0 : index
    %c0_0 = arith.constant 0 : index
    %c0_1 = arith.constant 0 : index
    %0 = vector.load %arg2[%c0, %c0_0, %c0_1] : memref<1x64x128xf32, #tpu.memory_space<vmem>>, vector<1x64x128xf32>
    %1 = vector.shape_cast %0 : vector<1x64x128xf32> to vector<64x128xf32>
    %c0_2 = arith.constant 0 : index
    %c0_3 = arith.constant 0 : index
    %c0_4 = arith.constant 0 : index
    %2 = vector.load %arg3[%c0_2, %c0_3, %c0_4] : memref<1x64x128xf32, #tpu.memory_space<vmem>>, vector<1x64x128xf32>
    %3 = vector.shape_cast %2 : vector<1x64x128xf32> to vector<64x128xf32>
    %4 = tpu.concatenate %1, %3 in 1 : vector<64x128xf32>, vector<64x128xf32> -> vector<64x256xf32>
    %5 = arith.truncf %4 : vector<64x256xf32> to vector<64x256xbf16>
    %6 = vector.extract_strided_slice %5 {offsets = [0, 0], sizes = [64, 128], strides = [1, 1]} : vector<64x256xbf16> to vector<64x128xbf16>
    %c0_5 = arith.constant 0 : index
    %c0_6 = arith.constant 0 : index
    %7 = vector.load %arg7[%c0_5, %c0_6] : memref<576x128xbf16, #tpu.memory_space<vmem>>, vector<64x128xbf16>
    tpu.vector_store %arg7[%c0_5, %c0_6], %6 {strides = array<i32>} : memref<576x128xbf16, #tpu.memory_space<vmem>>, vector<64x128xbf16>,
    %8 = vector.extract_strided_slice %5 {offsets = [0, 1], sizes = [64, 128], strides = [1, 1]} : vector<64x256xbf16> to vector<64x128xbf16>
    %c64 = arith.constant 64 : index
    %c0_7 = arith.constant 0 : index
    %9 = vector.load %arg7[%c64, %c0_7] : memref<576x128xbf16, #tpu.memory_space<vmem>>, vector<64x128xbf16>
    tpu.vector_store %arg7[%c64, %c0_7], %8 {strides = array<i32>} : memref<576x128xbf16, #tpu.memory_space<vmem>>, vector<64x128xbf16>,
    %10 = vector.extract_strided_slice %5 {offsets = [0, 2], sizes = [64, 128], strides = [1, 1]} : vector<64x256xbf16> to vector<64x128xbf16>
    %c128 = arith.constant 128 : index
    %c0_8 = arith.constant 0 : index
    %11 = vector.load %arg7[%c128, %c0_8] : memref<576x128xbf16, #tpu.memory_space<vmem>>, vector<64x128xbf16>
    tpu.vector_store %arg7[%c128, %c0_8], %10 {strides = array<i32>} : memref<576x128xbf16, #tpu.memory_space<vmem>>, vector<64x128xbf16>,
    %12 = vector.extract_strided_slice %5 {offsets = [0, 10], sizes = [64, 128], strides = [1, 1]} : vector<64x256xbf16> to vector<64x128xbf16>
    %c192 = arith.constant 192 : index
    %c0_9 = arith.constant 0 : index
    %13 = vector.load %arg7[%c192, %c0_9] : memref<576x128xbf16, #tpu.memory_space<vmem>>, vector<64x128xbf16>
    tpu.vector_store %arg7[%c192, %c0_9], %12 {strides = array<i32>} : memref<576x128xbf16, #tpu.memory_space<vmem>>, vector<64x128xbf16>,
    %14 = vector.extract_strided_slice %5 {offsets = [0, 11], sizes = [64, 128], strides = [1, 1]} : vector<64x256xbf16> to vector<64x128xbf16>
    %c256 = arith.constant 256 : index
    %c0_10 = arith.constant 0 : index
    %15 = vector.load %arg7[%c256, %c0_10] : memref<576x128xbf16, #tpu.memory_space<vmem>>, vector<64x128xbf16>
    tpu.vector_store %arg7[%c256, %c0_10], %14 {strides = array<i32>} : memref<576x128xbf16, #tpu.memory_space<vmem>>, vector<64x128xbf16>,
    %16 = vector.extract_strided_slice %5 {offsets = [0, 12], sizes = [64, 128], strides = [1, 1]} : vector<64x256xbf16> to vector<64x128xbf16>
    %c320 = arith.constant 320 : index
    %c0_11 = arith.constant 0 : index
    %17 = vector.load %arg7[%c320, %c0_11] : memref<576x128xbf16, #tpu.memory_space<vmem>>, vector<64x128xbf16>
    tpu.vector_store %arg7[%c320, %c0_11], %16 {strides = array<i32>} : memref<576x128xbf16, #tpu.memory_space<vmem>>, vector<64x128xbf16>,
    %18 = vector.extract_strided_slice %5 {offsets = [0, 20], sizes = [64, 128], strides = [1, 1]} : vector<64x256xbf16> to vector<64x128xbf16>
    %c384 = arith.constant 384 : index
    %c0_12 = arith.constant 0 : index
    %19 = vector.load %arg7[%c384, %c0_12] : memref<576x128xbf16, #tpu.memory_space<vmem>>, vector<64x128xbf16>
    tpu.vector_store %arg7[%c384, %c0_12], %18 {strides = array<i32>} : memref<576x128xbf16, #tpu.memory_space<vmem>>, vector<64x128xbf16>,
    %20 = vector.extract_strided_slice %5 {offsets = [0, 21], sizes = [64, 128], strides = [1, 1]} : vector<64x256xbf16> to vector<64x128xbf16>
    %c448 = arith.constant 448 : index
    %c0_13 = arith.constant 0 : index
    %21 = vector.load %arg7[%c448, %c0_13] : memref<576x128xbf16, #tpu.memory_space<vmem>>, vector<64x128xbf16>
    tpu.vector_store %arg7[%c448, %c0_13], %20 {strides = array<i32>} : memref<576x128xbf16, #tpu.memory_space<vmem>>, vector<64x128xbf16>,
    %22 = vector.extract_strided_slice %5 {offsets = [0, 22], sizes = [64, 128], strides = [1, 1]} : vector<64x256xbf16> to vector<64x128xbf16>
    %c512 = arith.constant 512 : index
    %c0_14 = arith.constant 0 : index
    %23 = vector.load %arg7[%c512, %c0_14] : memref<576x128xbf16, #tpu.memory_space<vmem>>, vector<64x128xbf16>
    tpu.vector_store %arg7[%c512, %c0_14], %22 {strides = array<i32>} : memref<576x128xbf16, #tpu.memory_space<vmem>>, vector<64x128xbf16>,
    %c0_15 = arith.constant 0 : index
    %c0_16 = arith.constant 0 : index
    %24 = vector.load %arg4[%c0_15, %c0_16] : memref<64x576xbf16, #tpu.memory_space<vmem>>, vector<64x576xbf16>
    %c0_17 = arith.constant 0 : index
    %c0_18 = arith.constant 0 : index
    %25 = vector.load %arg7[%c0_17, %c0_18] : memref<576x128xbf16, #tpu.memory_space<vmem>>, vector<576x128xbf16>
    %cst = arith.constant dense<0.000000e+00> : vector<64x128xf32>
    %26 = tpu.matmul %24, %25, %cst {dimension_numbers = #tpu.dot_dimension_numbers<[1], [0], [0], [1], [0, 0, 1, 1], [], []>} : vector<64x576xbf16>, vector<576x128xbf16>, vector<64x128xf32> -> vector<64x128xf32>
    %c0_19 = arith.constant 0 : index
    %c0_20 = arith.constant 0 : index
    %27 = vector.load %arg5[%c0_19, %c0_20] : memref<64x1xf32, #tpu.memory_space<vmem>>, vector<64x1xf32>
    %28 = vector.broadcast %27 : vector<64x1xf32> to vector<64x128xf32>
    %29 = arith.addf %26, %28 : vector<64x128xf32>
    %c0_21 = arith.constant 0 : index
    %c0_22 = arith.constant 0 : index
    %c0_23 = arith.constant 0 : index
    %30 = vector.load %arg6[%c0_21, %c0_22, %c0_23] : memref<1x64x128xf32, #tpu.memory_space<vmem>>, vector<1x64x128xf32>
    %31 = vector.shape_cast %30 : vector<1x64x128xf32> to vector<64x128xf32>
    %32 = vector.shape_cast %29 : vector<64x128xf32> to vector<1x64x128xf32>
    tpu.vector_store %arg6[%c0_21, %c0_22, %c0_23], %32 {strides = array<i32>} : memref<1x64x128xf32, #tpu.memory_space<vmem>>, vector<1x64x128xf32>,
    return
  }
  func.func @transform_0(%arg0: i32, %arg1: i32) -> (i32, i32, i32) {
    %c0_i32 = arith.constant 0 : i32
    %c0_i32_0 = arith.constant 0 : i32
    return %arg0, %c0_i32, %arg1 : i32, i32, i32
  }
  func.func @transform_1(%arg0: i32, %arg1: i32) -> (i32, i32, i32) {
    %c1_i32 = arith.constant 1 : i32
    %0 = arith.addi %arg1, %c1_i32 : i32
    %c1_i32_0 = arith.constant 1 : i32
    %1 = arith.muli %0, %c1_i32_0 : i32
    %c0_i32 = arith.constant 0 : i32
    %c0_i32_1 = arith.constant 0 : i32
    return %arg0, %c0_i32, %1 : i32, i32, i32
  }
  func.func @transform_2(%arg0: i32, %arg1: i32) -> (i32, i32) {
    %c0_i32 = arith.constant 0 : i32
    %c0_i32_0 = arith.constant 0 : i32
    %c0_i32_1 = arith.constant 0 : i32
    return %c0_i32, %c0_i32_0 : i32, i32
  }
  func.func @transform_3(%arg0: i32, %arg1: i32) -> (i32, i32) {
    %c0_i32 = arith.constant 0 : i32
    %c0_i32_0 = arith.constant 0 : i32
    %c0_i32_1 = arith.constant 0 : i32
    return %c0_i32, %c0_i32_0 : i32, i32
  }
  func.func @transform_4(%arg0: i32, %arg1: i32) -> (i32, i32, i32) {
    %c0_i32 = arith.constant 0 : i32
    %c0_i32_0 = arith.constant 0 : i32
    return %arg0, %c0_i32, %arg1 : i32, i32, i32
  }
}

module attributes {stable_mosaic.version = 11 : i64} {
  func.func @_conv3x3_kernel(%arg0: i32, %arg1: i32, %arg2: memref<1x64x128xf32, #tpu.memory_space<vmem>>, %arg3: memref<1x64x128xf32, #tpu.memory_space<vmem>>, %arg4: memref<64x576xbf16, #tpu.memory_space<vmem>>, %arg5: memref<64x1xf32, #tpu.memory_space<vmem>>, %arg6: memref<1x64x128xf32, #tpu.memory_space<vmem>>, %arg7: memref<576x128xbf16, #tpu.memory_space<vmem>>) attributes {dimension_semantics = [#tpu.dimension_semantics<parallel>, #tpu.dimension_semantics<parallel>], iteration_bounds = array<i64: 2, 1>, scalar_prefetch = 0 : i64, scratch_operands = 1 : i64, tpu.core_type = #tpu.core_type<tc>, window_params = [{transform_indices = @transform_0, window_bounds = array<i64: 1, 64, 128>}, {transform_indices = @transform_1, window_bounds = array<i64: 1, 64, 128>}, {pipeline_mode = #tpu.pipeline_mode<synchronous>, transform_indices = @transform_2, window_bounds = array<i64: 64, 576>}, {pipeline_mode = #tpu.pipeline_mode<synchronous>, transform_indices = @transform_3, window_bounds = array<i64: 64, 1>}, {transform_indices = @transform_4, window_bounds = array<i64: 1, 64, 128>}]} {
    %c0 = arith.constant 0 : index
    %c0_0 = arith.constant 0 : index
    %c0_1 = arith.constant 0 : index
    %0 = vector.load %arg2[%c0, %c0_0, %c0_1] : memref<1x64x128xf32, #tpu.memory_space<vmem>>, vector<1x64x128xf32>
    %1 = vector.shape_cast %0 : vector<1x64x128xf32> to vector<64x128xf32>
    %c0_2 = arith.constant 0 : index
    %c0_3 = arith.constant 0 : index
    %c0_4 = arith.constant 0 : index
    %2 = vector.load %arg3[%c0_2, %c0_3, %c0_4] : memref<1x64x128xf32, #tpu.memory_space<vmem>>, vector<1x64x128xf32>
    %3 = vector.shape_cast %2 : vector<1x64x128xf32> to vector<64x128xf32>
    %4 = tpu.concatenate %1, %3 in 1 : vector<64x128xf32>, vector<64x128xf32> -> vector<64x256xf32>
    %5 = arith.truncf %4 : vector<64x256xf32> to vector<64x256xbf16>
    %6 = vector.extract_strided_slice %5 {offsets = [0, 0], sizes = [64, 128], strides = [1, 1]} : vector<64x256xbf16> to vector<64x128xbf16>
    %c0_5 = arith.constant 0 : index
    %c0_6 = arith.constant 0 : index
    %7 = vector.load %arg7[%c0_5, %c0_6] : memref<576x128xbf16, #tpu.memory_space<vmem>>, vector<64x128xbf16>
    tpu.vector_store %arg7[%c0_5, %c0_6], %6 {strides = array<i32>} : memref<576x128xbf16, #tpu.memory_space<vmem>>, vector<64x128xbf16>,
    %8 = vector.extract_strided_slice %5 {offsets = [0, 1], sizes = [64, 128], strides = [1, 1]} : vector<64x256xbf16> to vector<64x128xbf16>
    %c64 = arith.constant 64 : index
    %c0_7 = arith.constant 0 : index
    %9 = vector.load %arg7[%c64, %c0_7] : memref<576x128xbf16, #tpu.memory_space<vmem>>, vector<64x128xbf16>
    tpu.vector_store %arg7[%c64, %c0_7], %8 {strides = array<i32>} : memref<576x128xbf16, #tpu.memory_space<vmem>>, vector<64x128xbf16>,
    %10 = vector.extract_strided_slice %5 {offsets = [0, 2], sizes = [64, 128], strides = [1, 1]} : vector<64x256xbf16> to vector<64x128xbf16>
    %c128 = arith.constant 128 : index
    %c0_8 = arith.constant 0 : index
    %11 = vector.load %arg7[%c128, %c0_8] : memref<576x128xbf16, #tpu.memory_space<vmem>>, vector<64x128xbf16>
    tpu.vector_store %arg7[%c128, %c0_8], %10 {strides = array<i32>} : memref<576x128xbf16, #tpu.memory_space<vmem>>, vector<64x128xbf16>,
    %12 = vector.extract_strided_slice %5 {offsets = [0, 6], sizes = [64, 128], strides = [1, 1]} : vector<64x256xbf16> to vector<64x128xbf16>
    %c192 = arith.constant 192 : index
    %c0_9 = arith.constant 0 : index
    %13 = vector.load %arg7[%c192, %c0_9] : memref<576x128xbf16, #tpu.memory_space<vmem>>, vector<64x128xbf16>
    tpu.vector_store %arg7[%c192, %c0_9], %12 {strides = array<i32>} : memref<576x128xbf16, #tpu.memory_space<vmem>>, vector<64x128xbf16>,
    %14 = vector.extract_strided_slice %5 {offsets = [0, 7], sizes = [64, 128], strides = [1, 1]} : vector<64x256xbf16> to vector<64x128xbf16>
    %c256 = arith.constant 256 : index
    %c0_10 = arith.constant 0 : index
    %15 = vector.load %arg7[%c256, %c0_10] : memref<576x128xbf16, #tpu.memory_space<vmem>>, vector<64x128xbf16>
    tpu.vector_store %arg7[%c256, %c0_10], %14 {strides = array<i32>} : memref<576x128xbf16, #tpu.memory_space<vmem>>, vector<64x128xbf16>,
    %16 = vector.extract_strided_slice %5 {offsets = [0, 8], sizes = [64, 128], strides = [1, 1]} : vector<64x256xbf16> to vector<64x128xbf16>
    %c320 = arith.constant 320 : index
    %c0_11 = arith.constant 0 : index
    %17 = vector.load %arg7[%c320, %c0_11] : memref<576x128xbf16, #tpu.memory_space<vmem>>, vector<64x128xbf16>
    tpu.vector_store %arg7[%c320, %c0_11], %16 {strides = array<i32>} : memref<576x128xbf16, #tpu.memory_space<vmem>>, vector<64x128xbf16>,
    %18 = vector.extract_strided_slice %5 {offsets = [0, 12], sizes = [64, 128], strides = [1, 1]} : vector<64x256xbf16> to vector<64x128xbf16>
    %c384 = arith.constant 384 : index
    %c0_12 = arith.constant 0 : index
    %19 = vector.load %arg7[%c384, %c0_12] : memref<576x128xbf16, #tpu.memory_space<vmem>>, vector<64x128xbf16>
    tpu.vector_store %arg7[%c384, %c0_12], %18 {strides = array<i32>} : memref<576x128xbf16, #tpu.memory_space<vmem>>, vector<64x128xbf16>,
    %20 = vector.extract_strided_slice %5 {offsets = [0, 13], sizes = [64, 128], strides = [1, 1]} : vector<64x256xbf16> to vector<64x128xbf16>
    %c448 = arith.constant 448 : index
    %c0_13 = arith.constant 0 : index
    %21 = vector.load %arg7[%c448, %c0_13] : memref<576x128xbf16, #tpu.memory_space<vmem>>, vector<64x128xbf16>
    tpu.vector_store %arg7[%c448, %c0_13], %20 {strides = array<i32>} : memref<576x128xbf16, #tpu.memory_space<vmem>>, vector<64x128xbf16>,
    %22 = vector.extract_strided_slice %5 {offsets = [0, 14], sizes = [64, 128], strides = [1, 1]} : vector<64x256xbf16> to vector<64x128xbf16>
    %c512 = arith.constant 512 : index
    %c0_14 = arith.constant 0 : index
    %23 = vector.load %arg7[%c512, %c0_14] : memref<576x128xbf16, #tpu.memory_space<vmem>>, vector<64x128xbf16>
    tpu.vector_store %arg7[%c512, %c0_14], %22 {strides = array<i32>} : memref<576x128xbf16, #tpu.memory_space<vmem>>, vector<64x128xbf16>,
    %c0_15 = arith.constant 0 : index
    %c0_16 = arith.constant 0 : index
    %24 = vector.load %arg4[%c0_15, %c0_16] : memref<64x576xbf16, #tpu.memory_space<vmem>>, vector<64x576xbf16>
    %c0_17 = arith.constant 0 : index
    %c0_18 = arith.constant 0 : index
    %25 = vector.load %arg7[%c0_17, %c0_18] : memref<576x128xbf16, #tpu.memory_space<vmem>>, vector<576x128xbf16>
    %cst = arith.constant dense<0.000000e+00> : vector<64x128xf32>
    %26 = tpu.matmul %24, %25, %cst {dimension_numbers = #tpu.dot_dimension_numbers<[1], [0], [0], [1], [0, 0, 1, 1], [], []>} : vector<64x576xbf16>, vector<576x128xbf16>, vector<64x128xf32> -> vector<64x128xf32>
    %c0_19 = arith.constant 0 : index
    %c0_20 = arith.constant 0 : index
    %27 = vector.load %arg5[%c0_19, %c0_20] : memref<64x1xf32, #tpu.memory_space<vmem>>, vector<64x1xf32>
    %28 = vector.broadcast %27 : vector<64x1xf32> to vector<64x128xf32>
    %29 = arith.addf %26, %28 : vector<64x128xf32>
    %c0_21 = arith.constant 0 : index
    %c0_22 = arith.constant 0 : index
    %c0_23 = arith.constant 0 : index
    %30 = vector.load %arg6[%c0_21, %c0_22, %c0_23] : memref<1x64x128xf32, #tpu.memory_space<vmem>>, vector<1x64x128xf32>
    %31 = vector.shape_cast %30 : vector<1x64x128xf32> to vector<64x128xf32>
    %32 = vector.shape_cast %29 : vector<64x128xf32> to vector<1x64x128xf32>
    tpu.vector_store %arg6[%c0_21, %c0_22, %c0_23], %32 {strides = array<i32>} : memref<1x64x128xf32, #tpu.memory_space<vmem>>, vector<1x64x128xf32>,
    return
  }
  func.func @transform_0(%arg0: i32, %arg1: i32) -> (i32, i32, i32) {
    %c0_i32 = arith.constant 0 : i32
    %c0_i32_0 = arith.constant 0 : i32
    return %arg0, %c0_i32, %arg1 : i32, i32, i32
  }
  func.func @transform_1(%arg0: i32, %arg1: i32) -> (i32, i32, i32) {
    %c1_i32 = arith.constant 1 : i32
    %0 = arith.addi %arg1, %c1_i32 : i32
    %c1_i32_0 = arith.constant 1 : i32
    %1 = arith.muli %0, %c1_i32_0 : i32
    %c0_i32 = arith.constant 0 : i32
    %c0_i32_1 = arith.constant 0 : i32
    return %arg0, %c0_i32, %1 : i32, i32, i32
  }
  func.func @transform_2(%arg0: i32, %arg1: i32) -> (i32, i32) {
    %c0_i32 = arith.constant 0 : i32
    %c0_i32_0 = arith.constant 0 : i32
    %c0_i32_1 = arith.constant 0 : i32
    return %c0_i32, %c0_i32_0 : i32, i32
  }
  func.func @transform_3(%arg0: i32, %arg1: i32) -> (i32, i32) {
    %c0_i32 = arith.constant 0 : i32
    %c0_i32_0 = arith.constant 0 : i32
    %c0_i32_1 = arith.constant 0 : i32
    return %c0_i32, %c0_i32_0 : i32, i32
  }
  func.func @transform_4(%arg0: i32, %arg1: i32) -> (i32, i32, i32) {
    %c0_i32 = arith.constant 0 : i32
    %c0_i32_0 = arith.constant 0 : i32
    return %arg0, %c0_i32, %arg1 : i32, i32, i32
  }
}

module attributes {stable_mosaic.version = 11 : i64} {
  func.func @_conv3x3_kernel(%arg0: i32, %arg1: i32, %arg2: memref<1x64x128xf32, #tpu.memory_space<vmem>>, %arg3: memref<1x64x128xf32, #tpu.memory_space<vmem>>, %arg4: memref<64x576xbf16, #tpu.memory_space<vmem>>, %arg5: memref<64x1xf32, #tpu.memory_space<vmem>>, %arg6: memref<1x64x128xf32, #tpu.memory_space<vmem>>, %arg7: memref<576x128xbf16, #tpu.memory_space<vmem>>) attributes {dimension_semantics = [#tpu.dimension_semantics<parallel>, #tpu.dimension_semantics<parallel>], iteration_bounds = array<i64: 2, 1>, scalar_prefetch = 0 : i64, scratch_operands = 1 : i64, tpu.core_type = #tpu.core_type<tc>, window_params = [{transform_indices = @transform_0, window_bounds = array<i64: 1, 64, 128>}, {transform_indices = @transform_1, window_bounds = array<i64: 1, 64, 128>}, {pipeline_mode = #tpu.pipeline_mode<synchronous>, transform_indices = @transform_2, window_bounds = array<i64: 64, 576>}, {pipeline_mode = #tpu.pipeline_mode<synchronous>, transform_indices = @transform_3, window_bounds = array<i64: 64, 1>}, {transform_indices = @transform_4, window_bounds = array<i64: 1, 64, 128>}]} {
    %c0 = arith.constant 0 : index
    %c0_0 = arith.constant 0 : index
    %c0_1 = arith.constant 0 : index
    %0 = vector.load %arg2[%c0, %c0_0, %c0_1] : memref<1x64x128xf32, #tpu.memory_space<vmem>>, vector<1x64x128xf32>
    %1 = vector.shape_cast %0 : vector<1x64x128xf32> to vector<64x128xf32>
    %c0_2 = arith.constant 0 : index
    %c0_3 = arith.constant 0 : index
    %c0_4 = arith.constant 0 : index
    %2 = vector.load %arg3[%c0_2, %c0_3, %c0_4] : memref<1x64x128xf32, #tpu.memory_space<vmem>>, vector<1x64x128xf32>
    %3 = vector.shape_cast %2 : vector<1x64x128xf32> to vector<64x128xf32>
    %4 = tpu.concatenate %1, %3 in 1 : vector<64x128xf32>, vector<64x128xf32> -> vector<64x256xf32>
    %5 = arith.truncf %4 : vector<64x256xf32> to vector<64x256xbf16>
    %6 = vector.extract_strided_slice %5 {offsets = [0, 0], sizes = [64, 128], strides = [1, 1]} : vector<64x256xbf16> to vector<64x128xbf16>
    %c0_5 = arith.constant 0 : index
    %c0_6 = arith.constant 0 : index
    %7 = vector.load %arg7[%c0_5, %c0_6] : memref<576x128xbf16, #tpu.memory_space<vmem>>, vector<64x128xbf16>
    tpu.vector_store %arg7[%c0_5, %c0_6], %6 {strides = array<i32>} : memref<576x128xbf16, #tpu.memory_space<vmem>>, vector<64x128xbf16>,
    %8 = vector.extract_strided_slice %5 {offsets = [0, 1], sizes = [64, 128], strides = [1, 1]} : vector<64x256xbf16> to vector<64x128xbf16>
    %c64 = arith.constant 64 : index
    %c0_7 = arith.constant 0 : index
    %9 = vector.load %arg7[%c64, %c0_7] : memref<576x128xbf16, #tpu.memory_space<vmem>>, vector<64x128xbf16>
    tpu.vector_store %arg7[%c64, %c0_7], %8 {strides = array<i32>} : memref<576x128xbf16, #tpu.memory_space<vmem>>, vector<64x128xbf16>,
    %10 = vector.extract_strided_slice %5 {offsets = [0, 2], sizes = [64, 128], strides = [1, 1]} : vector<64x256xbf16> to vector<64x128xbf16>
    %c128 = arith.constant 128 : index
    %c0_8 = arith.constant 0 : index
    %11 = vector.load %arg7[%c128, %c0_8] : memref<576x128xbf16, #tpu.memory_space<vmem>>, vector<64x128xbf16>
    tpu.vector_store %arg7[%c128, %c0_8], %10 {strides = array<i32>} : memref<576x128xbf16, #tpu.memory_space<vmem>>, vector<64x128xbf16>,
    %12 = vector.extract_strided_slice %5 {offsets = [0, 4], sizes = [64, 128], strides = [1, 1]} : vector<64x256xbf16> to vector<64x128xbf16>
    %c192 = arith.constant 192 : index
    %c0_9 = arith.constant 0 : index
    %13 = vector.load %arg7[%c192, %c0_9] : memref<576x128xbf16, #tpu.memory_space<vmem>>, vector<64x128xbf16>
    tpu.vector_store %arg7[%c192, %c0_9], %12 {strides = array<i32>} : memref<576x128xbf16, #tpu.memory_space<vmem>>, vector<64x128xbf16>,
    %14 = vector.extract_strided_slice %5 {offsets = [0, 5], sizes = [64, 128], strides = [1, 1]} : vector<64x256xbf16> to vector<64x128xbf16>
    %c256 = arith.constant 256 : index
    %c0_10 = arith.constant 0 : index
    %15 = vector.load %arg7[%c256, %c0_10] : memref<576x128xbf16, #tpu.memory_space<vmem>>, vector<64x128xbf16>
    tpu.vector_store %arg7[%c256, %c0_10], %14 {strides = array<i32>} : memref<576x128xbf16, #tpu.memory_space<vmem>>, vector<64x128xbf16>,
    %16 = vector.extract_strided_slice %5 {offsets = [0, 6], sizes = [64, 128], strides = [1, 1]} : vector<64x256xbf16> to vector<64x128xbf16>
    %c320 = arith.constant 320 : index
    %c0_11 = arith.constant 0 : index
    %17 = vector.load %arg7[%c320, %c0_11] : memref<576x128xbf16, #tpu.memory_space<vmem>>, vector<64x128xbf16>
    tpu.vector_store %arg7[%c320, %c0_11], %16 {strides = array<i32>} : memref<576x128xbf16, #tpu.memory_space<vmem>>, vector<64x128xbf16>,
    %18 = vector.extract_strided_slice %5 {offsets = [0, 8], sizes = [64, 128], strides = [1, 1]} : vector<64x256xbf16> to vector<64x128xbf16>
    %c384 = arith.constant 384 : index
    %c0_12 = arith.constant 0 : index
    %19 = vector.load %arg7[%c384, %c0_12] : memref<576x128xbf16, #tpu.memory_space<vmem>>, vector<64x128xbf16>
    tpu.vector_store %arg7[%c384, %c0_12], %18 {strides = array<i32>} : memref<576x128xbf16, #tpu.memory_space<vmem>>, vector<64x128xbf16>,
    %20 = vector.extract_strided_slice %5 {offsets = [0, 9], sizes = [64, 128], strides = [1, 1]} : vector<64x256xbf16> to vector<64x128xbf16>
    %c448 = arith.constant 448 : index
    %c0_13 = arith.constant 0 : index
    %21 = vector.load %arg7[%c448, %c0_13] : memref<576x128xbf16, #tpu.memory_space<vmem>>, vector<64x128xbf16>
    tpu.vector_store %arg7[%c448, %c0_13], %20 {strides = array<i32>} : memref<576x128xbf16, #tpu.memory_space<vmem>>, vector<64x128xbf16>,
    %22 = vector.extract_strided_slice %5 {offsets = [0, 10], sizes = [64, 128], strides = [1, 1]} : vector<64x256xbf16> to vector<64x128xbf16>
    %c512 = arith.constant 512 : index
    %c0_14 = arith.constant 0 : index
    %23 = vector.load %arg7[%c512, %c0_14] : memref<576x128xbf16, #tpu.memory_space<vmem>>, vector<64x128xbf16>
    tpu.vector_store %arg7[%c512, %c0_14], %22 {strides = array<i32>} : memref<576x128xbf16, #tpu.memory_space<vmem>>, vector<64x128xbf16>,
    %c0_15 = arith.constant 0 : index
    %c0_16 = arith.constant 0 : index
    %24 = vector.load %arg4[%c0_15, %c0_16] : memref<64x576xbf16, #tpu.memory_space<vmem>>, vector<64x576xbf16>
    %c0_17 = arith.constant 0 : index
    %c0_18 = arith.constant 0 : index
    %25 = vector.load %arg7[%c0_17, %c0_18] : memref<576x128xbf16, #tpu.memory_space<vmem>>, vector<576x128xbf16>
    %cst = arith.constant dense<0.000000e+00> : vector<64x128xf32>
    %26 = tpu.matmul %24, %25, %cst {dimension_numbers = #tpu.dot_dimension_numbers<[1], [0], [0], [1], [0, 0, 1, 1], [], []>} : vector<64x576xbf16>, vector<576x128xbf16>, vector<64x128xf32> -> vector<64x128xf32>
    %c0_19 = arith.constant 0 : index
    %c0_20 = arith.constant 0 : index
    %27 = vector.load %arg5[%c0_19, %c0_20] : memref<64x1xf32, #tpu.memory_space<vmem>>, vector<64x1xf32>
    %28 = vector.broadcast %27 : vector<64x1xf32> to vector<64x128xf32>
    %29 = arith.addf %26, %28 : vector<64x128xf32>
    %c0_21 = arith.constant 0 : index
    %c0_22 = arith.constant 0 : index
    %c0_23 = arith.constant 0 : index
    %30 = vector.load %arg6[%c0_21, %c0_22, %c0_23] : memref<1x64x128xf32, #tpu.memory_space<vmem>>, vector<1x64x128xf32>
    %31 = vector.shape_cast %30 : vector<1x64x128xf32> to vector<64x128xf32>
    %32 = vector.shape_cast %29 : vector<64x128xf32> to vector<1x64x128xf32>
    tpu.vector_store %arg6[%c0_21, %c0_22, %c0_23], %32 {strides = array<i32>} : memref<1x64x128xf32, #tpu.memory_space<vmem>>, vector<1x64x128xf32>,
    return
  }
  func.func @transform_0(%arg0: i32, %arg1: i32) -> (i32, i32, i32) {
    %c0_i32 = arith.constant 0 : i32
    %c0_i32_0 = arith.constant 0 : i32
    return %arg0, %c0_i32, %arg1 : i32, i32, i32
  }
  func.func @transform_1(%arg0: i32, %arg1: i32) -> (i32, i32, i32) {
    %c1_i32 = arith.constant 1 : i32
    %0 = arith.addi %arg1, %c1_i32 : i32
    %c1_i32_0 = arith.constant 1 : i32
    %1 = arith.muli %0, %c1_i32_0 : i32
    %c0_i32 = arith.constant 0 : i32
    %c0_i32_1 = arith.constant 0 : i32
    return %arg0, %c0_i32, %1 : i32, i32, i32
  }
  func.func @transform_2(%arg0: i32, %arg1: i32) -> (i32, i32) {
    %c0_i32 = arith.constant 0 : i32
    %c0_i32_0 = arith.constant 0 : i32
    %c0_i32_1 = arith.constant 0 : i32
    return %c0_i32, %c0_i32_0 : i32, i32
  }
  func.func @transform_3(%arg0: i32, %arg1: i32) -> (i32, i32) {
    %c0_i32 = arith.constant 0 : i32
    %c0_i32_0 = arith.constant 0 : i32
    %c0_i32_1 = arith.constant 0 : i32
    return %c0_i32, %c0_i32_0 : i32, i32
  }
  func.func @transform_4(%arg0: i32, %arg1: i32) -> (i32, i32, i32) {
    %c0_i32 = arith.constant 0 : i32
    %c0_i32_0 = arith.constant 0 : i32
    return %arg0, %c0_i32, %arg1 : i32, i32, i32
  }
}

</mosaic_0001>

<llo_original>
// kernel: detector_backbone_with_fpn_forward.6
$region0: #{detector_backbone_with_fpn_forward.6}
  #allocation0 [shape = 'u32[]', space=smem, size = 0x4, offset = 0x4, fixed_abs, tag = 'smem constant byte address 0x4 - core index']
  #allocation1 [shape = 'u32[144,128]{1,0:T(1,128)}', space=vmem, size = 0x12000, scoped, tag = 'internal scratch']
  %s0 = inlined_call_operand.vmem [shape: f32[2,64,128], index: 0, kind: input, shape index: {}]
  %s1 = inlined_call_operand.vmem [shape: bf16[64,64], index: 1, kind: input, shape index: {}]
  %s2 = inlined_call_operand.vmem [shape: f32[64,1], index: 2, kind: input, shape index: {}]
  %s3 = inlined_call_operand.vmem [shape: f32[2,64,128], index: 3, kind: output, shape index: {}]
  %s4 = sld [smem:[#allocation0]]
  $region45: #{detector_backbone_with_fpn_forward.6} parent=0
    _
  %s6 = ssub.s32 1, %s4
  %s7 = scalar_select 0, %s6, %s4
  loop: start=0, step=1, limit=4
  $region2: #{detector_backbone_with_fpn_forward.6} parent=0 // loop_pre_header
    _
  $region3: #{detector_backbone_with_fpn_forward.6} parent=0 // loop_header
    %s9 = sphi 0, %s13
    %p10 = scmp.ge.s32.totalorder %s9, 4
    %s16 = sphi 0, %s28
    %s17 = sphi 0, %s24
    %s18 = sphi 0, %s16
    %s19 = sphi 0, %s17
    %s20 = sphi 0, %s18
    %s21 = sphi 0, %s19
    %s33 = sphi 0, %s35
    %s36 = sphi 0, %s33
    %s37 = sphi 0, %s36
    %s53 = sphi 0, %s37
    %s57 = sphi 0, %s57
    %s59 = sphi 0, %s57
    %s60 = sphi 0, %s59
    %s74 = sphi 0, %s60
    %s78 = sphi 0, %s78
    %s80 = sphi 0, %s78
    %s81 = sphi 0, %s80
    %s95 = sphi 0, %s81
    %s103 = sphi 0, %s105
    %s106 = sphi 0, %s103
    %s107 = sphi 0, %s106
    %s123 = sphi 0, %s107
  $region4: #{detector_backbone_with_fpn_forward.6} parent=0 // loop_header_branch
    %12 = sbr.rel (%p10) target = $region8
  $region5: #{detector_backbone_with_fpn_forward.6} parent=0 // loop_body
    %s14 = ssub.s32 %s9, 1
    %s15 = ssub.s32 %s9, 2
    %s22 = sadd.s32 1, %s17
    %p23 = scmp.ge.s32.totalorder %s22, 1
    %s24 = scalar_select %p23, 0, %s22
    %s25 = sadd.s32 1, %s16
    %s26 = scalar_select %p23, %s25, %s16
    %p27 = scmp.ge.s32.totalorder %s26, 2
    %s28 = scalar_select %p27, 0, %s26
    %s29 = ssub.s32 %s16, %s28
    %s30 = ssub.s32 %s17, %s24
    %s31 = sor.u32 %s29, %s30
    %p32 = scmp.eq.s32.totalorder %s31, 0
    %s34 = sadd.s32 %s33, 1
    %s35 = scalar_select %p32, %s33, %s34
    %p38 = pneg %p32
    %p39 = scmp.eq.s32.totalorder %s9, 1
    %p40 = por %p38, %p39
    %p41 = scmp.ne.s32.totalorder %s33, %s36
    %p42 = scmp.eq.s32.totalorder %s9, 0
    %p43 = por %p41, %p42
    %p44 = scmp.ne.s32.totalorder %s33, %s36
    %p45 = scmp.eq.s32.totalorder %s14, 1
    %p46 = por %p44, %p45
    %p47 = scmp.ne.s32.totalorder %s36, %s37
    %p48 = scmp.eq.s32.totalorder %s14, 0
    %p49 = por %p47, %p48
    %p50 = scmp.ne.s32.totalorder %s36, %s37
    %p51 = scmp.eq.s32.totalorder %s15, 1
    %p52 = por %p50, %p51
    %p54 = scmp.ne.s32.totalorder %s37, %s53
    %p55 = scmp.eq.s32.totalorder %s15, 0
    %p56 = por %p54, %p55
    %s58 = sadd.s32 %s57, 1
    %p61 = scmp.eq.s32.totalorder %s9, 1
    %p62 = scmp.ne.s32.totalorder %s57, %s59
    %p63 = scmp.eq.s32.totalorder %s9, 0
    %p64 = por %p62, %p63
    %p65 = scmp.ne.s32.totalorder %s57, %s59
    %p66 = scmp.eq.s32.totalorder %s14, 1
    %p67 = por %p65, %p66
    %p68 = scmp.ne.s32.totalorder %s59, %s60
    %p69 = scmp.eq.s32.totalorder %s14, 0
    %p70 = por %p68, %p69
    %p71 = scmp.ne.s32.totalorder %s59, %s60
    %p72 = scmp.eq.s32.totalorder %s15, 1
    %p73 = por %p71, %p72
    %p75 = scmp.ne.s32.totalorder %s60, %s74
    %p76 = scmp.eq.s32.totalorder %s15, 0
    %p77 = por %p75, %p76
    %s79 = sadd.s32 %s78, 1
    %p82 = scmp.eq.s32.totalorder %s9, 1
    %p83 = scmp.ne.s32.totalorder %s78, %s80
    %p84 = scmp.eq.s32.totalorder %s9, 0
    %p85 = por %p83, %p84
    %p86 = scmp.ne.s32.totalorder %s78, %s80
    %p87 = scmp.eq.s32.totalorder %s14, 1
    %p88 = por %p86, %p87
    %p89 = scmp.ne.s32.totalorder %s80, %s81
    %p90 = scmp.eq.s32.totalorder %s14, 0
    %p91 = por %p89, %p90
    %p92 = scmp.ne.s32.totalorder %s80, %s81
    %p93 = scmp.eq.s32.totalorder %s15, 1
    %p94 = por %p92, %p93
    %p96 = scmp.ne.s32.totalorder %s81, %s95
    %p97 = scmp.eq.s32.totalorder %s15, 0
    %p98 = por %p96, %p97
    %s99 = ssub.s32 %s16, %s28
    %s100 = ssub.s32 %s17, %s24
    %s101 = sor.u32 %s99, %s100
    %p102 = scmp.eq.s32.totalorder %s101, 0
    %s104 = sadd.s32 %s103, 1
    %s105 = scalar_select %p102, %s103, %s104
    %p108 = pneg %p102
    %p109 = scmp.eq.s32.totalorder %s9, 1
    %p110 = por %p108, %p109
    %p111 = scmp.ne.s32.totalorder %s103, %s106
    %p112 = scmp.eq.s32.totalorder %s9, 0
    %p113 = por %p111, %p112
    %p114 = scmp.ne.s32.totalorder %s103, %s106
    %p115 = scmp.eq.s32.totalorder %s14, 1
    %p116 = por %p114, %p115
    %p117 = scmp.ne.s32.totalorder %s106, %s107
    %p118 = scmp.eq.s32.totalorder %s14, 0
    %p119 = por %p117, %p118
    %p120 = scmp.ne.s32.totalorder %s106, %s107
    %p121 = scmp.eq.s32.totalorder %s15, 1
    %p122 = por %p120, %p121
    %p124 = scmp.ne.s32.totalorder %s107, %s123
    %p125 = scmp.eq.s32.totalorder %s15, 0
    %p126 = por %p124, %p125
    %p127 = scmp.le.s32.totalorder 1, %s9
    %p128 = scmp.lt.s32.totalorder %s9, 3
    %p129 = pnand %p127, %p128
    %p130 = pneg %p129
    // Predicated region
    $region9: #{detector_backbone_with_fpn_forward.6} parent=5 // pred_check
      _
    $region10: #{detector_backbone_with_fpn_forward.6} parent=5 // pred_check_branch
      %132 = sbr.rel (%p129) target = $region12
    $region11: #{detector_backbone_with_fpn_forward.6} parent=5 // pred_region
      %s133 = ssub.s32 %s9, 1
      // Predicated region
      $region13: #{detector_backbone_with_fpn_forward.6} parent=11 // pred_check
        %p134 = pneg %p70
      $region14: #{detector_backbone_with_fpn_forward.6} parent=11 // pred_check_branch
        %136 = sbr.rel (%p134) target = $region16
      $region15: #{detector_backbone_with_fpn_forward.6} parent=11 // pred_region
        _
      $region16: #{detector_backbone_with_fpn_forward.6} parent=11 // pred_fallthru
        _
      // Predicated region
      $region17: #{detector_backbone_with_fpn_forward.6} parent=11 // pred_check
        %p137 = pneg %p91
      $region18: #{detector_backbone_with_fpn_forward.6} parent=11 // pred_check_branch
        %139 = sbr.rel (%p137) target = $region20
      $region19: #{detector_backbone_with_fpn_forward.6} parent=11 // pred_region
        _
      $region20: #{detector_backbone_with_fpn_forward.6} parent=11 // pred_fallthru
        _
    $region12: #{detector_backbone_with_fpn_forward.6} parent=5 // pred_fallthru
      _
    %p140 = scmp.lt.s32.totalorder %s9, 2
    // Predicated region
    $region21: #{detector_backbone_with_fpn_forward.6} parent=5 // pred_check
      %p141 = pneg %p140
    $region22: #{detector_backbone_with_fpn_forward.6} parent=5 // pred_check_branch
      %143 = sbr.rel (%p141) target = $region24
    $region23: #{detector_backbone_with_fpn_forward.6} parent=5 // pred_region
      // Predicated region
      $region25: #{detector_backbone_with_fpn_forward.6} parent=23 // pred_check
        %p144 = pneg %p43
      $region26: #{detector_backbone_with_fpn_forward.6} parent=23 // pred_check_branch
        %146 = sbr.rel (%p144) target = $region28
      $region27: #{detector_backbone_with_fpn_forward.6} parent=23 // pred_region
        %p147 = scmp.lt.s32.totalorder %s16, 1
        %s148 = scalar_select %p147, %s16, 1
        %p149 = scmp.lt.s32.totalorder %s17, 0
        %s150 = scalar_select %p149, %s17, 0
        %s151 = smul.addr %s148, 8
        %s152 = sadd.s32 %s150, %s151
        %s153 = smul.addr %s152, 8
        %s154 = scalar_lea.vmem %s0, %s153
      $region28: #{detector_backbone_with_fpn_forward.6} parent=23 // pred_fallthru
        _
    $region24: #{detector_backbone_with_fpn_forward.6} parent=5 // pred_fallthru
      _
    %p155 = scmp.le.s32.totalorder 1, %s9
    %p156 = scmp.lt.s32.totalorder %s9, 3
    %p157 = pnand %p155, %p156
    %p158 = pneg %p157
    // Predicated region
    $region29: #{detector_backbone_with_fpn_forward.6} parent=5 // pred_check
      _
    $region30: #{detector_backbone_with_fpn_forward.6} parent=5 // pred_check_branch
      %160 = sbr.rel (%p157) target = $region32
    $region31: #{detector_backbone_with_fpn_forward.6} parent=5 // pred_region
      %s161 = ssub.s32 %s9, 1
      %p162 = scmp.lt.s32.totalorder %s18, 1
      %s163 = scalar_select %p162, %s18, 1
      %p164 = scmp.lt.s32.totalorder %s19, 0
      %s165 = scalar_select %p164, %s19, 0
      %s166 = smul.addr %s163, 8
      %s167 = sadd.s32 %s165, %s166
      %s168 = smul.addr %s167, 8
      %s169 = scalar_lea.vmem %s0, %s168
      %p170 = pneg %p49
      %p171 = pneg %p46
      %p172 = pneg %p70
      %p173 = pneg %p67
      %p174 = pneg %p91
      %p175 = pneg %p88
      %p176 = pneg %p119
      %p177 = pneg %p116
      %p178 = scmp.lt.s32.totalorder %s18, 1
      %s179 = scalar_select %p178, %s18, 1
      %p180 = scmp.lt.s32.totalorder %s19, 0
      %s181 = scalar_select %p180, %s19, 0
      %s182 = smul.addr %s179, 8
      %s183 = sadd.s32 %s181, %s182
      %s184 = smul.addr %s183, 8
      %s185 = scalar_lea.vmem %s3, %s184
      %p186 = scmp.lt.s32.totalorder %s18, 1
      %s187 = scalar_select %p186, %s18, 1
      %p188 = scmp.lt.s32.totalorder %s19, 0
      %s189 = scalar_select %p188, %s19, 0
      %s190 = smul.addr %s187, 8
      %s191 = sadd.s32 %s189, %s190
      %s192 = smul.addr %s191, 8
      %s193 = scalar_lea.vmem %s0, %s192
      %p194 = scmp.lt.s32.totalorder %s18, 1
      %s195 = scalar_select %p194, %s18, 1
      %p196 = scmp.lt.s32.totalorder %s19, 0
      %s197 = scalar_select %p196, %s19, 0
      %s198 = smul.addr %s195, 8
      %s199 = sadd.s32 %s197, %s198
      %s200 = smul.addr %s199, 8
      %s201 = scalar_lea.vmem %s3, %s200
      %v203 = vld [vmem:[%s193] sm:$0xff]
      %v204 = vld [vmem:[%s193 + $0x8] sm:$0xff]
      %v205 = vld [vmem:[%s193 + $0x10] sm:$0xff]
      %v206 = vld [vmem:[%s193 + $0x18] sm:$0xff]
      %v207 = vld [vmem:[%s193 + $0x20] sm:$0xff]
      %v208 = vld [vmem:[%s193 + $0x28] sm:$0xff]
      %v209 = vld [vmem:[%s193 + $0x30] sm:$0xff]
      %v210 = vld [vmem:[%s193 + $0x38] sm:$0xff]
      %v211 = vpack.c.bf16 %v204, %v203
      %v212 = vpack.c.bf16 %v206, %v205
      %v213 = vpack.c.bf16 %v208, %v207
      %v214 = vpack.c.bf16 %v210, %v209
      %v215 = vld [vmem:[%s1] sm:$0xf]
      %v216 = vld [vmem:[%s1 + $0x4] sm:$0xf]
      %v217 = vld [vmem:[%s1 + $0x8] sm:$0xf]
      %v218 = vld [vmem:[%s1 + $0xc] sm:$0xf]
      %v219 = vld [vmem:[%s1 + $0x10] sm:$0xf]
      %v220 = vld [vmem:[%s1 + $0x14] sm:$0xf]
      %v221 = vld [vmem:[%s1 + $0x18] sm:$0xf]
      %v222 = vld [vmem:[%s1 + $0x1c] sm:$0xf]
      %v223 = vld [vmem:[%s2] sm:$0xff]
      %v224 = vld [vmem:[%s2 + $0x8] sm:$0xff]
      %v225 = vld [vmem:[%s2 + $0x10] sm:$0xff]
      %v226 = vld [vmem:[%s2 + $0x18] sm:$0xff]
      %v227 = vld [vmem:[%s2 + $0x20] sm:$0xff]
      %v228 = vld [vmem:[%s2 + $0x28] sm:$0xff]
      %v229 = vld [vmem:[%s2 + $0x30] sm:$0xff]
      %v230 = vld [vmem:[%s2 + $0x38] sm:$0xff]
      %232 = vset.pattern.permute.xlu0 0
      %233 = vperm.xlu0 %232, %v223
      %v234 = vpop.permute.xlu0 %233
      %237 = vset.pattern.permute.xlu0 0
      %238 = vperm.xlu0 %237, %v224
      %v239 = vpop.permute.xlu0 %238
      %242 = vset.pattern.permute.xlu0 0
      %243 = vperm.xlu0 %242, %v225
      %v244 = vpop.permute.xlu0 %243
      %247 = vset.pattern.permute.xlu0 0
      %248 = vperm.xlu0 %247, %v226
      %v249 = vpop.permute.xlu0 %248
      %252 = vset.pattern.permute.xlu0 0
      %253 = vperm.xlu0 %252, %v227
      %v254 = vpop.permute.xlu0 %253
      %257 = vset.pattern.permute.xlu0 0
      %258 = vperm.xlu0 %257, %v228
      %v259 = vpop.permute.xlu0 %258
      %262 = vset.pattern.permute.xlu0 0
      %263 = vperm.xlu0 %262, %v229
      %v264 = vpop.permute.xlu0 %263
      %267 = vset.pattern.permute.xlu0 0
      %268 = vperm.xlu0 %267, %v230
      %v269 = vpop.permute.xlu0 %268
      %v279 = vunpack.c.l.b16 %v215
      %v280 = vunpack.c.l.b16 %v216
      %v281 = vunpack.c.l.b16 %v217
      %v282 = vunpack.c.l.b16 %v218
      %v283 = vunpack.c.l.b16 %v219
      %v284 = vunpack.c.l.b16 %v220
      %v285 = vunpack.c.l.b16 %v221
      %v286 = vunpack.c.l.b16 %v222
      %v287 = vpack.c.b16 %v280, %v279
      %v288 = vpack.c.b16 %v282, %v281
      %v289 = vpack.c.b16 %v284, %v283
      %v290 = vpack.c.b16 %v286, %v285
      %vm291 = vcmask 523264
      %v293 = vsel %vm291, %v287, 0
      %v296 = vsel %vm291, %v288, 0
      %v299 = vsel %vm291, %v289, 0
      %v302 = vsel %vm291, %v290, 0
      %304 = vmatprep.subr.bf16.mxu0 0
      %305 = vmatpush1.bf16.msra.mxu0 %v211
      %306 = vmatprep.subr.bf16.mxu0 0
      %307 = vmatpush1.bf16.msra.mxu0 %v212
      %308 = vmatprep.subr.bf16.mxu0 0
      %309 = vmatpush1.bf16.msra.mxu0 %v213
      %310 = vmatprep.subr.bf16.mxu0 0
      %311 = vmatpush1.bf16.msra.mxu0 %v214
      %312 = vmatprep.subr.bf16.mxu0 0
      %313 = vmatpush1.bf16.msra.mxu0 0
      %314 = vmatprep.subr.bf16.mxu0 0
      %315 = vmatpush1.bf16.msra.mxu0 0
      %316 = vmatprep.subr.bf16.mxu0 0
      %317 = vmatpush1.bf16.msra.mxu0 0
      %318 = vmatprep.subr.bf16.mxu0 0
      %319 = vmatpush1.bf16.msra.mxu0 0
      %320 = vmatprep.subr.bf16.mxu0 0
      %321 = vmatpush1.bf16.msra.mxu0 0
      %322 = vmatprep.subr.bf16.mxu0 0
      %323 = vmatpush1.bf16.msra.mxu0 0
      %324 = vmatprep.subr.bf16.mxu0 0
      %325 = vmatpush1.bf16.msra.mxu0 0
      %326 = vmatprep.subr.bf16.mxu0 0
      %327 = vmatpush1.bf16.msra.mxu0 0
      %328 = vmatprep.subr.bf16.mxu0 0
      %329 = vmatpush1.bf16.msra.mxu0 0
      %330 = vmatprep.subr.bf16.mxu0 0
      %331 = vmatpush1.bf16.msra.mxu0 0
      %332 = vmatprep.subr.bf16.mxu0 0
      %333 = vmatpush1.bf16.msra.mxu0 0
      %334 = vmatprep.subr.bf16.mxu0 0
      %335 = vmatpush1.bf16.msra.mxu0 0
      %336 = vmatprep.mubr.bf16.mxu0 0
      %337 = vmatmul.mubr.bf16.gmra.mrb[0].mxu0 %v293
      %v338 = vpop.f32.mrb[0].mxu0
      %v339 = vadd.f32 %v234, %v338
      %v340 = vpop.f32.mrb[0].mxu0
      %v341 = vpop.f32.mrb[0].mxu0
      %v342 = vadd.f32 %v239, %v341
      %v343 = vpop.f32.mrb[0].mxu0
      %344 = vmatprep.mubr.bf16.mxu0 0
      %345 = vmatmul.mubr.bf16.gmra.mrb[0].mxu0 %v296
      %v346 = vpop.f32.mrb[0].mxu0
      %v347 = vadd.f32 %v244, %v346
      %v348 = vpop.f32.mrb[0].mxu0
      %v349 = vpop.f32.mrb[0].mxu0
      %v350 = vadd.f32 %v249, %v349
      %v351 = vpop.f32.mrb[0].mxu0
      %352 = vmatprep.mubr.bf16.mxu0 0
      %353 = vmatmul.mubr.bf16.gmra.mrb[0].mxu0 %v299
      %v354 = vpop.f32.mrb[0].mxu0
      %v355 = vadd.f32 %v254, %v354
      %v356 = vpop.f32.mrb[0].mxu0
      %v357 = vpop.f32.mrb[0].mxu0
      %v358 = vadd.f32 %v259, %v357
      %v359 = vpop.f32.mrb[0].mxu0
      %360 = vmatprep.mubr.bf16.mxu0 0
      %361 = vmatmul.mubr.bf16.gmra.mrb[0].mxu0 %v302
      %v362 = vpop.f32.mrb[0].mxu0
      %v363 = vadd.f32 %v264, %v362
      %v364 = vpop.f32.mrb[0].mxu0
      %v365 = vpop.f32.mrb[0].mxu0
      %v366 = vadd.f32 %v269, %v365
      %v367 = vpop.f32.mrb[0].mxu0
      %368 = vdwg.mxu0
      %369 = vst [vmem:[%s201] sm:$0xff] %v339
      %370 = vst [vmem:[%s201 + $0x8] sm:$0xff] %v342
      %371 = vst [vmem:[%s201 + $0x10] sm:$0xff] %v347
      %372 = vst [vmem:[%s201 + $0x18] sm:$0xff] %v350
      %373 = vst [vmem:[%s201 + $0x20] sm:$0xff] %v355
      %374 = vst [vmem:[%s201 + $0x28] sm:$0xff] %v358
      %375 = vst [vmem:[%s201 + $0x30] sm:$0xff] %v363
      %376 = vst [vmem:[%s201 + $0x38] sm:$0xff] %v366
      %p377 = scmp.lt.s32.totalorder %s18, 1
      %s378 = scalar_select %p377, %s18, 1
      %p379 = scmp.lt.s32.totalorder %s19, 0
      %s380 = scalar_select %p379, %s19, 0
      %s381 = smul.addr %s378, 8
      %s382 = sadd.s32 %s380, %s381
      %s383 = smul.addr %s382, 8
      %s384 = scalar_lea.vmem %s3, %s383
      // Predicated region
      $region33: #{detector_backbone_with_fpn_forward.6} parent=31 // pred_check
        %p385 = pneg %p116
      $region34: #{detector_backbone_with_fpn_forward.6} parent=31 // pred_check_branch
        %387 = sbr.rel (%p385) target = $region36
      $region35: #{detector_backbone_with_fpn_forward.6} parent=31 // pred_region
        _
      $region36: #{detector_backbone_with_fpn_forward.6} parent=31 // pred_fallthru
        _
    $region32: #{detector_backbone_with_fpn_forward.6} parent=5 // pred_fallthru
      _
    %p388 = scmp.le.s32.totalorder 2, %s9
    // Predicated region
    $region37: #{detector_backbone_with_fpn_forward.6} parent=5 // pred_check
      %p389 = pneg %p388
    $region38: #{detector_backbone_with_fpn_forward.6} parent=5 // pred_check_branch
      %391 = sbr.rel (%p389) target = $region40
    $region39: #{detector_backbone_with_fpn_forward.6} parent=5 // pred_region
      %s392 = ssub.s32 %s9, 2
      // Predicated region
      $region41: #{detector_backbone_with_fpn_forward.6} parent=39 // pred_check
        %p393 = pneg %p122
      $region42: #{detector_backbone_with_fpn_forward.6} parent=39 // pred_check_branch
        %395 = sbr.rel (%p393) target = $region44
      $region43: #{detector_backbone_with_fpn_forward.6} parent=39 // pred_region
        %p396 = scmp.lt.s32.totalorder %s20, 1
        %s397 = scalar_select %p396, %s20, 1
        %p398 = scmp.lt.s32.totalorder %s21, 0
        %s399 = scalar_select %p398, %s21, 0
        %s400 = smul.addr %s397, 8
        %s401 = sadd.s32 %s399, %s400
        %s402 = smul.addr %s401, 8
        %s403 = scalar_lea.vmem %s3, %s402
      $region44: #{detector_backbone_with_fpn_forward.6} parent=39 // pred_fallthru
        _
    $region40: #{detector_backbone_with_fpn_forward.6} parent=5 // pred_fallthru
      _
  $region6: #{detector_backbone_with_fpn_forward.6} parent=0 // loop_footer
    %s13 = sadd.s32 1, %s9
  $region7: #{detector_backbone_with_fpn_forward.6} parent=0 // loop_footer_branch
    %8 = sbr.rel target = $region3
  $region8: #{detector_backbone_with_fpn_forward.6} parent=0 // loop_exit
    _

// kernel: detector_backbone_with_fpn_forward.8
$region0: #{detector_backbone_with_fpn_forward.8}
  #allocation0 [shape = 'u32[]', space=smem, size = 0x4, offset = 0x4, fixed_abs, tag = 'smem constant byte address 0x4 - core index']
  #allocation1 [shape = 'u32[144,128]{1,0:T(1,128)}', space=vmem, size = 0x12000, scoped, tag = 'internal scratch']
  %s0 = inlined_call_operand.vmem [shape: f32[2,32,128], index: 0, kind: input, shape index: {}]
  %s1 = inlined_call_operand.vmem [shape: bf16[64,32], index: 1, kind: input, shape index: {}]
  %s2 = inlined_call_operand.vmem [shape: f32[64,1], index: 2, kind: input, shape index: {}]
  %s3 = inlined_call_operand.vmem [shape: f32[2,64,128], index: 3, kind: input, shape index: {}]
  %s4 = inlined_call_operand.vmem [shape: f32[2,64,128], index: 4, kind: output, shape index: {}]
  %s5 = sld [smem:[#allocation0]]
  $region49: #{detector_backbone_with_fpn_forward.8} parent=0
    _
  %s7 = ssub.s32 1, %s5
  %s8 = scalar_select 0, %s7, %s5
  loop: start=0, step=1, limit=4
  $region2: #{detector_backbone_with_fpn_forward.8} parent=0 // loop_pre_header
    _
  $region3: #{detector_backbone_with_fpn_forward.8} parent=0 // loop_header
    %s10 = sphi 0, %s14
    %p11 = scmp.ge.s32.totalorder %s10, 4
    %s17 = sphi 0, %s29
    %s18 = sphi 0, %s25
    %s19 = sphi 0, %s17
    %s20 = sphi 0, %s18
    %s21 = sphi 0, %s19
    %s22 = sphi 0, %s20
    %s34 = sphi 0, %s36
    %s37 = sphi 0, %s34
    %s38 = sphi 0, %s37
    %s54 = sphi 0, %s38
    %s58 = sphi 0, %s58
    %s60 = sphi 0, %s58
    %s61 = sphi 0, %s60
    %s75 = sphi 0, %s61
    %s79 = sphi 0, %s79
    %s81 = sphi 0, %s79
    %s82 = sphi 0, %s81
    %s96 = sphi 0, %s82
    %s104 = sphi 0, %s106
    %s107 = sphi 0, %s104
    %s108 = sphi 0, %s107
    %s124 = sphi 0, %s108
    %s132 = sphi 0, %s134
    %s135 = sphi 0, %s132
    %s136 = sphi 0, %s135
    %s152 = sphi 0, %s136
  $region4: #{detector_backbone_with_fpn_forward.8} parent=0 // loop_header_branch
    %13 = sbr.rel (%p11) target = $region8
  $region5: #{detector_backbone_with_fpn_forward.8} parent=0 // loop_body
    %s15 = ssub.s32 %s10, 1
    %s16 = ssub.s32 %s10, 2
    %s23 = sadd.s32 1, %s18
    %p24 = scmp.ge.s32.totalorder %s23, 1
    %s25 = scalar_select %p24, 0, %s23
    %s26 = sadd.s32 1, %s17
    %s27 = scalar_select %p24, %s26, %s17
    %p28 = scmp.ge.s32.totalorder %s27, 2
    %s29 = scalar_select %p28, 0, %s27
    %s30 = ssub.s32 %s17, %s29
    %s31 = ssub.s32 %s18, %s25
    %s32 = sor.u32 %s30, %s31
    %p33 = scmp.eq.s32.totalorder %s32, 0
    %s35 = sadd.s32 %s34, 1
    %s36 = scalar_select %p33, %s34, %s35
    %p39 = pneg %p33
    %p40 = scmp.eq.s32.totalorder %s10, 1
    %p41 = por %p39, %p40
    %p42 = scmp.ne.s32.totalorder %s34, %s37
    %p43 = scmp.eq.s32.totalorder %s10, 0
    %p44 = por %p42, %p43
    %p45 = scmp.ne.s32.totalorder %s34, %s37
    %p46 = scmp.eq.s32.totalorder %s15, 1
    %p47 = por %p45, %p46
    %p48 = scmp.ne.s32.totalorder %s37, %s38
    %p49 = scmp.eq.s32.totalorder %s15, 0
    %p50 = por %p48, %p49
    %p51 = scmp.ne.s32.totalorder %s37, %s38
    %p52 = scmp.eq.s32.totalorder %s16, 1
    %p53 = por %p51, %p52
    %p55 = scmp.ne.s32.totalorder %s38, %s54
    %p56 = scmp.eq.s32.totalorder %s16, 0
    %p57 = por %p55, %p56
    %s59 = sadd.s32 %s58, 1
    %p62 = scmp.eq.s32.totalorder %s10, 1
    %p63 = scmp.ne.s32.totalorder %s58, %s60
    %p64 = scmp.eq.s32.totalorder %s10, 0
    %p65 = por %p63, %p64
    %p66 = scmp.ne.s32.totalorder %s58, %s60
    %p67 = scmp.eq.s32.totalorder %s15, 1
    %p68 = por %p66, %p67
    %p69 = scmp.ne.s32.totalorder %s60, %s61
    %p70 = scmp.eq.s32.totalorder %s15, 0
    %p71 = por %p69, %p70
    %p72 = scmp.ne.s32.totalorder %s60, %s61
    %p73 = scmp.eq.s32.totalorder %s16, 1
    %p74 = por %p72, %p73
    %p76 = scmp.ne.s32.totalorder %s61, %s75
    %p77 = scmp.eq.s32.totalorder %s16, 0
    %p78 = por %p76, %p77
    %s80 = sadd.s32 %s79, 1
    %p83 = scmp.eq.s32.totalorder %s10, 1
    %p84 = scmp.ne.s32.totalorder %s79, %s81
    %p85 = scmp.eq.s32.totalorder %s10, 0
    %p86 = por %p84, %p85
    %p87 = scmp.ne.s32.totalorder %s79, %s81
    %p88 = scmp.eq.s32.totalorder %s15, 1
    %p89 = por %p87, %p88
    %p90 = scmp.ne.s32.totalorder %s81, %s82
    %p91 = scmp.eq.s32.totalorder %s15, 0
    %p92 = por %p90, %p91
    %p93 = scmp.ne.s32.totalorder %s81, %s82
    %p94 = scmp.eq.s32.totalorder %s16, 1
    %p95 = por %p93, %p94
    %p97 = scmp.ne.s32.totalorder %s82, %s96
    %p98 = scmp.eq.s32.totalorder %s16, 0
    %p99 = por %p97, %p98
    %s100 = ssub.s32 %s17, %s29
    %s101 = ssub.s32 %s18, %s25
    %s102 = sor.u32 %s100, %s101
    %p103 = scmp.eq.s32.totalorder %s102, 0
    %s105 = sadd.s32 %s104, 1
    %s106 = scalar_select %p103, %s104, %s105
    %p109 = pneg %p103
    %p110 = scmp.eq.s32.totalorder %s10, 1
    %p111 = por %p109, %p110
    %p112 = scmp.ne.s32.totalorder %s104, %s107
    %p113 = scmp.eq.s32.totalorder %s10, 0
    %p114 = por %p112, %p113
    %p115 = scmp.ne.s32.totalorder %s104, %s107
    %p116 = scmp.eq.s32.totalorder %s15, 1
    %p117 = por %p115, %p116
    %p118 = scmp.ne.s32.totalorder %s107, %s108
    %p119 = scmp.eq.s32.totalorder %s15, 0
    %p120 = por %p118, %p119
    %p121 = scmp.ne.s32.totalorder %s107, %s108
    %p122 = scmp.eq.s32.totalorder %s16, 1
    %p123 = por %p121, %p122
    %p125 = scmp.ne.s32.totalorder %s108, %s124
    %p126 = scmp.eq.s32.totalorder %s16, 0
    %p127 = por %p125, %p126
    %s128 = ssub.s32 %s17, %s29
    %s129 = ssub.s32 %s18, %s25
    %s130 = sor.u32 %s128, %s129
    %p131 = scmp.eq.s32.totalorder %s130, 0
    %s133 = sadd.s32 %s132, 1
    %s134 = scalar_select %p131, %s132, %s133
    %p137 = pneg %p131
    %p138 = scmp.eq.s32.totalorder %s10, 1
    %p139 = por %p137, %p138
    %p140 = scmp.ne.s32.totalorder %s132, %s135
    %p141 = scmp.eq.s32.totalorder %s10, 0
    %p142 = por %p140, %p141
    %p143 = scmp.ne.s32.totalorder %s132, %s135
    %p144 = scmp.eq.s32.totalorder %s15, 1
    %p145 = por %p143, %p144
    %p146 = scmp.ne.s32.totalorder %s135, %s136
    %p147 = scmp.eq.s32.totalorder %s15, 0
    %p148 = por %p146, %p147
    %p149 = scmp.ne.s32.totalorder %s135, %s136
    %p150 = scmp.eq.s32.totalorder %s16, 1
    %p151 = por %p149, %p150
    %p153 = scmp.ne.s32.totalorder %s136, %s152
    %p154 = scmp.eq.s32.totalorder %s16, 0
    %p155 = por %p153, %p154
    %p156 = scmp.le.s32.totalorder 1, %s10
    %p157 = scmp.lt.s32.totalorder %s10, 3
    %p158 = pnand %p156, %p157
    %p159 = pneg %p158
    // Predicated region
    $region9: #{detector_backbone_with_fpn_forward.8} parent=5 // pred_check
      _
    $region10: #{detector_backbone_with_fpn_forward.8} parent=5 // pred_check_branch
      %161 = sbr.rel (%p158) target = $region12
    $region11: #{detector_backbone_with_fpn_forward.8} parent=5 // pred_region
      %s162 = ssub.s32 %s10, 1
      // Predicated region
      $region13: #{detector_backbone_with_fpn_forward.8} parent=11 // pred_check
        %p163 = pneg %p71
      $region14: #{detector_backbone_with_fpn_forward.8} parent=11 // pred_check_branch
        %165 = sbr.rel (%p163) target = $region16
      $region15: #{detector_backbone_with_fpn_forward.8} parent=11 // pred_region
        _
      $region16: #{detector_backbone_with_fpn_forward.8} parent=11 // pred_fallthru
        _
      // Predicated region
      $region17: #{detector_backbone_with_fpn_forward.8} parent=11 // pred_check
        %p166 = pneg %p92
      $region18: #{detector_backbone_with_fpn_forward.8} parent=11 // pred_check_branch
        %168 = sbr.rel (%p166) target = $region20
      $region19: #{detector_backbone_with_fpn_forward.8} parent=11 // pred_region
        _
      $region20: #{detector_backbone_with_fpn_forward.8} parent=11 // pred_fallthru
        _
    $region12: #{detector_backbone_with_fpn_forward.8} parent=5 // pred_fallthru
      _
    %p169 = scmp.lt.s32.totalorder %s10, 2
    // Predicated region
    $region21: #{detector_backbone_with_fpn_forward.8} parent=5 // pred_check
      %p170 = pneg %p169
    $region22: #{detector_backbone_with_fpn_forward.8} parent=5 // pred_check_branch
      %172 = sbr.rel (%p170) target = $region24
    $region23: #{detector_backbone_with_fpn_forward.8} parent=5 // pred_region
      // Predicated region
      $region25: #{detector_backbone_with_fpn_forward.8} parent=23 // pred_check
        %p173 = pneg %p44
      $region26: #{detector_backbone_with_fpn_forward.8} parent=23 // pred_check_branch
        %175 = sbr.rel (%p173) target = $region28
      $region27: #{detector_backbone_with_fpn_forward.8} parent=23 // pred_region
        %p176 = scmp.lt.s32.totalorder %s17, 1
        %s177 = scalar_select %p176, %s17, 1
        %p178 = scmp.lt.s32.totalorder %s18, 0
        %s179 = scalar_select %p178, %s18, 0
        %s180 = smul.addr %s177, 4
        %s181 = sadd.s32 %s179, %s180
        %s182 = smul.addr %s181, 8
        %s183 = scalar_lea.vmem %s0, %s182
      $region28: #{detector_backbone_with_fpn_forward.8} parent=23 // pred_fallthru
        _
      // Predicated region
      $region29: #{detector_backbone_with_fpn_forward.8} parent=23 // pred_check
        %p184 = pneg %p114
      $region30: #{detector_backbone_with_fpn_forward.8} parent=23 // pred_check_branch
        %186 = sbr.rel (%p184) target = $region32
      $region31: #{detector_backbone_with_fpn_forward.8} parent=23 // pred_region
        %p187 = scmp.lt.s32.totalorder %s17, 1
        %s188 = scalar_select %p187, %s17, 1
        %p189 = scmp.lt.s32.totalorder %s18, 0
        %s190 = scalar_select %p189, %s18, 0
        %s191 = smul.addr %s188, 8
        %s192 = sadd.s32 %s190, %s191
        %s193 = smul.addr %s192, 8
        %s194 = scalar_lea.vmem %s3, %s193
      $region32: #{detector_backbone_with_fpn_forward.8} parent=23 // pred_fallthru
        _
    $region24: #{detector_backbone_with_fpn_forward.8} parent=5 // pred_fallthru
      _
    %p195 = scmp.le.s32.totalorder 1, %s10
    %p196 = scmp.lt.s32.totalorder %s10, 3
    %p197 = pnand %p195, %p196
    %p198 = pneg %p197
    // Predicated region
    $region33: #{detector_backbone_with_fpn_forward.8} parent=5 // pred_check
      _
    $region34: #{detector_backbone_with_fpn_forward.8} parent=5 // pred_check_branch
      %200 = sbr.rel (%p197) target = $region36
    $region35: #{detector_backbone_with_fpn_forward.8} parent=5 // pred_region
      %s201 = ssub.s32 %s10, 1
      %p202 = scmp.lt.s32.totalorder %s19, 1
      %s203 = scalar_select %p202, %s19, 1
      %p204 = scmp.lt.s32.totalorder %s20, 0
      %s205 = scalar_select %p204, %s20, 0
      %s206 = smul.addr %s203, 4
      %s207 = sadd.s32 %s205, %s206
      %s208 = smul.addr %s207, 8
      %s209 = scalar_lea.vmem %s0, %s208
      %p210 = pneg %p50
      %p211 = pneg %p47
      %p212 = pneg %p71
      %p213 = pneg %p68
      %p214 = pneg %p92
      %p215 = pneg %p89
      %p216 = scmp.lt.s32.totalorder %s19, 1
      %s217 = scalar_select %p216, %s19, 1
      %p218 = scmp.lt.s32.totalorder %s20, 0
      %s219 = scalar_select %p218, %s20, 0
      %s220 = smul.addr %s217, 8
      %s221 = sadd.s32 %s219, %s220
      %s222 = smul.addr %s221, 8
      %s223 = scalar_lea.vmem %s3, %s222
      %p224 = pneg %p120
      %p225 = pneg %p117
      %p226 = pneg %p148
      %p227 = pneg %p145
      %p228 = scmp.lt.s32.totalorder %s19, 1
      %s229 = scalar_select %p228, %s19, 1
      %p230 = scmp.lt.s32.totalorder %s20, 0
      %s231 = scalar_select %p230, %s20, 0
      %s232 = smul.addr %s229, 8
      %s233 = sadd.s32 %s231, %s232
      %s234 = smul.addr %s233, 8
      %s235 = scalar_lea.vmem %s4, %s234
      %p236 = scmp.lt.s32.totalorder %s19, 1
      %s237 = scalar_select %p236, %s19, 1
      %p238 = scmp.lt.s32.totalorder %s20, 0
      %s239 = scalar_select %p238, %s20, 0
      %s240 = smul.addr %s237, 4
      %s241 = sadd.s32 %s239, %s240
      %s242 = smul.addr %s241, 8
      %s243 = scalar_lea.vmem %s0, %s242
      %p244 = scmp.lt.s32.totalorder %s19, 1
      %s245 = scalar_select %p244, %s19, 1
      %p246 = scmp.lt.s32.totalorder %s20, 0
      %s247 = scalar_select %p246, %s20, 0
      %s248 = smul.addr %s245, 8
      %s249 = sadd.s32 %s247, %s248
      %s250 = smul.addr %s249, 8
      %s251 = scalar_lea.vmem %s3, %s250
      %p252 = scmp.lt.s32.totalorder %s19, 1
      %s253 = scalar_select %p252, %s19, 1
      %p254 = scmp.lt.s32.totalorder %s20, 0
      %s255 = scalar_select %p254, %s20, 0
      %s256 = smul.addr %s253, 8
      %s257 = sadd.s32 %s255, %s256
      %s258 = smul.addr %s257, 8
      %s259 = scalar_lea.vmem %s4, %s258
      %v261 = vld [vmem:[%s243] sm:$0xff]
      %v262 = vld [vmem:[%s243 + $0x8] sm:$0xff]
      %v263 = vld [vmem:[%s243 + $0x10] sm:$0xff]
      %v264 = vld [vmem:[%s243 + $0x18] sm:$0xff]
      %v265 = vpack.c.bf16 %v262, %v261
      %v266 = vpack.c.bf16 %v264, %v263
      %v267 = vld [vmem:[%s1] sm:$0xf]
      %v268 = vld [vmem:[%s1 + $0x4] sm:$0xf]
      %v269 = vld [vmem:[%s1 + $0x8] sm:$0xf]
      %v270 = vld [vmem:[%s1 + $0xc] sm:$0xf]
      %v271 = vld [vmem:[%s1 + $0x10] sm:$0xf]
      %v272 = vld [vmem:[%s1 + $0x14] sm:$0xf]
      %v273 = vld [vmem:[%s1 + $0x18] sm:$0xf]
      %v274 = vld [vmem:[%s1 + $0x1c] sm:$0xf]
      %v275 = vld [vmem:[%s2] sm:$0xff]
      %v276 = vld [vmem:[%s2 + $0x8] sm:$0xff]
      %v277 = vld [vmem:[%s2 + $0x10] sm:$0xff]
      %v278 = vld [vmem:[%s2 + $0x18] sm:$0xff]
      %v279 = vld [vmem:[%s2 + $0x20] sm:$0xff]
      %v280 = vld [vmem:[%s2 + $0x28] sm:$0xff]
      %v281 = vld [vmem:[%s2 + $0x30] sm:$0xff]
      %v282 = vld [vmem:[%s2 + $0x38] sm:$0xff]
      %284 = vset.pattern.permute.xlu0 0
      %285 = vperm.xlu0 %284, %v275
      %v286 = vpop.permute.xlu0 %285
      %289 = vset.pattern.permute.xlu0 0
      %290 = vperm.xlu0 %289, %v276
      %v291 = vpop.permute.xlu0 %290
      %294 = vset.pattern.permute.xlu0 0
      %295 = vperm.xlu0 %294, %v277
      %v296 = vpop.permute.xlu0 %295
      %299 = vset.pattern.permute.xlu0 0
      %300 = vperm.xlu0 %299, %v278
      %v301 = vpop.permute.xlu0 %300
      %304 = vset.pattern.permute.xlu0 0
      %305 = vperm.xlu0 %304, %v279
      %v306 = vpop.permute.xlu0 %305
      %309 = vset.pattern.permute.xlu0 0
      %310 = vperm.xlu0 %309, %v280
      %v311 = vpop.permute.xlu0 %310
      %314 = vset.pattern.permute.xlu0 0
      %315 = vperm.xlu0 %314, %v281
      %v316 = vpop.permute.xlu0 %315
      %319 = vset.pattern.permute.xlu0 0
      %320 = vperm.xlu0 %319, %v282
      %v321 = vpop.permute.xlu0 %320
      %v331 = vunpack.c.l.b16 %v267
      %v332 = vunpack.c.l.b16 %v268
      %v333 = vunpack.c.l.b16 %v269
      %v334 = vunpack.c.l.b16 %v270
      %v335 = vunpack.c.l.b16 %v271
      %v336 = vunpack.c.l.b16 %v272
      %v337 = vunpack.c.l.b16 %v273
      %v338 = vunpack.c.l.b16 %v274
      %v339 = vpack.c.b16 %v332, %v331
      %v340 = vpack.c.b16 %v334, %v333
      %v341 = vpack.c.b16 %v336, %v335
      %v342 = vpack.c.b16 %v338, %v337
      %vm343 = vcmask 261120
      %v345 = vsel %vm343, %v339, 0
      %v348 = vsel %vm343, %v340, 0
      %v351 = vsel %vm343, %v341, 0
      %v354 = vsel %vm343, %v342, 0
      %356 = vmatprep.subr.bf16.mxu0 0
      %357 = vmatpush1.bf16.msra.mxu0 %v265
      %358 = vmatprep.subr.bf16.mxu0 0
      %359 = vmatpush1.bf16.msra.mxu0 %v266
      %360 = vmatprep.subr.bf16.mxu0 0
      %361 = vmatpush1.bf16.msra.mxu0 0
      %362 = vmatprep.subr.bf16.mxu0 0
      %363 = vmatpush1.bf16.msra.mxu0 0
      %364 = vmatprep.subr.bf16.mxu0 0
      %365 = vmatpush1.bf16.msra.mxu0 0
      %366 = vmatprep.subr.bf16.mxu0 0
      %367 = vmatpush1.bf16.msra.mxu0 0
      %368 = vmatprep.subr.bf16.mxu0 0
      %369 = vmatpush1.bf16.msra.mxu0 0
      %370 = vmatprep.subr.bf16.mxu0 0
      %371 = vmatpush1.bf16.msra.mxu0 0
      %372 = vmatprep.subr.bf16.mxu0 0
      %373 = vmatpush1.bf16.msra.mxu0 0
      %374 = vmatprep.subr.bf16.mxu0 0
      %375 = vmatpush1.bf16.msra.mxu0 0
      %376 = vmatprep.subr.bf16.mxu0 0
      %377 = vmatpush1.bf16.msra.mxu0 0
      %378 = vmatprep.subr.bf16.mxu0 0
      %379 = vmatpush1.bf16.msra.mxu0 0
      %380 = vmatprep.subr.bf16.mxu0 0
      %381 = vmatpush1.bf16.msra.mxu0 0
      %382 = vmatprep.subr.bf16.mxu0 0
      %383 = vmatpush1.bf16.msra.mxu0 0
      %384 = vmatprep.subr.bf16.mxu0 0
      %385 = vmatpush1.bf16.msra.mxu0 0
      %386 = vmatprep.subr.bf16.mxu0 0
      %387 = vmatpush1.bf16.msra.mxu0 0
      %388 = vmatprep.mubr.bf16.mxu0 0
      %389 = vmatmul.mubr.bf16.gmra.mrb[0].mxu0 %v345
      %v390 = vpop.f32.mrb[0].mxu0
      %v391 = vadd.f32 %v286, %v390
      %v392 = vpop.f32.mrb[0].mxu0
      %v393 = vpop.f32.mrb[0].mxu0
      %v394 = vadd.f32 %v291, %v393
      %v395 = vpop.f32.mrb[0].mxu0
      %396 = vmatprep.mubr.bf16.mxu0 0
      %397 = vmatmul.mubr.bf16.gmra.mrb[0].mxu0 %v348
      %v398 = vpop.f32.mrb[0].mxu0
      %v399 = vadd.f32 %v296, %v398
      %v400 = vpop.f32.mrb[0].mxu0
      %v401 = vpop.f32.mrb[0].mxu0
      %v402 = vadd.f32 %v301, %v401
      %v403 = vpop.f32.mrb[0].mxu0
      %404 = vmatprep.mubr.bf16.mxu0 0
      %405 = vmatmul.mubr.bf16.gmra.mrb[0].mxu0 %v351
      %v406 = vpop.f32.mrb[0].mxu0
      %v407 = vadd.f32 %v306, %v406
      %v408 = vpop.f32.mrb[0].mxu0
      %v409 = vpop.f32.mrb[0].mxu0
      %v410 = vadd.f32 %v311, %v409
      %v411 = vpop.f32.mrb[0].mxu0
      %412 = vmatprep.mubr.bf16.mxu0 0
      %413 = vmatmul.mubr.bf16.gmra.mrb[0].mxu0 %v354
      %v414 = vpop.f32.mrb[0].mxu0
      %v415 = vadd.f32 %v316, %v414
      %v416 = vpop.f32.mrb[0].mxu0
      %v417 = vpop.f32.mrb[0].mxu0
      %v418 = vadd.f32 %v321, %v417
      %v419 = vpop.f32.mrb[0].mxu0
      %420 = vdwg.mxu0
      %v421 = vld [vmem:[%s251] sm:$0xff]
      %v422 = vld [vmem:[%s251 + $0x8] sm:$0xff]
      %v423 = vld [vmem:[%s251 + $0x10] sm:$0xff]
      %v424 = vld [vmem:[%s251 + $0x18] sm:$0xff]
      %v425 = vld [vmem:[%s251 + $0x20] sm:$0xff]
      %v426 = vld [vmem:[%s251 + $0x28] sm:$0xff]
      %v427 = vld [vmem:[%s251 + $0x30] sm:$0xff]
      %v428 = vld [vmem:[%s251 + $0x38] sm:$0xff]
      %v429 = vadd.f32 %v391, %v421
      %v430 = vadd.f32 %v394, %v422
      %v431 = vadd.f32 %v399, %v423
      %v432 = vadd.f32 %v402, %v424
      %v433 = vadd.f32 %v407, %v425
      %v434 = vadd.f32 %v410, %v426
      %v435 = vadd.f32 %v415, %v427
      %v436 = vadd.f32 %v418, %v428
      %437 = vst [vmem:[%s259] sm:$0xff] %v429
      %438 = vst [vmem:[%s259 + $0x8] sm:$0xff] %v430
      %439 = vst [vmem:[%s259 + $0x10] sm:$0xff] %v431
      %440 = vst [vmem:[%s259 + $0x18] sm:$0xff] %v432
      %441 = vst [vmem:[%s259 + $0x20] sm:$0xff] %v433
      %442 = vst [vmem:[%s259 + $0x28] sm:$0xff] %v434
      %443 = vst [vmem:[%s259 + $0x30] sm:$0xff] %v435
      %444 = vst [vmem:[%s259 + $0x38] sm:$0xff] %v436
      %p445 = scmp.lt.s32.totalorder %s19, 1
      %s446 = scalar_select %p445, %s19, 1
      %p447 = scmp.lt.s32.totalorder %s20, 0
      %s448 = scalar_select %p447, %s20, 0
      %s449 = smul.addr %s446, 8
      %s450 = sadd.s32 %s448, %s449
      %s451 = smul.addr %s450, 8
      %s452 = scalar_lea.vmem %s4, %s451
      // Predicated region
      $region37: #{detector_backbone_with_fpn_forward.8} parent=35 // pred_check
        %p453 = pneg %p145
      $region38: #{detector_backbone_with_fpn_forward.8} parent=35 // pred_check_branch
        %455 = sbr.rel (%p453) target = $region40
      $region39: #{detector_backbone_with_fpn_forward.8} parent=35 // pred_region
        _
      $region40: #{detector_backbone_with_fpn_forward.8} parent=35 // pred_fallthru
        _
    $region36: #{detector_backbone_with_fpn_forward.8} parent=5 // pred_fallthru
      _
    %p456 = scmp.le.s32.totalorder 2, %s10
    // Predicated region
    $region41: #{detector_backbone_with_fpn_forward.8} parent=5 // pred_check
      %p457 = pneg %p456
    $region42: #{detector_backbone_with_fpn_forward.8} parent=5 // pred_check_branch
      %459 = sbr.rel (%p457) target = $region44
    $region43: #{detector_backbone_with_fpn_forward.8} parent=5 // pred_region
      %s460 = ssub.s32 %s10, 2
      // Predicated region
      $region45: #{detector_backbone_with_fpn_forward.8} parent=43 // pred_check
        %p461 = pneg %p151
      $region46: #{detector_backbone_with_fpn_forward.8} parent=43 // pred_check_branch
        %463 = sbr.rel (%p461) target = $region48
      $region47: #{detector_backbone_with_fpn_forward.8} parent=43 // pred_region
        %p464 = scmp.lt.s32.totalorder %s21, 1
        %s465 = scalar_select %p464, %s21, 1
        %p466 = scmp.lt.s32.totalorder %s22, 0
        %s467 = scalar_select %p466, %s22, 0
        %s468 = smul.addr %s465, 8
        %s469 = sadd.s32 %s467, %s468
        %s470 = smul.addr %s469, 8
        %s471 = scalar_lea.vmem %s4, %s470
      $region48: #{detector_backbone_with_fpn_forward.8} parent=43 // pred_fallthru
        _
    $region44: #{detector_backbone_with_fpn_forward.8} parent=5 // pred_fallthru
      _
  $region6: #{detector_backbone_with_fpn_forward.8} parent=0 // loop_footer
    %s14 = sadd.s32 1, %s10
  $region7: #{detector_backbone_with_fpn_forward.8} parent=0 // loop_footer_branch
    %9 = sbr.rel target = $region3
  $region8: #{detector_backbone_with_fpn_forward.8} parent=0 // loop_exit
    _

// kernel: detector_backbone_with_fpn_forward.10
$region0: #{detector_backbone_with_fpn_forward.10}
  #allocation0 [shape = 'u32[]', space=smem, size = 0x4, offset = 0x4, fixed_abs, tag = 'smem constant byte address 0x4 - core index']
  #allocation1 [shape = 'u32[144,128]{1,0:T(1,128)}', space=vmem, size = 0x12000, scoped, tag = 'internal scratch']
  %s0 = inlined_call_operand.vmem [shape: f32[2,16,128], index: 0, kind: input, shape index: {}]
  %s1 = inlined_call_operand.vmem [shape: bf16[64,16], index: 1, kind: input, shape index: {}]
  %s2 = inlined_call_operand.vmem [shape: f32[64,1], index: 2, kind: input, shape index: {}]
  %s3 = inlined_call_operand.vmem [shape: f32[2,64,128], index: 3, kind: input, shape index: {}]
  %s4 = inlined_call_operand.vmem [shape: f32[2,64,128], index: 4, kind: output, shape index: {}]
  %s5 = sld [smem:[#allocation0]]
  $region49: #{detector_backbone_with_fpn_forward.10} parent=0
    _
  %s7 = ssub.s32 1, %s5
  %s8 = scalar_select 0, %s7, %s5
  loop: start=0, step=1, limit=4
  $region2: #{detector_backbone_with_fpn_forward.10} parent=0 // loop_pre_header
    _
  $region3: #{detector_backbone_with_fpn_forward.10} parent=0 // loop_header
    %s10 = sphi 0, %s14
    %p11 = scmp.ge.s32.totalorder %s10, 4
    %s17 = sphi 0, %s29
    %s18 = sphi 0, %s25
    %s19 = sphi 0, %s17
    %s20 = sphi 0, %s18
    %s21 = sphi 0, %s19
    %s22 = sphi 0, %s20
    %s34 = sphi 0, %s36
    %s37 = sphi 0, %s34
    %s38 = sphi 0, %s37
    %s54 = sphi 0, %s38
    %s58 = sphi 0, %s58
    %s60 = sphi 0, %s58
    %s61 = sphi 0, %s60
    %s75 = sphi 0, %s61
    %s79 = sphi 0, %s79
    %s81 = sphi 0, %s79
    %s82 = sphi 0, %s81
    %s96 = sphi 0, %s82
    %s104 = sphi 0, %s106
    %s107 = sphi 0, %s104
    %s108 = sphi 0, %s107
    %s124 = sphi 0, %s108
    %s132 = sphi 0, %s134
    %s135 = sphi 0, %s132
    %s136 = sphi 0, %s135
    %s152 = sphi 0, %s136
  $region4: #{detector_backbone_with_fpn_forward.10} parent=0 // loop_header_branch
    %13 = sbr.rel (%p11) target = $region8
  $region5: #{detector_backbone_with_fpn_forward.10} parent=0 // loop_body
    %s15 = ssub.s32 %s10, 1
    %s16 = ssub.s32 %s10, 2
    %s23 = sadd.s32 1, %s18
    %p24 = scmp.ge.s32.totalorder %s23, 1
    %s25 = scalar_select %p24, 0, %s23
    %s26 = sadd.s32 1, %s17
    %s27 = scalar_select %p24, %s26, %s17
    %p28 = scmp.ge.s32.totalorder %s27, 2
    %s29 = scalar_select %p28, 0, %s27
    %s30 = ssub.s32 %s17, %s29
    %s31 = ssub.s32 %s18, %s25
    %s32 = sor.u32 %s30, %s31
    %p33 = scmp.eq.s32.totalorder %s32, 0
    %s35 = sadd.s32 %s34, 1
    %s36 = scalar_select %p33, %s34, %s35
    %p39 = pneg %p33
    %p40 = scmp.eq.s32.totalorder %s10, 1
    %p41 = por %p39, %p40
    %p42 = scmp.ne.s32.totalorder %s34, %s37
    %p43 = scmp.eq.s32.totalorder %s10, 0
    %p44 = por %p42, %p43
    %p45 = scmp.ne.s32.totalorder %s34, %s37
    %p46 = scmp.eq.s32.totalorder %s15, 1
    %p47 = por %p45, %p46
    %p48 = scmp.ne.s32.totalorder %s37, %s38
    %p49 = scmp.eq.s32.totalorder %s15, 0
    %p50 = por %p48, %p49
    %p51 = scmp.ne.s32.totalorder %s37, %s38
    %p52 = scmp.eq.s32.totalorder %s16, 1
    %p53 = por %p51, %p52
    %p55 = scmp.ne.s32.totalorder %s38, %s54
    %p56 = scmp.eq.s32.totalorder %s16, 0
    %p57 = por %p55, %p56
    %s59 = sadd.s32 %s58, 1
    %p62 = scmp.eq.s32.totalorder %s10, 1
    %p63 = scmp.ne.s32.totalorder %s58, %s60
    %p64 = scmp.eq.s32.totalorder %s10, 0
    %p65 = por %p63, %p64
    %p66 = scmp.ne.s32.totalorder %s58, %s60
    %p67 = scmp.eq.s32.totalorder %s15, 1
    %p68 = por %p66, %p67
    %p69 = scmp.ne.s32.totalorder %s60, %s61
    %p70 = scmp.eq.s32.totalorder %s15, 0
    %p71 = por %p69, %p70
    %p72 = scmp.ne.s32.totalorder %s60, %s61
    %p73 = scmp.eq.s32.totalorder %s16, 1
    %p74 = por %p72, %p73
    %p76 = scmp.ne.s32.totalorder %s61, %s75
    %p77 = scmp.eq.s32.totalorder %s16, 0
    %p78 = por %p76, %p77
    %s80 = sadd.s32 %s79, 1
    %p83 = scmp.eq.s32.totalorder %s10, 1
    %p84 = scmp.ne.s32.totalorder %s79, %s81
    %p85 = scmp.eq.s32.totalorder %s10, 0
    %p86 = por %p84, %p85
    %p87 = scmp.ne.s32.totalorder %s79, %s81
    %p88 = scmp.eq.s32.totalorder %s15, 1
    %p89 = por %p87, %p88
    %p90 = scmp.ne.s32.totalorder %s81, %s82
    %p91 = scmp.eq.s32.totalorder %s15, 0
    %p92 = por %p90, %p91
    %p93 = scmp.ne.s32.totalorder %s81, %s82
    %p94 = scmp.eq.s32.totalorder %s16, 1
    %p95 = por %p93, %p94
    %p97 = scmp.ne.s32.totalorder %s82, %s96
    %p98 = scmp.eq.s32.totalorder %s16, 0
    %p99 = por %p97, %p98
    %s100 = ssub.s32 %s17, %s29
    %s101 = ssub.s32 %s18, %s25
    %s102 = sor.u32 %s100, %s101
    %p103 = scmp.eq.s32.totalorder %s102, 0
    %s105 = sadd.s32 %s104, 1
    %s106 = scalar_select %p103, %s104, %s105
    %p109 = pneg %p103
    %p110 = scmp.eq.s32.totalorder %s10, 1
    %p111 = por %p109, %p110
    %p112 = scmp.ne.s32.totalorder %s104, %s107
    %p113 = scmp.eq.s32.totalorder %s10, 0
    %p114 = por %p112, %p113
    %p115 = scmp.ne.s32.totalorder %s104, %s107
    %p116 = scmp.eq.s32.totalorder %s15, 1
    %p117 = por %p115, %p116
    %p118 = scmp.ne.s32.totalorder %s107, %s108
    %p119 = scmp.eq.s32.totalorder %s15, 0
    %p120 = por %p118, %p119
    %p121 = scmp.ne.s32.totalorder %s107, %s108
    %p122 = scmp.eq.s32.totalorder %s16, 1
    %p123 = por %p121, %p122
    %p125 = scmp.ne.s32.totalorder %s108, %s124
    %p126 = scmp.eq.s32.totalorder %s16, 0
    %p127 = por %p125, %p126
    %s128 = ssub.s32 %s17, %s29
    %s129 = ssub.s32 %s18, %s25
    %s130 = sor.u32 %s128, %s129
    %p131 = scmp.eq.s32.totalorder %s130, 0
    %s133 = sadd.s32 %s132, 1
    %s134 = scalar_select %p131, %s132, %s133
    %p137 = pneg %p131
    %p138 = scmp.eq.s32.totalorder %s10, 1
    %p139 = por %p137, %p138
    %p140 = scmp.ne.s32.totalorder %s132, %s135
    %p141 = scmp.eq.s32.totalorder %s10, 0
    %p142 = por %p140, %p141
    %p143 = scmp.ne.s32.totalorder %s132, %s135
    %p144 = scmp.eq.s32.totalorder %s15, 1
    %p145 = por %p143, %p144
    %p146 = scmp.ne.s32.totalorder %s135, %s136
    %p147 = scmp.eq.s32.totalorder %s15, 0
    %p148 = por %p146, %p147
    %p149 = scmp.ne.s32.totalorder %s135, %s136
    %p150 = scmp.eq.s32.totalorder %s16, 1
    %p151 = por %p149, %p150
    %p153 = scmp.ne.s32.totalorder %s136, %s152
    %p154 = scmp.eq.s32.totalorder %s16, 0
    %p155 = por %p153, %p154
    %p156 = scmp.le.s32.totalorder 1, %s10
    %p157 = scmp.lt.s32.totalorder %s10, 3
    %p158 = pnand %p156, %p157
    %p159 = pneg %p158
    // Predicated region
    $region9: #{detector_backbone_with_fpn_forward.10} parent=5 // pred_check
      _
    $region10: #{detector_backbone_with_fpn_forward.10} parent=5 // pred_check_branch
      %161 = sbr.rel (%p158) target = $region12
    $region11: #{detector_backbone_with_fpn_forward.10} parent=5 // pred_region
      %s162 = ssub.s32 %s10, 1
      // Predicated region
      $region13: #{detector_backbone_with_fpn_forward.10} parent=11 // pred_check
        %p163 = pneg %p71
      $region14: #{detector_backbone_with_fpn_forward.10} parent=11 // pred_check_branch
        %165 = sbr.rel (%p163) target = $region16
      $region15: #{detector_backbone_with_fpn_forward.10} parent=11 // pred_region
        _
      $region16: #{detector_backbone_with_fpn_forward.10} parent=11 // pred_fallthru
        _
      // Predicated region
      $region17: #{detector_backbone_with_fpn_forward.10} parent=11 // pred_check
        %p166 = pneg %p92
      $region18: #{detector_backbone_with_fpn_forward.10} parent=11 // pred_check_branch
        %168 = sbr.rel (%p166) target = $region20
      $region19: #{detector_backbone_with_fpn_forward.10} parent=11 // pred_region
        _
      $region20: #{detector_backbone_with_fpn_forward.10} parent=11 // pred_fallthru
        _
    $region12: #{detector_backbone_with_fpn_forward.10} parent=5 // pred_fallthru
      _
    %p169 = scmp.lt.s32.totalorder %s10, 2
    // Predicated region
    $region21: #{detector_backbone_with_fpn_forward.10} parent=5 // pred_check
      %p170 = pneg %p169
    $region22: #{detector_backbone_with_fpn_forward.10} parent=5 // pred_check_branch
      %172 = sbr.rel (%p170) target = $region24
    $region23: #{detector_backbone_with_fpn_forward.10} parent=5 // pred_region
      // Predicated region
      $region25: #{detector_backbone_with_fpn_forward.10} parent=23 // pred_check
        %p173 = pneg %p44
      $region26: #{detector_backbone_with_fpn_forward.10} parent=23 // pred_check_branch
        %175 = sbr.rel (%p173) target = $region28
      $region27: #{detector_backbone_with_fpn_forward.10} parent=23 // pred_region
        %p176 = scmp.lt.s32.totalorder %s17, 1
        %s177 = scalar_select %p176, %s17, 1
        %p178 = scmp.lt.s32.totalorder %s18, 0
        %s179 = scalar_select %p178, %s18, 0
        %s180 = smul.addr %s177, 2
        %s181 = sadd.s32 %s179, %s180
        %s182 = smul.addr %s181, 8
        %s183 = scalar_lea.vmem %s0, %s182
      $region28: #{detector_backbone_with_fpn_forward.10} parent=23 // pred_fallthru
        _
      // Predicated region
      $region29: #{detector_backbone_with_fpn_forward.10} parent=23 // pred_check
        %p184 = pneg %p114
      $region30: #{detector_backbone_with_fpn_forward.10} parent=23 // pred_check_branch
        %186 = sbr.rel (%p184) target = $region32
      $region31: #{detector_backbone_with_fpn_forward.10} parent=23 // pred_region
        %p187 = scmp.lt.s32.totalorder %s17, 1
        %s188 = scalar_select %p187, %s17, 1
        %p189 = scmp.lt.s32.totalorder %s18, 0
        %s190 = scalar_select %p189, %s18, 0
        %s191 = smul.addr %s188, 8
        %s192 = sadd.s32 %s190, %s191
        %s193 = smul.addr %s192, 8
        %s194 = scalar_lea.vmem %s3, %s193
      $region32: #{detector_backbone_with_fpn_forward.10} parent=23 // pred_fallthru
        _
    $region24: #{detector_backbone_with_fpn_forward.10} parent=5 // pred_fallthru
      _
    %p195 = scmp.le.s32.totalorder 1, %s10
    %p196 = scmp.lt.s32.totalorder %s10, 3
    %p197 = pnand %p195, %p196
    %p198 = pneg %p197
    // Predicated region
    $region33: #{detector_backbone_with_fpn_forward.10} parent=5 // pred_check
      _
    $region34: #{detector_backbone_with_fpn_forward.10} parent=5 // pred_check_branch
      %200 = sbr.rel (%p197) target = $region36
    $region35: #{detector_backbone_with_fpn_forward.10} parent=5 // pred_region
      %s201 = ssub.s32 %s10, 1
      %p202 = scmp.lt.s32.totalorder %s19, 1
      %s203 = scalar_select %p202, %s19, 1
      %p204 = scmp.lt.s32.totalorder %s20, 0
      %s205 = scalar_select %p204, %s20, 0
      %s206 = smul.addr %s203, 2
      %s207 = sadd.s32 %s205, %s206
      %s208 = smul.addr %s207, 8
      %s209 = scalar_lea.vmem %s0, %s208
      %p210 = pneg %p50
      %p211 = pneg %p47
      %p212 = pneg %p71
      %p213 = pneg %p68
      %p214 = pneg %p92
      %p215 = pneg %p89
      %p216 = scmp.lt.s32.totalorder %s19, 1
      %s217 = scalar_select %p216, %s19, 1
      %p218 = scmp.lt.s32.totalorder %s20, 0
      %s219 = scalar_select %p218, %s20, 0
      %s220 = smul.addr %s217, 8
      %s221 = sadd.s32 %s219, %s220
      %s222 = smul.addr %s221, 8
      %s223 = scalar_lea.vmem %s3, %s222
      %p224 = pneg %p120
      %p225 = pneg %p117
      %p226 = pneg %p148
      %p227 = pneg %p145
      %p228 = scmp.lt.s32.totalorder %s19, 1
      %s229 = scalar_select %p228, %s19, 1
      %p230 = scmp.lt.s32.totalorder %s20, 0
      %s231 = scalar_select %p230, %s20, 0
      %s232 = smul.addr %s229, 8
      %s233 = sadd.s32 %s231, %s232
      %s234 = smul.addr %s233, 8
      %s235 = scalar_lea.vmem %s4, %s234
      %p236 = scmp.lt.s32.totalorder %s19, 1
      %s237 = scalar_select %p236, %s19, 1
      %p238 = scmp.lt.s32.totalorder %s20, 0
      %s239 = scalar_select %p238, %s20, 0
      %s240 = smul.addr %s237, 2
      %s241 = sadd.s32 %s239, %s240
      %s242 = smul.addr %s241, 8
      %s243 = scalar_lea.vmem %s0, %s242
      %p244 = scmp.lt.s32.totalorder %s19, 1
      %s245 = scalar_select %p244, %s19, 1
      %p246 = scmp.lt.s32.totalorder %s20, 0
      %s247 = scalar_select %p246, %s20, 0
      %s248 = smul.addr %s245, 8
      %s249 = sadd.s32 %s247, %s248
      %s250 = smul.addr %s249, 8
      %s251 = scalar_lea.vmem %s3, %s250
      %p252 = scmp.lt.s32.totalorder %s19, 1
      %s253 = scalar_select %p252, %s19, 1
      %p254 = scmp.lt.s32.totalorder %s20, 0
      %s255 = scalar_select %p254, %s20, 0
      %s256 = smul.addr %s253, 8
      %s257 = sadd.s32 %s255, %s256
      %s258 = smul.addr %s257, 8
      %s259 = scalar_lea.vmem %s4, %s258
      %v261 = vld [vmem:[%s243] sm:$0xff]
      %v262 = vld [vmem:[%s243 + $0x8] sm:$0xff]
      %v263 = vpack.c.bf16 %v262, %v261
      %v264 = vld [vmem:[%s1] sm:$0xf]
      %v265 = vld [vmem:[%s1 + $0x4] sm:$0xf]
      %v266 = vld [vmem:[%s1 + $0x8] sm:$0xf]
      %v267 = vld [vmem:[%s1 + $0xc] sm:$0xf]
      %v268 = vld [vmem:[%s1 + $0x10] sm:$0xf]
      %v269 = vld [vmem:[%s1 + $0x14] sm:$0xf]
      %v270 = vld [vmem:[%s1 + $0x18] sm:$0xf]
      %v271 = vld [vmem:[%s1 + $0x1c] sm:$0xf]
      %v272 = vld [vmem:[%s2] sm:$0xff]
      %v273 = vld [vmem:[%s2 + $0x8] sm:$0xff]
      %v274 = vld [vmem:[%s2 + $0x10] sm:$0xff]
      %v275 = vld [vmem:[%s2 + $0x18] sm:$0xff]
      %v276 = vld [vmem:[%s2 + $0x20] sm:$0xff]
      %v277 = vld [vmem:[%s2 + $0x28] sm:$0xff]
      %v278 = vld [vmem:[%s2 + $0x30] sm:$0xff]
      %v279 = vld [vmem:[%s2 + $0x38] sm:$0xff]
      %281 = vset.pattern.permute.xlu0 0
      %282 = vperm.xlu0 %281, %v272
      %v283 = vpop.permute.xlu0 %282
      %286 = vset.pattern.permute.xlu0 0
      %287 = vperm.xlu0 %286, %v273
      %v288 = vpop.permute.xlu0 %287
      %291 = vset.pattern.permute.xlu0 0
      %292 = vperm.xlu0 %291, %v274
      %v293 = vpop.permute.xlu0 %292
      %296 = vset.pattern.permute.xlu0 0
      %297 = vperm.xlu0 %296, %v275
      %v298 = vpop.permute.xlu0 %297
      %301 = vset.pattern.permute.xlu0 0
      %302 = vperm.xlu0 %301, %v276
      %v303 = vpop.permute.xlu0 %302
      %306 = vset.pattern.permute.xlu0 0
      %307 = vperm.xlu0 %306, %v277
      %v308 = vpop.permute.xlu0 %307
      %311 = vset.pattern.permute.xlu0 0
      %312 = vperm.xlu0 %311, %v278
      %v313 = vpop.permute.xlu0 %312
      %316 = vset.pattern.permute.xlu0 0
      %317 = vperm.xlu0 %316, %v279
      %v318 = vpop.permute.xlu0 %317
      %v328 = vunpack.c.l.b16 %v264
      %v329 = vunpack.c.l.b16 %v265
      %v330 = vunpack.c.l.b16 %v266
      %v331 = vunpack.c.l.b16 %v267
      %v332 = vunpack.c.l.b16 %v268
      %v333 = vunpack.c.l.b16 %v269
      %v334 = vunpack.c.l.b16 %v270
      %v335 = vunpack.c.l.b16 %v271
      %v336 = vpack.c.b16 %v329, %v328
      %v337 = vpack.c.b16 %v331, %v330
      %v338 = vpack.c.b16 %v333, %v332
      %v339 = vpack.c.b16 %v335, %v334
      %vm340 = vcmask 130048
      %v342 = vsel %vm340, %v336, 0
      %v345 = vsel %vm340, %v337, 0
      %v348 = vsel %vm340, %v338, 0
      %v351 = vsel %vm340, %v339, 0
      %353 = vmatprep.subr.bf16.mxu0 0
      %354 = vmatpush1.bf16.msra.mxu0 %v263
      %355 = vmatprep.subr.bf16.mxu0 0
      %356 = vmatpush1.bf16.msra.mxu0 0
      %357 = vmatprep.subr.bf16.mxu0 0
      %358 = vmatpush1.bf16.msra.mxu0 0
      %359 = vmatprep.subr.bf16.mxu0 0
      %360 = vmatpush1.bf16.msra.mxu0 0
      %361 = vmatprep.subr.bf16.mxu0 0
      %362 = vmatpush1.bf16.msra.mxu0 0
      %363 = vmatprep.subr.bf16.mxu0 0
      %364 = vmatpush1.bf16.msra.mxu0 0
      %365 = vmatprep.subr.bf16.mxu0 0
      %366 = vmatpush1.bf16.msra.mxu0 0
      %367 = vmatprep.subr.bf16.mxu0 0
      %368 = vmatpush1.bf16.msra.mxu0 0
      %369 = vmatprep.subr.bf16.mxu0 0
      %370 = vmatpush1.bf16.msra.mxu0 0
      %371 = vmatprep.subr.bf16.mxu0 0
      %372 = vmatpush1.bf16.msra.mxu0 0
      %373 = vmatprep.subr.bf16.mxu0 0
      %374 = vmatpush1.bf16.msra.mxu0 0
      %375 = vmatprep.subr.bf16.mxu0 0
      %376 = vmatpush1.bf16.msra.mxu0 0
      %377 = vmatprep.subr.bf16.mxu0 0
      %378 = vmatpush1.bf16.msra.mxu0 0
      %379 = vmatprep.subr.bf16.mxu0 0
      %380 = vmatpush1.bf16.msra.mxu0 0
      %381 = vmatprep.subr.bf16.mxu0 0
      %382 = vmatpush1.bf16.msra.mxu0 0
      %383 = vmatprep.subr.bf16.mxu0 0
      %384 = vmatpush1.bf16.msra.mxu0 0
      %385 = vmatprep.mubr.bf16.mxu0 0
      %386 = vmatmul.mubr.bf16.gmra.mrb[0].mxu0 %v342
      %v387 = vpop.f32.mrb[0].mxu0
      %v388 = vadd.f32 %v283, %v387
      %v389 = vpop.f32.mrb[0].mxu0
      %v390 = vpop.f32.mrb[0].mxu0
      %v391 = vadd.f32 %v288, %v390
      %v392 = vpop.f32.mrb[0].mxu0
      %393 = vmatprep.mubr.bf16.mxu0 0
      %394 = vmatmul.mubr.bf16.gmra.mrb[0].mxu0 %v345
      %v395 = vpop.f32.mrb[0].mxu0
      %v396 = vadd.f32 %v293, %v395
      %v397 = vpop.f32.mrb[0].mxu0
      %v398 = vpop.f32.mrb[0].mxu0
      %v399 = vadd.f32 %v298, %v398
      %v400 = vpop.f32.mrb[0].mxu0
      %401 = vmatprep.mubr.bf16.mxu0 0
      %402 = vmatmul.mubr.bf16.gmra.mrb[0].mxu0 %v348
      %v403 = vpop.f32.mrb[0].mxu0
      %v404 = vadd.f32 %v303, %v403
      %v405 = vpop.f32.mrb[0].mxu0
      %v406 = vpop.f32.mrb[0].mxu0
      %v407 = vadd.f32 %v308, %v406
      %v408 = vpop.f32.mrb[0].mxu0
      %409 = vmatprep.mubr.bf16.mxu0 0
      %410 = vmatmul.mubr.bf16.gmra.mrb[0].mxu0 %v351
      %v411 = vpop.f32.mrb[0].mxu0
      %v412 = vadd.f32 %v313, %v411
      %v413 = vpop.f32.mrb[0].mxu0
      %v414 = vpop.f32.mrb[0].mxu0
      %v415 = vadd.f32 %v318, %v414
      %v416 = vpop.f32.mrb[0].mxu0
      %417 = vdwg.mxu0
      %v418 = vld [vmem:[%s251] sm:$0xff]
      %v419 = vld [vmem:[%s251 + $0x8] sm:$0xff]
      %v420 = vld [vmem:[%s251 + $0x10] sm:$0xff]
      %v421 = vld [vmem:[%s251 + $0x18] sm:$0xff]
      %v422 = vld [vmem:[%s251 + $0x20] sm:$0xff]
      %v423 = vld [vmem:[%s251 + $0x28] sm:$0xff]
      %v424 = vld [vmem:[%s251 + $0x30] sm:$0xff]
      %v425 = vld [vmem:[%s251 + $0x38] sm:$0xff]
      %v426 = vadd.f32 %v388, %v418
      %v427 = vadd.f32 %v391, %v419
      %v428 = vadd.f32 %v396, %v420
      %v429 = vadd.f32 %v399, %v421
      %v430 = vadd.f32 %v404, %v422
      %v431 = vadd.f32 %v407, %v423
      %v432 = vadd.f32 %v412, %v424
      %v433 = vadd.f32 %v415, %v425
      %434 = vst [vmem:[%s259] sm:$0xff] %v426
      %435 = vst [vmem:[%s259 + $0x8] sm:$0xff] %v427
      %436 = vst [vmem:[%s259 + $0x10] sm:$0xff] %v428
      %437 = vst [vmem:[%s259 + $0x18] sm:$0xff] %v429
      %438 = vst [vmem:[%s259 + $0x20] sm:$0xff] %v430
      %439 = vst [vmem:[%s259 + $0x28] sm:$0xff] %v431
      %440 = vst [vmem:[%s259 + $0x30] sm:$0xff] %v432
      %441 = vst [vmem:[%s259 + $0x38] sm:$0xff] %v433
      %p442 = scmp.lt.s32.totalorder %s19, 1
      %s443 = scalar_select %p442, %s19, 1
      %p444 = scmp.lt.s32.totalorder %s20, 0
      %s445 = scalar_select %p444, %s20, 0
      %s446 = smul.addr %s443, 8
      %s447 = sadd.s32 %s445, %s446
      %s448 = smul.addr %s447, 8
      %s449 = scalar_lea.vmem %s4, %s448
      // Predicated region
      $region37: #{detector_backbone_with_fpn_forward.10} parent=35 // pred_check
        %p450 = pneg %p145
      $region38: #{detector_backbone_with_fpn_forward.10} parent=35 // pred_check_branch
        %452 = sbr.rel (%p450) target = $region40
      $region39: #{detector_backbone_with_fpn_forward.10} parent=35 // pred_region
        _
      $region40: #{detector_backbone_with_fpn_forward.10} parent=35 // pred_fallthru
        _
    $region36: #{detector_backbone_with_fpn_forward.10} parent=5 // pred_fallthru
      _
    %p453 = scmp.le.s32.totalorder 2, %s10
    // Predicated region
    $region41: #{detector_backbone_with_fpn_forward.10} parent=5 // pred_check
      %p454 = pneg %p453
    $region42: #{detector_backbone_with_fpn_forward.10} parent=5 // pred_check_branch
      %456 = sbr.rel (%p454) target = $region44
    $region43: #{detector_backbone_with_fpn_forward.10} parent=5 // pred_region
      %s457 = ssub.s32 %s10, 2
      // Predicated region
      $region45: #{detector_backbone_with_fpn_forward.10} parent=43 // pred_check
        %p458 = pneg %p151
      $region46: #{detector_backbone_with_fpn_forward.10} parent=43 // pred_check_branch
        %460 = sbr.rel (%p458) target = $region48
      $region47: #{detector_backbone_with_fpn_forward.10} parent=43 // pred_region
        %p461 = scmp.lt.s32.totalorder %s21, 1
        %s462 = scalar_select %p461, %s21, 1
        %p463 = scmp.lt.s32.totalorder %s22, 0
        %s464 = scalar_select %p463, %s22, 0
        %s465 = smul.addr %s462, 8
        %s466 = sadd.s32 %s464, %s465
        %s467 = smul.addr %s466, 8
        %s468 = scalar_lea.vmem %s4, %s467
      $region48: #{detector_backbone_with_fpn_forward.10} parent=43 // pred_fallthru
        _
    $region44: #{detector_backbone_with_fpn_forward.10} parent=5 // pred_fallthru
      _
  $region6: #{detector_backbone_with_fpn_forward.10} parent=0 // loop_footer
    %s14 = sadd.s32 1, %s10
  $region7: #{detector_backbone_with_fpn_forward.10} parent=0 // loop_footer_branch
    %9 = sbr.rel target = $region3
  $region8: #{detector_backbone_with_fpn_forward.10} parent=0 // loop_exit
    _

// kernel: detector_backbone_with_fpn_forward.11
$region0: #{detector_backbone_with_fpn_forward.11}
  #allocation0 [shape = 'u32[]', space=smem, size = 0x4, offset = 0x4, fixed_abs, tag = 'smem constant byte address 0x4 - core index']
  #allocation1 [shape = 'u32[144,128]{1,0:T(1,128)}', space=vmem, size = 0x12000, scoped, tag = 'internal scratch']
  #allocation2 [shape = 'bf16[576,128]{1,0:T(16,128)(2,1)}', space=vmem, size = 0x24000, scoped, tag = 'scratch operand']
  %s0 = inlined_call_operand.vmem [shape: f32[2,64,256], index: 0, kind: input, shape index: {}, may-alias: {0,1}]
  %s1 = inlined_call_operand.vmem [shape: f32[2,64,256], index: 1, kind: input, shape index: {}, may-alias: {0,1}]
  %s2 = inlined_call_operand.vmem [shape: bf16[64,576], index: 2, kind: input, shape index: {}]
  %s3 = inlined_call_operand.vmem [shape: f32[64,1], index: 3, kind: input, shape index: {}]
  %s4 = inlined_call_operand.vmem [shape: f32[2,64,128], index: 4, kind: output, shape index: {}]
  %s5 = sld [smem:[#allocation0]]
  $region125: #{detector_backbone_with_fpn_forward.11} parent=0
    _
  %s7 = ssub.s32 1, %s5
  %s8 = scalar_select 0, %s7, %s5
  $region1: #{detector_backbone_with_fpn_forward.11} parent=0
    #allocation3 [shape = 'u8[65536]{0}', space=vmem, size = 0x10000, scoped, tag = 'input window, operand 0']
    #allocation4 [shape = 'u8[65536]{0}', space=vmem, size = 0x10000, scoped, tag = 'input window, operand 1']
    loop: start=0, step=1, limit=4
    $region2: #{detector_backbone_with_fpn_forward.11} parent=1 // loop_pre_header
      _
    $region3: #{detector_backbone_with_fpn_forward.11} parent=1 // loop_header
      %s10 = sphi 0, %s14
      %p11 = scmp.ge.s32.totalorder %s10, 4
      %s17 = sphi 0, %s29
      %s18 = sphi 0, %s25
      %s19 = sphi 0, %s17
      %s20 = sphi 0, %s18
      %s21 = sphi 0, %s19
      %s22 = sphi 0, %s20
      %s34 = sphi 0, %s36
      %s37 = sphi 0, %s34
      %s38 = sphi 0, %s37
      %s54 = sphi 0, %s38
      %s64 = sphi 0, %s66
      %s67 = sphi 0, %s64
      %s68 = sphi 0, %s67
      %s84 = sphi 0, %s68
      %s88 = sphi 0, %s88
      %s90 = sphi 0, %s88
      %s91 = sphi 0, %s90
      %s105 = sphi 0, %s91
      %s109 = sphi 0, %s109
      %s111 = sphi 0, %s109
      %s112 = sphi 0, %s111
      %s126 = sphi 0, %s112
      %s134 = sphi 0, %s136
      %s137 = sphi 0, %s134
      %s138 = sphi 0, %s137
      %s154 = sphi 0, %s138
    $region4: #{detector_backbone_with_fpn_forward.11} parent=1 // loop_header_branch
      %13 = sbr.rel (%p11) target = $region8
    $region5: #{detector_backbone_with_fpn_forward.11} parent=1 // loop_body
      %s15 = ssub.s32 %s10, 1
      %s16 = ssub.s32 %s10, 2
      %s23 = sadd.s32 1, %s18
      %p24 = scmp.ge.s32.totalorder %s23, 1
      %s25 = scalar_select %p24, 0, %s23
      %s26 = sadd.s32 1, %s17
      %s27 = scalar_select %p24, %s26, %s17
      %p28 = scmp.ge.s32.totalorder %s27, 2
      %s29 = scalar_select %p28, 0, %s27
      %s30 = ssub.s32 %s17, %s29
      %s31 = ssub.s32 %s18, %s25
      %s32 = sor.u32 %s30, %s31
      %p33 = scmp.eq.s32.totalorder %s32, 0
      %s35 = sadd.s32 %s34, 1
      %s36 = scalar_select %p33, %s34, %s35
      %p39 = pneg %p33
      %p40 = scmp.eq.s32.totalorder %s10, 1
      %p41 = por %p39, %p40
      %p42 = scmp.ne.s32.totalorder %s34, %s37
      %p43 = scmp.eq.s32.totalorder %s10, 0
      %p44 = por %p42, %p43
      %p45 = scmp.ne.s32.totalorder %s34, %s37
      %p46 = scmp.eq.s32.totalorder %s15, 1
      %p47 = por %p45, %p46
      %p48 = scmp.ne.s32.totalorder %s37, %s38
      %p49 = scmp.eq.s32.totalorder %s15, 0
      %p50 = por %p48, %p49
      %p51 = scmp.ne.s32.totalorder %s37, %s38
      %p52 = scmp.eq.s32.totalorder %s16, 1
      %p53 = por %p51, %p52
      %p55 = scmp.ne.s32.totalorder %s38, %s54
      %p56 = scmp.eq.s32.totalorder %s16, 0
      %p57 = por %p55, %p56
      %s58 = sadd.s32 %s18, 1
      %s59 = sadd.s32 %s25, 1
      %s60 = ssub.s32 %s17, %s29
      %s61 = ssub.s32 %s58, %s59
      %s62 = sor.u32 %s60, %s61
      %p63 = scmp.eq.s32.totalorder %s62, 0
      %s65 = sadd.s32 %s64, 1
      %s66 = scalar_select %p63, %s64, %s65
      %p69 = pneg %p63
      %p70 = scmp.eq.s32.totalorder %s10, 1
      %p71 = por %p69, %p70
      %p72 = scmp.ne.s32.totalorder %s64, %s67
      %p73 = scmp.eq.s32.totalorder %s10, 0
      %p74 = por %p72, %p73
      %p75 = scmp.ne.s32.totalorder %s64, %s67
      %p76 = scmp.eq.s32.totalorder %s15, 1
      %p77 = por %p75, %p76
      %p78 = scmp.ne.s32.totalorder %s67, %s68
      %p79 = scmp.eq.s32.totalorder %s15, 0
      %p80 = por %p78, %p79
      %p81 = scmp.ne.s32.totalorder %s67, %s68
      %p82 = scmp.eq.s32.totalorder %s16, 1
      %p83 = por %p81, %p82
      %p85 = scmp.ne.s32.totalorder %s68, %s84
      %p86 = scmp.eq.s32.totalorder %s16, 0
      %p87 = por %p85, %p86
      %s89 = sadd.s32 %s88, 1
      %p92 = scmp.eq.s32.totalorder %s10, 1
      %p93 = scmp.ne.s32.totalorder %s88, %s90
      %p94 = scmp.eq.s32.totalorder %s10, 0
      %p95 = por %p93, %p94
      %p96 = scmp.ne.s32.totalorder %s88, %s90
      %p97 = scmp.eq.s32.totalorder %s15, 1
      %p98 = por %p96, %p97
      %p99 = scmp.ne.s32.totalorder %s90, %s91
      %p100 = scmp.eq.s32.totalorder %s15, 0
      %p101 = por %p99, %p100
      %p102 = scmp.ne.s32.totalorder %s90, %s91
      %p103 = scmp.eq.s32.totalorder %s16, 1
      %p104 = por %p102, %p103
      %p106 = scmp.ne.s32.totalorder %s91, %s105
      %p107 = scmp.eq.s32.totalorder %s16, 0
      %p108 = por %p106, %p107
      %s110 = sadd.s32 %s109, 1
      %p113 = scmp.eq.s32.totalorder %s10, 1
      %p114 = scmp.ne.s32.totalorder %s109, %s111
      %p115 = scmp.eq.s32.totalorder %s10, 0
      %p116 = por %p114, %p115
      %p117 = scmp.ne.s32.totalorder %s109, %s111
      %p118 = scmp.eq.s32.totalorder %s15, 1
      %p119 = por %p117, %p118
      %p120 = scmp.ne.s32.totalorder %s111, %s112
      %p121 = scmp.eq.s32.totalorder %s15, 0
      %p122 = por %p120, %p121
      %p123 = scmp.ne.s32.totalorder %s111, %s112
      %p124 = scmp.eq.s32.totalorder %s16, 1
      %p125 = por %p123, %p124
      %p127 = scmp.ne.s32.totalorder %s112, %s126
      %p128 = scmp.eq.s32.totalorder %s16, 0
      %p129 = por %p127, %p128
      %s130 = ssub.s32 %s17, %s29
      %s131 = ssub.s32 %s18, %s25
      %s132 = sor.u32 %s130, %s131
      %p133 = scmp.eq.s32.totalorder %s132, 0
      %s135 = sadd.s32 %s134, 1
      %s136 = scalar_select %p133, %s134, %s135
      %p139 = pneg %p133
      %p140 = scmp.eq.s32.totalorder %s10, 1
      %p141 = por %p139, %p140
      %p142 = scmp.ne.s32.totalorder %s134, %s137
      %p143 = scmp.eq.s32.totalorder %s10, 0
      %p144 = por %p142, %p143
      %p145 = scmp.ne.s32.totalorder %s134, %s137
      %p146 = scmp.eq.s32.totalorder %s15, 1
      %p147 = por %p145, %p146
      %p148 = scmp.ne.s32.totalorder %s137, %s138
      %p149 = scmp.eq.s32.totalorder %s15, 0
      %p150 = por %p148, %p149
      %p151 = scmp.ne.s32.totalorder %s137, %s138
      %p152 = scmp.eq.s32.totalorder %s16, 1
      %p153 = por %p151, %p152
      %p155 = scmp.ne.s32.totalorder %s138, %s154
      %p156 = scmp.eq.s32.totalorder %s16, 0
      %p157 = por %p155, %p156
      %p158 = scmp.le.s32.totalorder 1, %s10
      %p159 = scmp.lt.s32.totalorder %s10, 3
      %p160 = pnand %p158, %p159
      %p161 = pneg %p160
      // Predicated region
      $region9: #{detector_backbone_with_fpn_forward.11} parent=5 // pred_check
        _
      $region10: #{detector_backbone_with_fpn_forward.11} parent=5 // pred_check_branch
        %163 = sbr.rel (%p160) target = $region12
      $region11: #{detector_backbone_with_fpn_forward.11} parent=5 // pred_region
        %s164 = ssub.s32 %s10, 1
        // Predicated region
        $region13: #{detector_backbone_with_fpn_forward.11} parent=11 // pred_check
          %p165 = pneg %p101
        $region14: #{detector_backbone_with_fpn_forward.11} parent=11 // pred_check_branch
          %167 = sbr.rel (%p165) target = $region16
        $region15: #{detector_backbone_with_fpn_forward.11} parent=11 // pred_region
          _
        $region16: #{detector_backbone_with_fpn_forward.11} parent=11 // pred_fallthru
          _
        // Predicated region
        $region17: #{detector_backbone_with_fpn_forward.11} parent=11 // pred_check
          %p168 = pneg %p122
        $region18: #{detector_backbone_with_fpn_forward.11} parent=11 // pred_check_branch
          %170 = sbr.rel (%p168) target = $region20
        $region19: #{detector_backbone_with_fpn_forward.11} parent=11 // pred_region
          _
        $region20: #{detector_backbone_with_fpn_forward.11} parent=11 // pred_fallthru
          _
      $region12: #{detector_backbone_with_fpn_forward.11} parent=5 // pred_fallthru
        _
      %p171 = scmp.lt.s32.totalorder %s10, 2
      // Predicated region
      $region21: #{detector_backbone_with_fpn_forward.11} parent=5 // pred_check
        %p172 = pneg %p171
      $region22: #{detector_backbone_with_fpn_forward.11} parent=5 // pred_check_branch
        %174 = sbr.rel (%p172) target = $region24
      $region23: #{detector_backbone_with_fpn_forward.11} parent=5 // pred_region
        // Predicated region
        $region25: #{detector_backbone_with_fpn_forward.11} parent=23 // pred_check
          %p175 = pneg %p44
        $region26: #{detector_backbone_with_fpn_forward.11} parent=23 // pred_check_branch
          %177 = sbr.rel (%p175) target = $region28
        $region27: #{detector_backbone_with_fpn_forward.11} parent=23 // pred_region
          %s178 = sand.u32 %s34, 1
          %s179 = sand.u32 %s34, 1
          %s180 = smul.addr %s179, 64
          %s181 = scalar_lea.vmem [#allocation3], %s180
          %s182 = smul.addr %s17, 16
          %s183 = sadd.s32 %s18, %s182
          %s184 = smul.addr %s183, 8
          %s185 = scalar_lea.vmem %s0, %s184
          // Predicated region
          $region29: #{detector_backbone_with_fpn_forward.11} parent=27 // pred_check
            _
          $region30: #{detector_backbone_with_fpn_forward.11} parent=27 // pred_check_branch
            %187 = sbr.rel (0) target = $region32
          $region31: #{detector_backbone_with_fpn_forward.11} parent=27 // pred_region
            // Predicated region
            $region33: #{detector_backbone_with_fpn_forward.11} parent=31 // pred_check
              _
            $region34: #{detector_backbone_with_fpn_forward.11} parent=31 // pred_check_branch
              %189 = sbr.rel (0) target = $region36
            $region35: #{detector_backbone_with_fpn_forward.11} parent=31 // pred_region
              // Predicated region
              $region48: #{detector_backbone_with_fpn_forward.11} parent=35 // pred_check
                _
              $region49: #{detector_backbone_with_fpn_forward.11} parent=35 // pred_check_branch
                %218 = sbr.rel (0) target = $region51
              $region50: #{detector_backbone_with_fpn_forward.11} parent=35 // pred_region
                loop: start=0, step=1, limit=1
                $region52: #{detector_backbone_with_fpn_forward.11} parent=50 // loop_pre_header
                  _
                $region53: #{detector_backbone_with_fpn_forward.11} parent=50 // loop_header
                  %s220 = sphi 0, %s224
                  %p221 = scmp.ge.s32.totalorder %s220, 1
                  %s225 = sphi %s185, %s185
                  %s226 = sphi %s181, %s181
                $region54: #{detector_backbone_with_fpn_forward.11} parent=50 // loop_header_branch
                  %223 = sbr.rel (%p221) target = $region58
                $region55: #{detector_backbone_with_fpn_forward.11} parent=50 // loop_body
                  %v227 = vld [vmem:[%s225] sm:$0xff]
                  %228 = vst [vmem:[%s226] sm:$0xff] %v227
                  %v229 = vld [vmem:[%s225 + $0x10] sm:$0xff]
                  %230 = vst [vmem:[%s226 + $0x8] sm:$0xff] %v229
                  %v231 = vld [vmem:[%s225 + $0x20] sm:$0xff]
                  %232 = vst [vmem:[%s226 + $0x10] sm:$0xff] %v231
                  %v233 = vld [vmem:[%s225 + $0x30] sm:$0xff]
                  %234 = vst [vmem:[%s226 + $0x18] sm:$0xff] %v233
                  %v235 = vld [vmem:[%s225 + $0x40] sm:$0xff]
                  %236 = vst [vmem:[%s226 + $0x20] sm:$0xff] %v235
                  %v237 = vld [vmem:[%s225 + $0x50] sm:$0xff]
                  %238 = vst [vmem:[%s226 + $0x28] sm:$0xff] %v237
                  %v239 = vld [vmem:[%s225 + $0x60] sm:$0xff]
                  %240 = vst [vmem:[%s226 + $0x30] sm:$0xff] %v239
                  %v241 = vld [vmem:[%s225 + $0x70] sm:$0xff]
                  %242 = vst [vmem:[%s226 + $0x38] sm:$0xff] %v241
                $region56: #{detector_backbone_with_fpn_forward.11} parent=50 // loop_footer
                  %s224 = sadd.s32 1, %s220
                $region57: #{detector_backbone_with_fpn_forward.11} parent=50 // loop_footer_branch
                  %219 = sbr.rel target = $region53
                $region58: #{detector_backbone_with_fpn_forward.11} parent=50 // loop_exit
                  _
              $region51: #{detector_backbone_with_fpn_forward.11} parent=35 // pred_fallthru
                _
              // Predicated region
              $region59: #{detector_backbone_with_fpn_forward.11} parent=35 // pred_check
                _
              $region60: #{detector_backbone_with_fpn_forward.11} parent=35 // pred_check_branch
                %244 = sbr.rel target = $region62
              $region61: #{detector_backbone_with_fpn_forward.11} parent=35 // pred_region
                _
              $region62: #{detector_backbone_with_fpn_forward.11} parent=35 // pred_fallthru
                _
            $region36: #{detector_backbone_with_fpn_forward.11} parent=31 // pred_fallthru
              _
            // Predicated region
            $region37: #{detector_backbone_with_fpn_forward.11} parent=31 // pred_check
              _
            $region38: #{detector_backbone_with_fpn_forward.11} parent=31 // pred_check_branch
              %191 = sbr.rel target = $region40
            $region39: #{detector_backbone_with_fpn_forward.11} parent=31 // pred_region
              loop: start=0, step=1, limit=1
              $region41: #{detector_backbone_with_fpn_forward.11} parent=39 // loop_pre_header
                _
              $region42: #{detector_backbone_with_fpn_forward.11} parent=39 // loop_header
                %s194 = sphi 0, %s198
                %p195 = scmp.ge.s32.totalorder %s194, 1
                %s199 = sphi %s185, %s185
                %s200 = sphi %s181, %s181
              $region43: #{detector_backbone_with_fpn_forward.11} parent=39 // loop_header_branch
                %197 = sbr.rel (%p195) target = $region47
              $region44: #{detector_backbone_with_fpn_forward.11} parent=39 // loop_body
                %v201 = vld [vmem:[%s199] sm:$0xff]
                %202 = vst [vmem:[%s200] sm:$0xff] %v201
                %v203 = vld [vmem:[%s199 + $0x10] sm:$0xff]
                %204 = vst [vmem:[%s200 + $0x8] sm:$0xff] %v203
                %v205 = vld [vmem:[%s199 + $0x20] sm:$0xff]
                %206 = vst [vmem:[%s200 + $0x10] sm:$0xff] %v205
                %v207 = vld [vmem:[%s199 + $0x30] sm:$0xff]
                %208 = vst [vmem:[%s200 + $0x18] sm:$0xff] %v207
                %v209 = vld [vmem:[%s199 + $0x40] sm:$0xff]
                %210 = vst [vmem:[%s200 + $0x20] sm:$0xff] %v209
                %v211 = vld [vmem:[%s199 + $0x50] sm:$0xff]
                %212 = vst [vmem:[%s200 + $0x28] sm:$0xff] %v211
                %v213 = vld [vmem:[%s199 + $0x60] sm:$0xff]
                %214 = vst [vmem:[%s200 + $0x30] sm:$0xff] %v213
                %v215 = vld [vmem:[%s199 + $0x70] sm:$0xff]
                %216 = vst [vmem:[%s200 + $0x38] sm:$0xff] %v215
              $region45: #{detector_backbone_with_fpn_forward.11} parent=39 // loop_footer
                %s198 = sadd.s32 1, %s194
              $region46: #{detector_backbone_with_fpn_forward.11} parent=39 // loop_footer_branch
                %193 = sbr.rel target = $region42
              $region47: #{detector_backbone_with_fpn_forward.11} parent=39 // loop_exit
                _
            $region40: #{detector_backbone_with_fpn_forward.11} parent=31 // pred_fallthru
              _
          $region32: #{detector_backbone_with_fpn_forward.11} parent=27 // pred_fallthru
            _
          %245 = vnop
        $region28: #{detector_backbone_with_fpn_forward.11} parent=23 // pred_fallthru
          _
        // Predicated region
        $region63: #{detector_backbone_with_fpn_forward.11} parent=23 // pred_check
          %p246 = pneg %p74
        $region64: #{detector_backbone_with_fpn_forward.11} parent=23 // pred_check_branch
          %248 = sbr.rel (%p246) target = $region66
        $region65: #{detector_backbone_with_fpn_forward.11} parent=23 // pred_region
          %s249 = sand.u32 %s64, 1
          %s250 = sand.u32 %s64, 1
          %s251 = smul.addr %s250, 64
          %s252 = scalar_lea.vmem [#allocation4], %s251
          %s253 = sadd.s32 %s18, 1
          %s254 = smul.addr %s17, 16
          %s255 = sadd.s32 %s253, %s254
          %s256 = smul.addr %s255, 8
          %s257 = scalar_lea.vmem %s1, %s256
          // Predicated region
          $region67: #{detector_backbone_with_fpn_forward.11} parent=65 // pred_check
            _
          $region68: #{detector_backbone_with_fpn_forward.11} parent=65 // pred_check_branch
            %259 = sbr.rel (0) target = $region70
          $region69: #{detector_backbone_with_fpn_forward.11} parent=65 // pred_region
            // Predicated region
            $region71: #{detector_backbone_with_fpn_forward.11} parent=69 // pred_check
              _
            $region72: #{detector_backbone_with_fpn_forward.11} parent=69 // pred_check_branch
              %261 = sbr.rel (0) target = $region74
            $region73: #{detector_backbone_with_fpn_forward.11} parent=69 // pred_region
              // Predicated region
              $region86: #{detector_backbone_with_fpn_forward.11} parent=73 // pred_check
                _
              $region87: #{detector_backbone_with_fpn_forward.11} parent=73 // pred_check_branch
                %290 = sbr.rel (0) target = $region89
              $region88: #{detector_backbone_with_fpn_forward.11} parent=73 // pred_region
                loop: start=0, step=1, limit=1
                $region90: #{detector_backbone_with_fpn_forward.11} parent=88 // loop_pre_header
                  _
                $region91: #{detector_backbone_with_fpn_forward.11} parent=88 // loop_header
                  %s292 = sphi 0, %s296
                  %p293 = scmp.ge.s32.totalorder %s292, 1
                  %s297 = sphi %s257, %s257
                  %s298 = sphi %s252, %s252
                $region92: #{detector_backbone_with_fpn_forward.11} parent=88 // loop_header_branch
                  %295 = sbr.rel (%p293) target = $region96
                $region93: #{detector_backbone_with_fpn_forward.11} parent=88 // loop_body
                  %v299 = vld [vmem:[%s297] sm:$0xff]
                  %300 = vst [vmem:[%s298] sm:$0xff] %v299
                  %v301 = vld [vmem:[%s297 + $0x10] sm:$0xff]
                  %302 = vst [vmem:[%s298 + $0x8] sm:$0xff] %v301
                  %v303 = vld [vmem:[%s297 + $0x20] sm:$0xff]
                  %304 = vst [vmem:[%s298 + $0x10] sm:$0xff] %v303
                  %v305 = vld [vmem:[%s297 + $0x30] sm:$0xff]
                  %306 = vst [vmem:[%s298 + $0x18] sm:$0xff] %v305
                  %v307 = vld [vmem:[%s297 + $0x40] sm:$0xff]
                  %308 = vst [vmem:[%s298 + $0x20] sm:$0xff] %v307
                  %v309 = vld [vmem:[%s297 + $0x50] sm:$0xff]
                  %310 = vst [vmem:[%s298 + $0x28] sm:$0xff] %v309
                  %v311 = vld [vmem:[%s297 + $0x60] sm:$0xff]
                  %312 = vst [vmem:[%s298 + $0x30] sm:$0xff] %v311
                  %v313 = vld [vmem:[%s297 + $0x70] sm:$0xff]
                  %314 = vst [vmem:[%s298 + $0x38] sm:$0xff] %v313
                $region94: #{detector_backbone_with_fpn_forward.11} parent=88 // loop_footer
                  %s296 = sadd.s32 1, %s292
                $region95: #{detector_backbone_with_fpn_forward.11} parent=88 // loop_footer_branch
                  %291 = sbr.rel target = $region91
                $region96: #{detector_backbone_with_fpn_forward.11} parent=88 // loop_exit
                  _
              $region89: #{detector_backbone_with_fpn_forward.11} parent=73 // pred_fallthru
                _
              // Predicated region
              $region97: #{detector_backbone_with_fpn_forward.11} parent=73 // pred_check
                _
              $region98: #{detector_backbone_with_fpn_forward.11} parent=73 // pred_check_branch
                %316 = sbr.rel target = $region100
              $region99: #{detector_backbone_with_fpn_forward.11} parent=73 // pred_region
                _
              $region100: #{detector_backbone_with_fpn_forward.11} parent=73 // pred_fallthru
                _
            $region74: #{detector_backbone_with_fpn_forward.11} parent=69 // pred_fallthru
              _
            // Predicated region
            $region75: #{detector_backbone_with_fpn_forward.11} parent=69 // pred_check
              _
            $region76: #{detector_backbone_with_fpn_forward.11} parent=69 // pred_check_branch
              %263 = sbr.rel target = $region78
            $region77: #{detector_backbone_with_fpn_forward.11} parent=69 // pred_region
              loop: start=0, step=1, limit=1
              $region79: #{detector_backbone_with_fpn_forward.11} parent=77 // loop_pre_header
                _
              $region80: #{detector_backbone_with_fpn_forward.11} parent=77 // loop_header
                %s266 = sphi 0, %s270
                %p267 = scmp.ge.s32.totalorder %s266, 1
                %s271 = sphi %s257, %s257
                %s272 = sphi %s252, %s252
              $region81: #{detector_backbone_with_fpn_forward.11} parent=77 // loop_header_branch
                %269 = sbr.rel (%p267) target = $region85
              $region82: #{detector_backbone_with_fpn_forward.11} parent=77 // loop_body
                %v273 = vld [vmem:[%s271] sm:$0xff]
                %274 = vst [vmem:[%s272] sm:$0xff] %v273
                %v275 = vld [vmem:[%s271 + $0x10] sm:$0xff]
                %276 = vst [vmem:[%s272 + $0x8] sm:$0xff] %v275
                %v277 = vld [vmem:[%s271 + $0x20] sm:$0xff]
                %278 = vst [vmem:[%s272 + $0x10] sm:$0xff] %v277
                %v279 = vld [vmem:[%s271 + $0x30] sm:$0xff]
                %280 = vst [vmem:[%s272 + $0x18] sm:$0xff] %v279
                %v281 = vld [vmem:[%s271 + $0x40] sm:$0xff]
                %282 = vst [vmem:[%s272 + $0x20] sm:$0xff] %v281
                %v283 = vld [vmem:[%s271 + $0x50] sm:$0xff]
                %284 = vst [vmem:[%s272 + $0x28] sm:$0xff] %v283
                %v285 = vld [vmem:[%s271 + $0x60] sm:$0xff]
                %286 = vst [vmem:[%s272 + $0x30] sm:$0xff] %v285
                %v287 = vld [vmem:[%s271 + $0x70] sm:$0xff]
                %288 = vst [vmem:[%s272 + $0x38] sm:$0xff] %v287
              $region83: #{detector_backbone_with_fpn_forward.11} parent=77 // loop_footer
                %s270 = sadd.s32 1, %s266
              $region84: #{detector_backbone_with_fpn_forward.11} parent=77 // loop_footer_branch
                %265 = sbr.rel target = $region80
              $region85: #{detector_backbone_with_fpn_forward.11} parent=77 // loop_exit
                _
            $region78: #{detector_backbone_with_fpn_forward.11} parent=69 // pred_fallthru
              _
          $region70: #{detector_backbone_with_fpn_forward.11} parent=65 // pred_fallthru
            _
          %317 = vnop
        $region66: #{detector_backbone_with_fpn_forward.11} parent=23 // pred_fallthru
          _
      $region24: #{detector_backbone_with_fpn_forward.11} parent=5 // pred_fallthru
        _
      %p318 = scmp.le.s32.totalorder 1, %s10
      %p319 = scmp.lt.s32.totalorder %s10, 3
      %p320 = pnand %p318, %p319
      %p321 = pneg %p320
      // Predicated region
      $region101: #{detector_backbone_with_fpn_forward.11} parent=5 // pred_check
        _
      $region102: #{detector_backbone_with_fpn_forward.11} parent=5 // pred_check_branch
        %323 = sbr.rel (%p320) target = $region104
      $region103: #{detector_backbone_with_fpn_forward.11} parent=5 // pred_region
        %s324 = ssub.s32 %s10, 1
        %s325 = sand.u32 %s37, 1
        %s326 = sand.u32 %s37, 1
        %s327 = smul.addr %s326, 64
        %s328 = scalar_lea.vmem [#allocation3], %s327
        // Predicated region
        $region105: #{detector_backbone_with_fpn_forward.11} parent=103 // pred_check
          %p329 = pneg %p50
        $region106: #{detector_backbone_with_fpn_forward.11} parent=103 // pred_check_branch
          %331 = sbr.rel (%p329) target = $region108
        $region107: #{detector_backbone_with_fpn_forward.11} parent=103 // pred_region
          _
        $region108: #{detector_backbone_with_fpn_forward.11} parent=103 // pred_fallthru
          _
        %s332 = sand.u32 %s67, 1
        %s333 = sand.u32 %s67, 1
        %s334 = smul.addr %s333, 64
        %s335 = scalar_lea.vmem [#allocation4], %s334
        // Predicated region
        $region109: #{detector_backbone_with_fpn_forward.11} parent=103 // pred_check
          %p336 = pneg %p80
        $region110: #{detector_backbone_with_fpn_forward.11} parent=103 // pred_check_branch
          %338 = sbr.rel (%p336) target = $region112
        $region111: #{detector_backbone_with_fpn_forward.11} parent=103 // pred_region
          _
        $region112: #{detector_backbone_with_fpn_forward.11} parent=103 // pred_fallthru
          _
        %s339 = sand.u32 %s37, 1
        %s340 = sand.u32 %s37, 1
        %s341 = smul.addr %s340, 64
        %s342 = scalar_lea.vmem [#allocation3], %s341
        %p343 = pneg %p50
        %p344 = pneg %p47
        %s345 = sand.u32 %s67, 1
        %s346 = sand.u32 %s67, 1
        %s347 = smul.addr %s346, 64
        %s348 = scalar_lea.vmem [#allocation4], %s347
        %p349 = pneg %p80
        %p350 = pneg %p77
        %p351 = pneg %p101
        %p352 = pneg %p98
        %p353 = pneg %p122
        %p354 = pneg %p119
        %p355 = pneg %p150
        %p356 = pneg %p147
        %p357 = scmp.lt.s32.totalorder %s19, 1
        %s358 = scalar_select %p357, %s19, 1
        %p359 = scmp.lt.s32.totalorder %s20, 0
        %s360 = scalar_select %p359, %s20, 0
        %s361 = smul.addr %s358, 8
        %s362 = sadd.s32 %s360, %s361
        %s363 = smul.addr %s362, 8
        %s364 = scalar_lea.vmem %s4, %s363
        %s365 = sadd.s32 %s20, 1
        %p366 = scmp.lt.s32.totalorder %s19, 1
        %s367 = scalar_select %p366, %s19, 1
        %p368 = scmp.lt.s32.totalorder %s20, 0
        %s369 = scalar_select %p368, %s20, 0
        %s370 = smul.addr %s367, 8
        %s371 = sadd.s32 %s369, %s370
        %s372 = smul.addr %s371, 8
        %s373 = scalar_lea.vmem %s4, %s372
        %v375 = vld [vmem:[%s328] sm:$0xff]
        %v376 = vld [vmem:[%s328 + $0x8] sm:$0xff]
        %v377 = vld [vmem:[%s328 + $0x10] sm:$0xff]
        %v378 = vld [vmem:[%s328 + $0x18] sm:$0xff]
        %v379 = vld [vmem:[%s328 + $0x20] sm:$0xff]
        %v380 = vld [vmem:[%s328 + $0x28] sm:$0xff]
        %v381 = vld [vmem:[%s328 + $0x30] sm:$0xff]
        %v382 = vld [vmem:[%s328 + $0x38] sm:$0xff]
        %v383 = vld [vmem:[%s335] sm:$0xff]
        %v384 = vld [vmem:[%s335 + $0x8] sm:$0xff]
        %v385 = vld [vmem:[%s335 + $0x10] sm:$0xff]
        %v386 = vld [vmem:[%s335 + $0x18] sm:$0xff]
        %v387 = vld [vmem:[%s335 + $0x20] sm:$0xff]
        %v388 = vld [vmem:[%s335 + $0x28] sm:$0xff]
        %v389 = vld [vmem:[%s335 + $0x30] sm:$0xff]
        %v390 = vld [vmem:[%s335 + $0x38] sm:$0xff]
        %v391 = vpack.c.bf16 %v376, %v375
        %v392 = vpack.c.bf16 %v384, %v383
        %v393 = vpack.c.bf16 %v378, %v377
        %v394 = vpack.c.bf16 %v386, %v385
        %v395 = vpack.c.bf16 %v380, %v379
        %v396 = vpack.c.bf16 %v388, %v387
        %v397 = vpack.c.bf16 %v382, %v381
        %v398 = vpack.c.bf16 %v390, %v389
        %399 = vst [vmem:[#allocation2] sm:$0xff] %v391
        %400 = vst [vmem:[#allocation2 + $0x8] sm:$0xff] %v393
        %401 = vst [vmem:[#allocation2 + $0x10] sm:$0xff] %v395
        %402 = vst [vmem:[#allocation2 + $0x18] sm:$0xff] %v397
        %411 = vrot.lane.b32.xlu0 %v391, 127
        %v412 = vpop.permute.xlu0 %411
        %413 = vrot.lane.b32.xlu0 %v392, 127
        %v414 = vpop.permute.xlu0 %413
        %415 = vrot.lane.b32.xlu0 %v393, 127
        %v416 = vpop.permute.xlu0 %415
        %417 = vrot.lane.b32.xlu0 %v394, 127
        %v418 = vpop.permute.xlu0 %417
        %419 = vrot.lane.b32.xlu0 %v395, 127
        %v420 = vpop.permute.xlu0 %419
        %421 = vrot.lane.b32.xlu0 %v396, 127
        %v422 = vpop.permute.xlu0 %421
        %423 = vrot.lane.b32.xlu0 %v397, 127
        %v424 = vpop.permute.xlu0 %423
        %425 = vrot.lane.b32.xlu0 %v398, 127
        %v426 = vpop.permute.xlu0 %425
        %vm427 = vcmask 1039360
        %v428 = vsel %vm427, %v412, %v414
        %v429 = vsel %vm427, %v416, %v418
        %v430 = vsel %vm427, %v420, %v422
        %v431 = vsel %vm427, %v424, %v426
        %436 = vst [vmem:[#allocation2 + $0x20] sm:$0xff] %v428
        %437 = vst [vmem:[#allocation2 + $0x28] sm:$0xff] %v429
        %438 = vst [vmem:[#allocation2 + $0x30] sm:$0xff] %v430
        %439 = vst [vmem:[#allocation2 + $0x38] sm:$0xff] %v431
        %440 = vrot.lane.b32.xlu0 %v391, 126
        %v441 = vpop.permute.xlu0 %440
        %442 = vrot.lane.b32.xlu0 %v392, 126
        %v443 = vpop.permute.xlu0 %442
        %444 = vrot.lane.b32.xlu0 %v393, 126
        %v445 = vpop.permute.xlu0 %444
        %446 = vrot.lane.b32.xlu0 %v394, 126
        %v447 = vpop.permute.xlu0 %446
        %448 = vrot.lane.b32.xlu0 %v395, 126
        %v449 = vpop.permute.xlu0 %448
        %450 = vrot.lane.b32.xlu0 %v396, 126
        %v451 = vpop.permute.xlu0 %450
        %452 = vrot.lane.b32.xlu0 %v397, 126
        %v453 = vpop.permute.xlu0 %452
        %454 = vrot.lane.b32.xlu0 %v398, 126
        %v455 = vpop.permute.xlu0 %454
        %vm456 = vcmask 1031168
        %v457 = vsel %vm456, %v441, %v443
        %v458 = vsel %vm456, %v445, %v447
        %v459 = vsel %vm456, %v449, %v451
        %v460 = vsel %vm456, %v453, %v455
        %465 = vst [vmem:[#allocation2 + $0x40] sm:$0xff] %v457
        %466 = vst [vmem:[#allocation2 + $0x48] sm:$0xff] %v458
        %467 = vst [vmem:[#allocation2 + $0x50] sm:$0xff] %v459
        %468 = vst [vmem:[#allocation2 + $0x58] sm:$0xff] %v460
        %469 = vrot.lane.b32.xlu0 %v391, 118
        %v470 = vpop.permute.xlu0 %469
        %471 = vrot.lane.b32.xlu0 %v392, 118
        %v472 = vpop.permute.xlu0 %471
        %473 = vrot.lane.b32.xlu0 %v393, 118
        %v474 = vpop.permute.xlu0 %473
        %475 = vrot.lane.b32.xlu0 %v394, 118
        %v476 = vpop.permute.xlu0 %475
        %477 = vrot.lane.b32.xlu0 %v395, 118
        %v478 = vpop.permute.xlu0 %477
        %479 = vrot.lane.b32.xlu0 %v396, 118
        %v480 = vpop.permute.xlu0 %479
        %481 = vrot.lane.b32.xlu0 %v397, 118
        %v482 = vpop.permute.xlu0 %481
        %483 = vrot.lane.b32.xlu0 %v398, 118
        %v484 = vpop.permute.xlu0 %483
        %vm485 = vcmask 965632
        %v486 = vsel %vm485, %v470, %v472
        %v487 = vsel %vm485, %v474, %v476
        %v488 = vsel %vm485, %v478, %v480
        %v489 = vsel %vm485, %v482, %v484
        %494 = vst [vmem:[#allocation2 + $0x60] sm:$0xff] %v486
        %495 = vst [vmem:[#allocation2 + $0x68] sm:$0xff] %v487
        %496 = vst [vmem:[#allocation2 + $0x70] sm:$0xff] %v488
        %497 = vst [vmem:[#allocation2 + $0x78] sm:$0xff] %v489
        %498 = vrot.lane.b32.xlu0 %v391, 117
        %v499 = vpop.permute.xlu0 %498
        %500 = vrot.lane.b32.xlu0 %v392, 117
        %v501 = vpop.permute.xlu0 %500
        %502 = vrot.lane.b32.xlu0 %v393, 117
        %v503 = vpop.permute.xlu0 %502
        %504 = vrot.lane.b32.xlu0 %v394, 117
        %v505 = vpop.permute.xlu0 %504
        %506 = vrot.lane.b32.xlu0 %v395, 117
        %v507 = vpop.permute.xlu0 %506
        %508 = vrot.lane.b32.xlu0 %v396, 117
        %v509 = vpop.permute.xlu0 %508
        %510 = vrot.lane.b32.xlu0 %v397, 117
        %v511 = vpop.permute.xlu0 %510
        %512 = vrot.lane.b32.xlu0 %v398, 117
        %v513 = vpop.permute.xlu0 %512
        %vm514 = vcmask 957440
        %v515 = vsel %vm514, %v499, %v501
        %v516 = vsel %vm514, %v503, %v505
        %v517 = vsel %vm514, %v507, %v509
        %v518 = vsel %vm514, %v511, %v513
        %523 = vst [vmem:[#allocation2 + $0x80] sm:$0xff] %v515
        %524 = vst [vmem:[#allocation2 + $0x88] sm:$0xff] %v516
        %525 = vst [vmem:[#allocation2 + $0x90] sm:$0xff] %v517
        %526 = vst [vmem:[#allocation2 + $0x98] sm:$0xff] %v518
        %527 = vrot.lane.b32.xlu0 %v391, 116
        %v528 = vpop.permute.xlu0 %527
        %529 = vrot.lane.b32.xlu0 %v392, 116
        %v530 = vpop.permute.xlu0 %529
        %531 = vrot.lane.b32.xlu0 %v393, 116
        %v532 = vpop.permute.xlu0 %531
        %533 = vrot.lane.b32.xlu0 %v394, 116
        %v534 = vpop.permute.xlu0 %533
        %535 = vrot.lane.b32.xlu0 %v395, 116
        %v536 = vpop.permute.xlu0 %535
        %537 = vrot.lane.b32.xlu0 %v396, 116
        %v538 = vpop.permute.xlu0 %537
        %539 = vrot.lane.b32.xlu0 %v397, 116
        %v540 = vpop.permute.xlu0 %539
        %541 = vrot.lane.b32.xlu0 %v398, 116
        %v542 = vpop.permute.xlu0 %541
        %vm543 = vcmask 949248
        %v544 = vsel %vm543, %v528, %v530
        %v545 = vsel %vm543, %v532, %v534
        %v546 = vsel %vm543, %v536, %v538
        %v547 = vsel %vm543, %v540, %v542
        %552 = vst [vmem:[#allocation2 + $0xa0] sm:$0xff] %v544
        %553 = vst [vmem:[#allocation2 + $0xa8] sm:$0xff] %v545
        %554 = vst [vmem:[#allocation2 + $0xb0] sm:$0xff] %v546
        %555 = vst [vmem:[#allocation2 + $0xb8] sm:$0xff] %v547
        %556 = vrot.lane.b32.xlu0 %v391, 108
        %v557 = vpop.permute.xlu0 %556
        %558 = vrot.lane.b32.xlu0 %v392, 108
        %v559 = vpop.permute.xlu0 %558
        %560 = vrot.lane.b32.xlu0 %v393, 108
        %v561 = vpop.permute.xlu0 %560
        %562 = vrot.lane.b32.xlu0 %v394, 108
        %v563 = vpop.permute.xlu0 %562
        %564 = vrot.lane.b32.xlu0 %v395, 108
        %v565 = vpop.permute.xlu0 %564
        %566 = vrot.lane.b32.xlu0 %v396, 108
        %v567 = vpop.permute.xlu0 %566
        %568 = vrot.lane.b32.xlu0 %v397, 108
        %v569 = vpop.permute.xlu0 %568
        %570 = vrot.lane.b32.xlu0 %v398, 108
        %v571 = vpop.permute.xlu0 %570
        %vm572 = vcmask 883712
        %v573 = vsel %vm572, %v557, %v559
        %v574 = vsel %vm572, %v561, %v563
        %v575 = vsel %vm572, %v565, %v567
        %v576 = vsel %vm572, %v569, %v571
        %581 = vst [vmem:[#allocation2 + $0xc0] sm:$0xff] %v573
        %582 = vst [vmem:[#allocation2 + $0xc8] sm:$0xff] %v574
        %583 = vst [vmem:[#allocation2 + $0xd0] sm:$0xff] %v575
        %584 = vst [vmem:[#allocation2 + $0xd8] sm:$0xff] %v576
        %585 = vrot.lane.b32.xlu0 %v391, 107
        %v586 = vpop.permute.xlu0 %585
        %587 = vrot.lane.b32.xlu0 %v392, 107
        %v588 = vpop.permute.xlu0 %587
        %589 = vrot.lane.b32.xlu0 %v393, 107
        %v590 = vpop.permute.xlu0 %589
        %591 = vrot.lane.b32.xlu0 %v394, 107
        %v592 = vpop.permute.xlu0 %591
        %593 = vrot.lane.b32.xlu0 %v395, 107
        %v594 = vpop.permute.xlu0 %593
        %595 = vrot.lane.b32.xlu0 %v396, 107
        %v596 = vpop.permute.xlu0 %595
        %597 = vrot.lane.b32.xlu0 %v397, 107
        %v598 = vpop.permute.xlu0 %597
        %599 = vrot.lane.b32.xlu0 %v398, 107
        %v600 = vpop.permute.xlu0 %599
        %vm601 = vcmask 875520
        %v602 = vsel %vm601, %v586, %v588
        %v603 = vsel %vm601, %v590, %v592
        %v604 = vsel %vm601, %v594, %v596
        %v605 = vsel %vm601, %v598, %v600
        %610 = vst [vmem:[#allocation2 + $0xe0] sm:$0xff] %v602
        %611 = vst [vmem:[#allocation2 + $0xe8] sm:$0xff] %v603
        %612 = vst [vmem:[#allocation2 + $0xf0] sm:$0xff] %v604
        %613 = vst [vmem:[#allocation2 + $0xf8] sm:$0xff] %v605
        %614 = vrot.lane.b32.xlu0 %v391, 106
        %v615 = vpop.permute.xlu0 %614
        %616 = vrot.lane.b32.xlu0 %v392, 106
        %v617 = vpop.permute.xlu0 %616
        %618 = vrot.lane.b32.xlu0 %v393, 106
        %v619 = vpop.permute.xlu0 %618
        %620 = vrot.lane.b32.xlu0 %v394, 106
        %v621 = vpop.permute.xlu0 %620
        %622 = vrot.lane.b32.xlu0 %v395, 106
        %v623 = vpop.permute.xlu0 %622
        %624 = vrot.lane.b32.xlu0 %v396, 106
        %v625 = vpop.permute.xlu0 %624
        %626 = vrot.lane.b32.xlu0 %v397, 106
        %v627 = vpop.permute.xlu0 %626
        %628 = vrot.lane.b32.xlu0 %v398, 106
        %v629 = vpop.permute.xlu0 %628
        %vm630 = vcmask 867328
        %v631 = vsel %vm630, %v615, %v617
        %v632 = vsel %vm630, %v619, %v621
        %v633 = vsel %vm630, %v623, %v625
        %v634 = vsel %vm630, %v627, %v629
        %639 = vst [vmem:[#allocation2 + $0x100] sm:$0xff] %v631
        %640 = vst [vmem:[#allocation2 + $0x108] sm:$0xff] %v632
        %641 = vst [vmem:[#allocation2 + $0x110] sm:$0xff] %v633
        %642 = vst [vmem:[#allocation2 + $0x118] sm:$0xff] %v634
        %v643 = vld [vmem:[%s2] sm:$0xff]
        %v644 = vld [vmem:[%s2 + $0x8] sm:$0xff]
        %v645 = vld [vmem:[%s2 + $0x10] sm:$0xf]
        %v646 = vld [vmem:[%s2 + $0x14] sm:$0xff]
        %v647 = vld [vmem:[%s2 + $0x1c] sm:$0xff]
        %v648 = vld [vmem:[%s2 + $0x24] sm:$0xf]
        %v649 = vld [vmem:[%s2 + $0x28] sm:$0xff]
        %v650 = vld [vmem:[%s2 + $0x30] sm:$0xff]
        %v651 = vld [vmem:[%s2 + $0x38] sm:$0xf]
        %v652 = vld [vmem:[%s2 + $0x3c] sm:$0xff]
        %v653 = vld [vmem:[%s2 + $0x44] sm:$0xff]
        %v654 = vld [vmem:[%s2 + $0x4c] sm:$0xf]
        %v655 = vld [vmem:[%s2 + $0x50] sm:$0xff]
        %v656 = vld [vmem:[%s2 + $0x58] sm:$0xff]
        %v657 = vld [vmem:[%s2 + $0x60] sm:$0xf]
        %v658 = vld [vmem:[%s2 + $0x64] sm:$0xff]
        %v659 = vld [vmem:[%s2 + $0x6c] sm:$0xff]
        %v660 = vld [vmem:[%s2 + $0x74] sm:$0xf]
        %v661 = vld [vmem:[%s2 + $0x78] sm:$0xff]
        %v662 = vld [vmem:[%s2 + $0x80] sm:$0xff]
        %v663 = vld [vmem:[%s2 + $0x88] sm:$0xf]
        %v664 = vld [vmem:[%s2 + $0x8c] sm:$0xff]
        %v665 = vld [vmem:[%s2 + $0x94] sm:$0xff]
        %v666 = vld [vmem:[%s2 + $0x9c] sm:$0xf]
        %v667 = vld [vmem:[#allocation2] sm:$0xff]
        %v668 = vld [vmem:[#allocation2 + $0x8] sm:$0xff]
        %v669 = vld [vmem:[#allocation2 + $0x10] sm:$0xff]
        %v670 = vld [vmem:[#allocation2 + $0x18] sm:$0xff]
        %v671 = vld [vmem:[#allocation2 + $0x20] sm:$0xff]
        %v672 = vld [vmem:[#allocation2 + $0x28] sm:$0xff]
        %v673 = vld [vmem:[#allocation2 + $0x30] sm:$0xff]
        %v674 = vld [vmem:[#allocation2 + $0x38] sm:$0xff]
        %v675 = vld [vmem:[#allocation2 + $0x40] sm:$0xff]
        %v676 = vld [vmem:[#allocation2 + $0x48] sm:$0xff]
        %v677 = vld [vmem:[#allocation2 + $0x50] sm:$0xff]
        %v678 = vld [vmem:[#allocation2 + $0x58] sm:$0xff]
        %v679 = vld [vmem:[#allocation2 + $0x60] sm:$0xff]
        %v680 = vld [vmem:[#allocation2 + $0x68] sm:$0xff]
        %v681 = vld [vmem:[#allocation2 + $0x70] sm:$0xff]
        %v682 = vld [vmem:[#allocation2 + $0x78] sm:$0xff]
        %v683 = vld [vmem:[#allocation2 + $0x80] sm:$0xff]
        %v684 = vld [vmem:[#allocation2 + $0x88] sm:$0xff]
        %v685 = vld [vmem:[#allocation2 + $0x90] sm:$0xff]
        %v686 = vld [vmem:[#allocation2 + $0x98] sm:$0xff]
        %v687 = vld [vmem:[#allocation2 + $0xa0] sm:$0xff]
        %v688 = vld [vmem:[#allocation2 + $0xa8] sm:$0xff]
        %v689 = vld [vmem:[#allocation2 + $0xb0] sm:$0xff]
        %v690 = vld [vmem:[#allocation2 + $0xb8] sm:$0xff]
        %v691 = vld [vmem:[#allocation2 + $0xc0] sm:$0xff]
        %v692 = vld [vmem:[#allocation2 + $0xc8] sm:$0xff]
        %v693 = vld [vmem:[#allocation2 + $0xd0] sm:$0xff]
        %v694 = vld [vmem:[#allocation2 + $0xd8] sm:$0xff]
        %v695 = vld [vmem:[#allocation2 + $0xe0] sm:$0xff]
        %v696 = vld [vmem:[#allocation2 + $0xe8] sm:$0xff]
        %v697 = vld [vmem:[#allocation2 + $0xf0] sm:$0xff]
        %v698 = vld [vmem:[#allocation2 + $0xf8] sm:$0xff]
        %v699 = vld [vmem:[#allocation2 + $0x100] sm:$0xff]
        %v700 = vld [vmem:[#allocation2 + $0x108] sm:$0xff]
        %v701 = vld [vmem:[#allocation2 + $0x110] sm:$0xff]
        %v702 = vld [vmem:[#allocation2 + $0x118] sm:$0xff]
        %v703 = vld [vmem:[%s3] sm:$0xff]
        %v704 = vld [vmem:[%s3 + $0x8] sm:$0xff]
        %v705 = vld [vmem:[%s3 + $0x10] sm:$0xff]
        %v706 = vld [vmem:[%s3 + $0x18] sm:$0xff]
        %v707 = vld [vmem:[%s3 + $0x20] sm:$0xff]
        %v708 = vld [vmem:[%s3 + $0x28] sm:$0xff]
        %v709 = vld [vmem:[%s3 + $0x30] sm:$0xff]
        %v710 = vld [vmem:[%s3 + $0x38] sm:$0xff]
        %712 = vset.pattern.permute.xlu0 0
        %713 = vperm.xlu0 %712, %v703
        %v714 = vpop.permute.xlu0 %713
        %717 = vset.pattern.permute.xlu0 0
        %718 = vperm.xlu0 %717, %v704
        %v719 = vpop.permute.xlu0 %718
        %722 = vset.pattern.permute.xlu0 0
        %723 = vperm.xlu0 %722, %v705
        %v724 = vpop.permute.xlu0 %723
        %727 = vset.pattern.permute.xlu0 0
        %728 = vperm.xlu0 %727, %v706
        %v729 = vpop.permute.xlu0 %728
        %732 = vset.pattern.permute.xlu0 0
        %733 = vperm.xlu0 %732, %v707
        %v734 = vpop.permute.xlu0 %733
        %737 = vset.pattern.permute.xlu0 0
        %738 = vperm.xlu0 %737, %v708
        %v739 = vpop.permute.xlu0 %738
        %742 = vset.pattern.permute.xlu0 0
        %743 = vperm.xlu0 %742, %v709
        %v744 = vpop.permute.xlu0 %743
        %747 = vset.pattern.permute.xlu0 0
        %748 = vperm.xlu0 %747, %v710
        %v749 = vpop.permute.xlu0 %748
        %v775 = vunpack.c.l.b16 %v643
        %v776 = vunpack.c.h.b16 %v643
        %v777 = vunpack.c.l.b16 %v644
        %v778 = vunpack.c.h.b16 %v644
        %v779 = vunpack.c.l.b16 %v645
        %v780 = vunpack.c.l.b16 %v646
        %v781 = vunpack.c.h.b16 %v646
        %v782 = vunpack.c.l.b16 %v647
        %v783 = vunpack.c.h.b16 %v647
        %v784 = vunpack.c.l.b16 %v648
        %v785 = vunpack.c.l.b16 %v649
        %v786 = vunpack.c.h.b16 %v649
        %v787 = vunpack.c.l.b16 %v650
        %v788 = vunpack.c.h.b16 %v650
        %v789 = vunpack.c.l.b16 %v651
        %v790 = vunpack.c.l.b16 %v652
        %v791 = vunpack.c.h.b16 %v652
        %v792 = vunpack.c.l.b16 %v653
        %v793 = vunpack.c.h.b16 %v653
        %v794 = vunpack.c.l.b16 %v654
        %v795 = vunpack.c.l.b16 %v655
        %v796 = vunpack.c.h.b16 %v655
        %v797 = vunpack.c.l.b16 %v656
        %v798 = vunpack.c.h.b16 %v656
        %v799 = vunpack.c.l.b16 %v657
        %v800 = vunpack.c.l.b16 %v658
        %v801 = vunpack.c.h.b16 %v658
        %v802 = vunpack.c.l.b16 %v659
        %v803 = vunpack.c.h.b16 %v659
        %v804 = vunpack.c.l.b16 %v660
        %v805 = vunpack.c.l.b16 %v661
        %v806 = vunpack.c.h.b16 %v661
        %v807 = vunpack.c.l.b16 %v662
        %v808 = vunpack.c.h.b16 %v662
        %v809 = vunpack.c.l.b16 %v663
        %v810 = vunpack.c.l.b16 %v664
        %v811 = vunpack.c.h.b16 %v664
        %v812 = vunpack.c.l.b16 %v665
        %v813 = vunpack.c.h.b16 %v665
        %v814 = vunpack.c.l.b16 %v666
        %v815 = vpack.c.b16 %v780, %v775
        %v816 = vpack.c.b16 %v781, %v776
        %v817 = vpack.c.b16 %v782, %v777
        %v818 = vpack.c.b16 %v783, %v778
        %v819 = vpack.c.b16 %v784, %v779
        %v820 = vpack.c.b16 %v790, %v785
        %v821 = vpack.c.b16 %v791, %v786
        %v822 = vpack.c.b16 %v792, %v787
        %v823 = vpack.c.b16 %v793, %v788
        %v824 = vpack.c.b16 %v794, %v789
        %v825 = vpack.c.b16 %v800, %v795
        %v826 = vpack.c.b16 %v801, %v796
        %v827 = vpack.c.b16 %v802, %v797
        %v828 = vpack.c.b16 %v803, %v798
        %v829 = vpack.c.b16 %v804, %v799
        %v830 = vpack.c.b16 %v810, %v805
        %v831 = vpack.c.b16 %v811, %v806
        %v832 = vpack.c.b16 %v812, %v807
        %v833 = vpack.c.b16 %v813, %v808
        %v834 = vpack.c.b16 %v814, %v809
        %vm851 = vcmask 523264
        %v853 = vsel %vm851, %v819, 0
        %v856 = vsel %vm851, %v824, 0
        %v859 = vsel %vm851, %v829, 0
        %v862 = vsel %vm851, %v834, 0
        %864 = vmatprep.subr.bf16.mxu0 0
        %865 = vmatpush1.bf16.msra.mxu0 %v667
        %866 = vmatprep.subr.bf16.mxu0 0
        %867 = vmatpush1.bf16.msra.mxu0 %v668
        %868 = vmatprep.subr.bf16.mxu0 0
        %869 = vmatpush1.bf16.msra.mxu0 %v669
        %870 = vmatprep.subr.bf16.mxu0 0
        %871 = vmatpush1.bf16.msra.mxu0 %v670
        %872 = vmatprep.subr.bf16.mxu0 0
        %873 = vmatpush1.bf16.msra.mxu0 %v671
        %874 = vmatprep.subr.bf16.mxu0 0
        %875 = vmatpush1.bf16.msra.mxu0 %v672
        %876 = vmatprep.subr.bf16.mxu0 0
        %877 = vmatpush1.bf16.msra.mxu0 %v673
        %878 = vmatprep.subr.bf16.mxu0 0
        %879 = vmatpush1.bf16.msra.mxu0 %v674
        %880 = vmatprep.subr.bf16.mxu0 0
        %881 = vmatpush1.bf16.msra.mxu0 %v675
        %882 = vmatprep.subr.bf16.mxu0 0
        %883 = vmatpush1.bf16.msra.mxu0 %v676
        %884 = vmatprep.subr.bf16.mxu0 0
        %885 = vmatpush1.bf16.msra.mxu0 %v677
        %886 = vmatprep.subr.bf16.mxu0 0
        %887 = vmatpush1.bf16.msra.mxu0 %v678
        %888 = vmatprep.subr.bf16.mxu0 0
        %889 = vmatpush1.bf16.msra.mxu0 %v679
        %890 = vmatprep.subr.bf16.mxu0 0
        %891 = vmatpush1.bf16.msra.mxu0 %v680
        %892 = vmatprep.subr.bf16.mxu0 0
        %893 = vmatpush1.bf16.msra.mxu0 %v681
        %894 = vmatprep.subr.bf16.mxu0 0
        %895 = vmatpush1.bf16.msra.mxu0 %v682
        %896 = vmatprep.mubr.bf16.mxu0 %v816
        %897 = vmatmul.mubr.bf16.gmra.mrb[0].mxu0 %v815
        %v898 = vpop.f32.mrb[0].mxu0
        %v899 = vadd.f32 %v714, %v898
        %v900 = vpop.f32.mrb[0].mxu0
        %v901 = vpop.f32.mrb[0].mxu0
        %v902 = vadd.f32 %v719, %v901
        %v903 = vpop.f32.mrb[0].mxu0
        %904 = vmatprep.mubr.bf16.mxu0 %v821
        %905 = vmatmul.mubr.bf16.gmra.mrb[0].mxu0 %v820
        %v906 = vpop.f32.mrb[0].mxu0
        %v907 = vadd.f32 %v724, %v906
        %v908 = vpop.f32.mrb[0].mxu0
        %v909 = vpop.f32.mrb[0].mxu0
        %v910 = vadd.f32 %v729, %v909
        %v911 = vpop.f32.mrb[0].mxu0
        %912 = vmatprep.mubr.bf16.mxu0 %v826
        %913 = vmatmul.mubr.bf16.gmra.mrb[0].mxu0 %v825
        %v914 = vpop.f32.mrb[0].mxu0
        %v915 = vadd.f32 %v734, %v914
        %v916 = vpop.f32.mrb[0].mxu0
        %v917 = vpop.f32.mrb[0].mxu0
        %v918 = vadd.f32 %v739, %v917
        %v919 = vpop.f32.mrb[0].mxu0
        %920 = vmatprep.mubr.bf16.mxu0 %v831
        %921 = vmatmul.mubr.bf16.gmra.mrb[0].mxu0 %v830
        %v922 = vpop.f32.mrb[0].mxu0
        %v923 = vadd.f32 %v744, %v922
        %v924 = vpop.f32.mrb[0].mxu0
        %v925 = vpop.f32.mrb[0].mxu0
        %v926 = vadd.f32 %v749, %v925
        %v927 = vpop.f32.mrb[0].mxu0
        %928 = vdwg.mxu0
        %929 = vmatprep.subr.bf16.mxu0 0
        %930 = vmatpush1.bf16.msra.mxu0 %v683
        %931 = vmatprep.subr.bf16.mxu0 0
        %932 = vmatpush1.bf16.msra.mxu0 %v684
        %933 = vmatprep.subr.bf16.mxu0 0
        %934 = vmatpush1.bf16.msra.mxu0 %v685
        %935 = vmatprep.subr.bf16.mxu0 0
        %936 = vmatpush1.bf16.msra.mxu0 %v686
        %937 = vmatprep.subr.bf16.mxu0 0
        %938 = vmatpush1.bf16.msra.mxu0 %v687
        %939 = vmatprep.subr.bf16.mxu0 0
        %940 = vmatpush1.bf16.msra.mxu0 %v688
        %941 = vmatprep.subr.bf16.mxu0 0
        %942 = vmatpush1.bf16.msra.mxu0 %v689
        %943 = vmatprep.subr.bf16.mxu0 0
        %944 = vmatpush1.bf16.msra.mxu0 %v690
        %945 = vmatprep.subr.bf16.mxu0 0
        %946 = vmatpush1.bf16.msra.mxu0 %v691
        %947 = vmatprep.subr.bf16.mxu0 0
        %948 = vmatpush1.bf16.msra.mxu0 %v692
        %949 = vmatprep.subr.bf16.mxu0 0
        %950 = vmatpush1.bf16.msra.mxu0 %v693
        %951 = vmatprep.subr.bf16.mxu0 0
        %952 = vmatpush1.bf16.msra.mxu0 %v694
        %953 = vmatprep.subr.bf16.mxu0 0
        %954 = vmatpush1.bf16.msra.mxu0 %v695
        %955 = vmatprep.subr.bf16.mxu0 0
        %956 = vmatpush1.bf16.msra.mxu0 %v696
        %957 = vmatprep.subr.bf16.mxu0 0
        %958 = vmatpush1.bf16.msra.mxu0 %v697
        %959 = vmatprep.subr.bf16.mxu0 0
        %960 = vmatpush1.bf16.msra.mxu0 %v698
        %961 = vmatprep.mubr.bf16.mxu0 %v818
        %962 = vmatmul.mubr.bf16.gmra.mrb[0].mxu0 %v817
        %v963 = vpop.f32.mrb[0].mxu0
        %v964 = vadd.f32 %v899, %v963
        %v965 = vpop.f32.mrb[0].mxu0
        %v966 = vpop.f32.mrb[0].mxu0
        %v967 = vadd.f32 %v902, %v966
        %v968 = vpop.f32.mrb[0].mxu0
        %969 = vmatprep.mubr.bf16.mxu0 %v823
        %970 = vmatmul.mubr.bf16.gmra.mrb[0].mxu0 %v822
        %v971 = vpop.f32.mrb[0].mxu0
        %v972 = vadd.f32 %v907, %v971
        %v973 = vpop.f32.mrb[0].mxu0
        %v974 = vpop.f32.mrb[0].mxu0
        %v975 = vadd.f32 %v910, %v974
        %v976 = vpop.f32.mrb[0].mxu0
        %977 = vmatprep.mubr.bf16.mxu0 %v828
        %978 = vmatmul.mubr.bf16.gmra.mrb[0].mxu0 %v827
        %v979 = vpop.f32.mrb[0].mxu0
        %v980 = vadd.f32 %v915, %v979
        %v981 = vpop.f32.mrb[0].mxu0
        %v982 = vpop.f32.mrb[0].mxu0
        %v983 = vadd.f32 %v918, %v982
        %v984 = vpop.f32.mrb[0].mxu0
        %985 = vmatprep.mubr.bf16.mxu0 %v833
        %986 = vmatmul.mubr.bf16.gmra.mrb[0].mxu0 %v832
        %v987 = vpop.f32.mrb[0].mxu0
        %v988 = vadd.f32 %v923, %v987
        %v989 = vpop.f32.mrb[0].mxu0
        %v990 = vpop.f32.mrb[0].mxu0
        %v991 = vadd.f32 %v926, %v990
        %v992 = vpop.f32.mrb[0].mxu0
        %993 = vdwg.mxu0
        %994 = vmatprep.subr.bf16.mxu0 0
        %995 = vmatpush1.bf16.msra.mxu0 %v699
        %996 = vmatprep.subr.bf16.mxu0 0
        %997 = vmatpush1.bf16.msra.mxu0 %v700
        %998 = vmatprep.subr.bf16.mxu0 0
        %999 = vmatpush1.bf16.msra.mxu0 %v701
        %1000 = vmatprep.subr.bf16.mxu0 0
        %1001 = vmatpush1.bf16.msra.mxu0 %v702
        %1002 = vmatprep.subr.bf16.mxu0 0
        %1003 = vmatpush1.bf16.msra.mxu0 0
        %1004 = vmatprep.subr.bf16.mxu0 0
        %1005 = vmatpush1.bf16.msra.mxu0 0
        %1006 = vmatprep.subr.bf16.mxu0 0
        %1007 = vmatpush1.bf16.msra.mxu0 0
        %1008 = vmatprep.subr.bf16.mxu0 0
        %1009 = vmatpush1.bf16.msra.mxu0 0
        %1010 = vmatprep.subr.bf16.mxu0 0
        %1011 = vmatpush1.bf16.msra.mxu0 0
        %1012 = vmatprep.subr.bf16.mxu0 0
        %1013 = vmatpush1.bf16.msra.mxu0 0
        %1014 = vmatprep.subr.bf16.mxu0 0
        %1015 = vmatpush1.bf16.msra.mxu0 0
        %1016 = vmatprep.subr.bf16.mxu0 0
        %1017 = vmatpush1.bf16.msra.mxu0 0
        %1018 = vmatprep.subr.bf16.mxu0 0
        %1019 = vmatpush1.bf16.msra.mxu0 0
        %1020 = vmatprep.subr.bf16.mxu0 0
        %1021 = vmatpush1.bf16.msra.mxu0 0
        %1022 = vmatprep.subr.bf16.mxu0 0
        %1023 = vmatpush1.bf16.msra.mxu0 0
        %1024 = vmatprep.subr.bf16.mxu0 0
        %1025 = vmatpush1.bf16.msra.mxu0 0
        %1026 = vmatprep.mubr.bf16.mxu0 0
        %1027 = vmatmul.mubr.bf16.gmra.mrb[0].mxu0 %v853
        %v1028 = vpop.f32.mrb[0].mxu0
        %v1029 = vadd.f32 %v964, %v1028
        %v1030 = vpop.f32.mrb[0].mxu0
        %v1031 = vpop.f32.mrb[0].mxu0
        %v1032 = vadd.f32 %v967, %v1031
        %v1033 = vpop.f32.mrb[0].mxu0
        %1034 = vmatprep.mubr.bf16.mxu0 0
        %1035 = vmatmul.mubr.bf16.gmra.mrb[0].mxu0 %v856
        %v1036 = vpop.f32.mrb[0].mxu0
        %v1037 = vadd.f32 %v972, %v1036
        %v1038 = vpop.f32.mrb[0].mxu0
        %v1039 = vpop.f32.mrb[0].mxu0
        %v1040 = vadd.f32 %v975, %v1039
        %v1041 = vpop.f32.mrb[0].mxu0
        %1042 = vmatprep.mubr.bf16.mxu0 0
        %1043 = vmatmul.mubr.bf16.gmra.mrb[0].mxu0 %v859
        %v1044 = vpop.f32.mrb[0].mxu0
        %v1045 = vadd.f32 %v980, %v1044
        %v1046 = vpop.f32.mrb[0].mxu0
        %v1047 = vpop.f32.mrb[0].mxu0
        %v1048 = vadd.f32 %v983, %v1047
        %v1049 = vpop.f32.mrb[0].mxu0
        %1050 = vmatprep.mubr.bf16.mxu0 0
        %1051 = vmatmul.mubr.bf16.gmra.mrb[0].mxu0 %v862
        %v1052 = vpop.f32.mrb[0].mxu0
        %v1053 = vadd.f32 %v988, %v1052
        %v1054 = vpop.f32.mrb[0].mxu0
        %v1055 = vpop.f32.mrb[0].mxu0
        %v1056 = vadd.f32 %v991, %v1055
        %v1057 = vpop.f32.mrb[0].mxu0
        %1058 = vdwg.mxu0
        %1059 = vst [vmem:[%s373] sm:$0xff] %v1029
        %1060 = vst [vmem:[%s373 + $0x8] sm:$0xff] %v1032
        %1061 = vst [vmem:[%s373 + $0x10] sm:$0xff] %v1037
        %1062 = vst [vmem:[%s373 + $0x18] sm:$0xff] %v1040
        %1063 = vst [vmem:[%s373 + $0x20] sm:$0xff] %v1045
        %1064 = vst [vmem:[%s373 + $0x28] sm:$0xff] %v1048
        %1065 = vst [vmem:[%s373 + $0x30] sm:$0xff] %v1053
        %1066 = vst [vmem:[%s373 + $0x38] sm:$0xff] %v1056
        %p1067 = scmp.lt.s32.totalorder %s19, 1
        %s1068 = scalar_select %p1067, %s19, 1
        %p1069 = scmp.lt.s32.totalorder %s20, 0
        %s1070 = scalar_select %p1069, %s20, 0
        %s1071 = smul.addr %s1068, 8
        %s1072 = sadd.s32 %s1070, %s1071
        %s1073 = smul.addr %s1072, 8
        %s1074 = scalar_lea.vmem %s4, %s1073
        // Predicated region
        $region113: #{detector_backbone_with_fpn_forward.11} parent=103 // pred_check
          %p1075 = pneg %p147
        $region114: #{detector_backbone_with_fpn_forward.11} parent=103 // pred_check_branch
          %1077 = sbr.rel (%p1075) target = $region116
        $region115: #{detector_backbone_with_fpn_forward.11} parent=103 // pred_region
          _
        $region116: #{detector_backbone_with_fpn_forward.11} parent=103 // pred_fallthru
          _
      $region104: #{detector_backbone_with_fpn_forward.11} parent=5 // pred_fallthru
        _
      %p1078 = scmp.le.s32.totalorder 2, %s10
      // Predicated region
      $region117: #{detector_backbone_with_fpn_forward.11} parent=5 // pred_check
        %p1079 = pneg %p1078
      $region118: #{detector_backbone_with_fpn_forward.11} parent=5 // pred_check_branch
        %1081 = sbr.rel (%p1079) target = $region120
      $region119: #{detector_backbone_with_fpn_forward.11} parent=5 // pred_region
        %s1082 = ssub.s32 %s10, 2
        // Predicated region
        $region121: #{detector_backbone_with_fpn_forward.11} parent=119 // pred_check
          %p1083 = pneg %p153
        $region122: #{detector_backbone_with_fpn_forward.11} parent=119 // pred_check_branch
          %1085 = sbr.rel (%p1083) target = $region124
        $region123: #{detector_backbone_with_fpn_forward.11} parent=119 // pred_region
          %p1086 = scmp.lt.s32.totalorder %s21, 1
          %s1087 = scalar_select %p1086, %s21, 1
          %p1088 = scmp.lt.s32.totalorder %s22, 0
          %s1089 = scalar_select %p1088, %s22, 0
          %s1090 = smul.addr %s1087, 8
          %s1091 = sadd.s32 %s1089, %s1090
          %s1092 = smul.addr %s1091, 8
          %s1093 = scalar_lea.vmem %s4, %s1092
        $region124: #{detector_backbone_with_fpn_forward.11} parent=119 // pred_fallthru
          _
      $region120: #{detector_backbone_with_fpn_forward.11} parent=5 // pred_fallthru
        _
    $region6: #{detector_backbone_with_fpn_forward.11} parent=1 // loop_footer
      %s14 = sadd.s32 1, %s10
    $region7: #{detector_backbone_with_fpn_forward.11} parent=1 // loop_footer_branch
      %9 = sbr.rel target = $region3
    $region8: #{detector_backbone_with_fpn_forward.11} parent=1 // loop_exit
      _

// kernel: detector_backbone_with_fpn_forward.9
$region0: #{detector_backbone_with_fpn_forward.9}
  #allocation0 [shape = 'u32[]', space=smem, size = 0x4, offset = 0x4, fixed_abs, tag = 'smem constant byte address 0x4 - core index']
  #allocation1 [shape = 'u32[144,128]{1,0:T(1,128)}', space=vmem, size = 0x12000, scoped, tag = 'internal scratch']
  #allocation2 [shape = 'bf16[576,128]{1,0:T(16,128)(2,1)}', space=vmem, size = 0x24000, scoped, tag = 'scratch operand']
  %s0 = inlined_call_operand.vmem [shape: f32[2,64,256], index: 0, kind: input, shape index: {}, may-alias: {0,1}]
  %s1 = inlined_call_operand.vmem [shape: f32[2,64,256], index: 1, kind: input, shape index: {}, may-alias: {0,1}]
  %s2 = inlined_call_operand.vmem [shape: bf16[64,576], index: 2, kind: input, shape index: {}]
  %s3 = inlined_call_operand.vmem [shape: f32[64,1], index: 3, kind: input, shape index: {}]
  %s4 = inlined_call_operand.vmem [shape: f32[2,64,128], index: 4, kind: output, shape index: {}]
  %s5 = sld [smem:[#allocation0]]
  $region125: #{detector_backbone_with_fpn_forward.9} parent=0
    _
  %s7 = ssub.s32 1, %s5
  %s8 = scalar_select 0, %s7, %s5
  $region1: #{detector_backbone_with_fpn_forward.9} parent=0
    #allocation3 [shape = 'u8[65536]{0}', space=vmem, size = 0x10000, scoped, tag = 'input window, operand 0']
    #allocation4 [shape = 'u8[65536]{0}', space=vmem, size = 0x10000, scoped, tag = 'input window, operand 1']
    loop: start=0, step=1, limit=4
    $region2: #{detector_backbone_with_fpn_forward.9} parent=1 // loop_pre_header
      _
    $region3: #{detector_backbone_with_fpn_forward.9} parent=1 // loop_header
      %s10 = sphi 0, %s14
      %p11 = scmp.ge.s32.totalorder %s10, 4
      %s17 = sphi 0, %s29
      %s18 = sphi 0, %s25
      %s19 = sphi 0, %s17
      %s20 = sphi 0, %s18
      %s21 = sphi 0, %s19
      %s22 = sphi 0, %s20
      %s34 = sphi 0, %s36
      %s37 = sphi 0, %s34
      %s38 = sphi 0, %s37
      %s54 = sphi 0, %s38
      %s64 = sphi 0, %s66
      %s67 = sphi 0, %s64
      %s68 = sphi 0, %s67
      %s84 = sphi 0, %s68
      %s88 = sphi 0, %s88
      %s90 = sphi 0, %s88
      %s91 = sphi 0, %s90
      %s105 = sphi 0, %s91
      %s109 = sphi 0, %s109
      %s111 = sphi 0, %s109
      %s112 = sphi 0, %s111
      %s126 = sphi 0, %s112
      %s134 = sphi 0, %s136
      %s137 = sphi 0, %s134
      %s138 = sphi 0, %s137
      %s154 = sphi 0, %s138
    $region4: #{detector_backbone_with_fpn_forward.9} parent=1 // loop_header_branch
      %13 = sbr.rel (%p11) target = $region8
    $region5: #{detector_backbone_with_fpn_forward.9} parent=1 // loop_body
      %s15 = ssub.s32 %s10, 1
      %s16 = ssub.s32 %s10, 2
      %s23 = sadd.s32 1, %s18
      %p24 = scmp.ge.s32.totalorder %s23, 1
      %s25 = scalar_select %p24, 0, %s23
      %s26 = sadd.s32 1, %s17
      %s27 = scalar_select %p24, %s26, %s17
      %p28 = scmp.ge.s32.totalorder %s27, 2
      %s29 = scalar_select %p28, 0, %s27
      %s30 = ssub.s32 %s17, %s29
      %s31 = ssub.s32 %s18, %s25
      %s32 = sor.u32 %s30, %s31
      %p33 = scmp.eq.s32.totalorder %s32, 0
      %s35 = sadd.s32 %s34, 1
      %s36 = scalar_select %p33, %s34, %s35
      %p39 = pneg %p33
      %p40 = scmp.eq.s32.totalorder %s10, 1
      %p41 = por %p39, %p40
      %p42 = scmp.ne.s32.totalorder %s34, %s37
      %p43 = scmp.eq.s32.totalorder %s10, 0
      %p44 = por %p42, %p43
      %p45 = scmp.ne.s32.totalorder %s34, %s37
      %p46 = scmp.eq.s32.totalorder %s15, 1
      %p47 = por %p45, %p46
      %p48 = scmp.ne.s32.totalorder %s37, %s38
      %p49 = scmp.eq.s32.totalorder %s15, 0
      %p50 = por %p48, %p49
      %p51 = scmp.ne.s32.totalorder %s37, %s38
      %p52 = scmp.eq.s32.totalorder %s16, 1
      %p53 = por %p51, %p52
      %p55 = scmp.ne.s32.totalorder %s38, %s54
      %p56 = scmp.eq.s32.totalorder %s16, 0
      %p57 = por %p55, %p56
      %s58 = sadd.s32 %s18, 1
      %s59 = sadd.s32 %s25, 1
      %s60 = ssub.s32 %s17, %s29
      %s61 = ssub.s32 %s58, %s59
      %s62 = sor.u32 %s60, %s61
      %p63 = scmp.eq.s32.totalorder %s62, 0
      %s65 = sadd.s32 %s64, 1
      %s66 = scalar_select %p63, %s64, %s65
      %p69 = pneg %p63
      %p70 = scmp.eq.s32.totalorder %s10, 1
      %p71 = por %p69, %p70
      %p72 = scmp.ne.s32.totalorder %s64, %s67
      %p73 = scmp.eq.s32.totalorder %s10, 0
      %p74 = por %p72, %p73
      %p75 = scmp.ne.s32.totalorder %s64, %s67
      %p76 = scmp.eq.s32.totalorder %s15, 1
      %p77 = por %p75, %p76
      %p78 = scmp.ne.s32.totalorder %s67, %s68
      %p79 = scmp.eq.s32.totalorder %s15, 0
      %p80 = por %p78, %p79
      %p81 = scmp.ne.s32.totalorder %s67, %s68
      %p82 = scmp.eq.s32.totalorder %s16, 1
      %p83 = por %p81, %p82
      %p85 = scmp.ne.s32.totalorder %s68, %s84
      %p86 = scmp.eq.s32.totalorder %s16, 0
      %p87 = por %p85, %p86
      %s89 = sadd.s32 %s88, 1
      %p92 = scmp.eq.s32.totalorder %s10, 1
      %p93 = scmp.ne.s32.totalorder %s88, %s90
      %p94 = scmp.eq.s32.totalorder %s10, 0
      %p95 = por %p93, %p94
      %p96 = scmp.ne.s32.totalorder %s88, %s90
      %p97 = scmp.eq.s32.totalorder %s15, 1
      %p98 = por %p96, %p97
      %p99 = scmp.ne.s32.totalorder %s90, %s91
      %p100 = scmp.eq.s32.totalorder %s15, 0
      %p101 = por %p99, %p100
      %p102 = scmp.ne.s32.totalorder %s90, %s91
      %p103 = scmp.eq.s32.totalorder %s16, 1
      %p104 = por %p102, %p103
      %p106 = scmp.ne.s32.totalorder %s91, %s105
      %p107 = scmp.eq.s32.totalorder %s16, 0
      %p108 = por %p106, %p107
      %s110 = sadd.s32 %s109, 1
      %p113 = scmp.eq.s32.totalorder %s10, 1
      %p114 = scmp.ne.s32.totalorder %s109, %s111
      %p115 = scmp.eq.s32.totalorder %s10, 0
      %p116 = por %p114, %p115
      %p117 = scmp.ne.s32.totalorder %s109, %s111
      %p118 = scmp.eq.s32.totalorder %s15, 1
      %p119 = por %p117, %p118
      %p120 = scmp.ne.s32.totalorder %s111, %s112
      %p121 = scmp.eq.s32.totalorder %s15, 0
      %p122 = por %p120, %p121
      %p123 = scmp.ne.s32.totalorder %s111, %s112
      %p124 = scmp.eq.s32.totalorder %s16, 1
      %p125 = por %p123, %p124
      %p127 = scmp.ne.s32.totalorder %s112, %s126
      %p128 = scmp.eq.s32.totalorder %s16, 0
      %p129 = por %p127, %p128
      %s130 = ssub.s32 %s17, %s29
      %s131 = ssub.s32 %s18, %s25
      %s132 = sor.u32 %s130, %s131
      %p133 = scmp.eq.s32.totalorder %s132, 0
      %s135 = sadd.s32 %s134, 1
      %s136 = scalar_select %p133, %s134, %s135
      %p139 = pneg %p133
      %p140 = scmp.eq.s32.totalorder %s10, 1
      %p141 = por %p139, %p140
      %p142 = scmp.ne.s32.totalorder %s134, %s137
      %p143 = scmp.eq.s32.totalorder %s10, 0
      %p144 = por %p142, %p143
      %p145 = scmp.ne.s32.totalorder %s134, %s137
      %p146 = scmp.eq.s32.totalorder %s15, 1
      %p147 = por %p145, %p146
      %p148 = scmp.ne.s32.totalorder %s137, %s138
      %p149 = scmp.eq.s32.totalorder %s15, 0
      %p150 = por %p148, %p149
      %p151 = scmp.ne.s32.totalorder %s137, %s138
      %p152 = scmp.eq.s32.totalorder %s16, 1
      %p153 = por %p151, %p152
      %p155 = scmp.ne.s32.totalorder %s138, %s154
      %p156 = scmp.eq.s32.totalorder %s16, 0
      %p157 = por %p155, %p156
      %p158 = scmp.le.s32.totalorder 1, %s10
      %p159 = scmp.lt.s32.totalorder %s10, 3
      %p160 = pnand %p158, %p159
      %p161 = pneg %p160
      // Predicated region
      $region9: #{detector_backbone_with_fpn_forward.9} parent=5 // pred_check
        _
      $region10: #{detector_backbone_with_fpn_forward.9} parent=5 // pred_check_branch
        %163 = sbr.rel (%p160) target = $region12
      $region11: #{detector_backbone_with_fpn_forward.9} parent=5 // pred_region
        %s164 = ssub.s32 %s10, 1
        // Predicated region
        $region13: #{detector_backbone_with_fpn_forward.9} parent=11 // pred_check
          %p165 = pneg %p101
        $region14: #{detector_backbone_with_fpn_forward.9} parent=11 // pred_check_branch
          %167 = sbr.rel (%p165) target = $region16
        $region15: #{detector_backbone_with_fpn_forward.9} parent=11 // pred_region
          _
        $region16: #{detector_backbone_with_fpn_forward.9} parent=11 // pred_fallthru
          _
        // Predicated region
        $region17: #{detector_backbone_with_fpn_forward.9} parent=11 // pred_check
          %p168 = pneg %p122
        $region18: #{detector_backbone_with_fpn_forward.9} parent=11 // pred_check_branch
          %170 = sbr.rel (%p168) target = $region20
        $region19: #{detector_backbone_with_fpn_forward.9} parent=11 // pred_region
          _
        $region20: #{detector_backbone_with_fpn_forward.9} parent=11 // pred_fallthru
          _
      $region12: #{detector_backbone_with_fpn_forward.9} parent=5 // pred_fallthru
        _
      %p171 = scmp.lt.s32.totalorder %s10, 2
      // Predicated region
      $region21: #{detector_backbone_with_fpn_forward.9} parent=5 // pred_check
        %p172 = pneg %p171
      $region22: #{detector_backbone_with_fpn_forward.9} parent=5 // pred_check_branch
        %174 = sbr.rel (%p172) target = $region24
      $region23: #{detector_backbone_with_fpn_forward.9} parent=5 // pred_region
        // Predicated region
        $region25: #{detector_backbone_with_fpn_forward.9} parent=23 // pred_check
          %p175 = pneg %p44
        $region26: #{detector_backbone_with_fpn_forward.9} parent=23 // pred_check_branch
          %177 = sbr.rel (%p175) target = $region28
        $region27: #{detector_backbone_with_fpn_forward.9} parent=23 // pred_region
          %s178 = sand.u32 %s34, 1
          %s179 = sand.u32 %s34, 1
          %s180 = smul.addr %s179, 64
          %s181 = scalar_lea.vmem [#allocation3], %s180
          %s182 = smul.addr %s17, 16
          %s183 = sadd.s32 %s18, %s182
          %s184 = smul.addr %s183, 8
          %s185 = scalar_lea.vmem %s0, %s184
          // Predicated region
          $region29: #{detector_backbone_with_fpn_forward.9} parent=27 // pred_check
            _
          $region30: #{detector_backbone_with_fpn_forward.9} parent=27 // pred_check_branch
            %187 = sbr.rel (0) target = $region32
          $region31: #{detector_backbone_with_fpn_forward.9} parent=27 // pred_region
            // Predicated region
            $region33: #{detector_backbone_with_fpn_forward.9} parent=31 // pred_check
              _
            $region34: #{detector_backbone_with_fpn_forward.9} parent=31 // pred_check_branch
              %189 = sbr.rel (0) target = $region36
            $region35: #{detector_backbone_with_fpn_forward.9} parent=31 // pred_region
              // Predicated region
              $region48: #{detector_backbone_with_fpn_forward.9} parent=35 // pred_check
                _
              $region49: #{detector_backbone_with_fpn_forward.9} parent=35 // pred_check_branch
                %218 = sbr.rel (0) target = $region51
              $region50: #{detector_backbone_with_fpn_forward.9} parent=35 // pred_region
                loop: start=0, step=1, limit=1
                $region52: #{detector_backbone_with_fpn_forward.9} parent=50 // loop_pre_header
                  _
                $region53: #{detector_backbone_with_fpn_forward.9} parent=50 // loop_header
                  %s220 = sphi 0, %s224
                  %p221 = scmp.ge.s32.totalorder %s220, 1
                  %s225 = sphi %s185, %s185
                  %s226 = sphi %s181, %s181
                $region54: #{detector_backbone_with_fpn_forward.9} parent=50 // loop_header_branch
                  %223 = sbr.rel (%p221) target = $region58
                $region55: #{detector_backbone_with_fpn_forward.9} parent=50 // loop_body
                  %v227 = vld [vmem:[%s225] sm:$0xff]
                  %228 = vst [vmem:[%s226] sm:$0xff] %v227
                  %v229 = vld [vmem:[%s225 + $0x10] sm:$0xff]
                  %230 = vst [vmem:[%s226 + $0x8] sm:$0xff] %v229
                  %v231 = vld [vmem:[%s225 + $0x20] sm:$0xff]
                  %232 = vst [vmem:[%s226 + $0x10] sm:$0xff] %v231
                  %v233 = vld [vmem:[%s225 + $0x30] sm:$0xff]
                  %234 = vst [vmem:[%s226 + $0x18] sm:$0xff] %v233
                  %v235 = vld [vmem:[%s225 + $0x40] sm:$0xff]
                  %236 = vst [vmem:[%s226 + $0x20] sm:$0xff] %v235
                  %v237 = vld [vmem:[%s225 + $0x50] sm:$0xff]
                  %238 = vst [vmem:[%s226 + $0x28] sm:$0xff] %v237
                  %v239 = vld [vmem:[%s225 + $0x60] sm:$0xff]
                  %240 = vst [vmem:[%s226 + $0x30] sm:$0xff] %v239
                  %v241 = vld [vmem:[%s225 + $0x70] sm:$0xff]
                  %242 = vst [vmem:[%s226 + $0x38] sm:$0xff] %v241
                $region56: #{detector_backbone_with_fpn_forward.9} parent=50 // loop_footer
                  %s224 = sadd.s32 1, %s220
                $region57: #{detector_backbone_with_fpn_forward.9} parent=50 // loop_footer_branch
                  %219 = sbr.rel target = $region53
                $region58: #{detector_backbone_with_fpn_forward.9} parent=50 // loop_exit
                  _
              $region51: #{detector_backbone_with_fpn_forward.9} parent=35 // pred_fallthru
                _
              // Predicated region
              $region59: #{detector_backbone_with_fpn_forward.9} parent=35 // pred_check
                _
              $region60: #{detector_backbone_with_fpn_forward.9} parent=35 // pred_check_branch
                %244 = sbr.rel target = $region62
              $region61: #{detector_backbone_with_fpn_forward.9} parent=35 // pred_region
                _
              $region62: #{detector_backbone_with_fpn_forward.9} parent=35 // pred_fallthru
                _
            $region36: #{detector_backbone_with_fpn_forward.9} parent=31 // pred_fallthru
              _
            // Predicated region
            $region37: #{detector_backbone_with_fpn_forward.9} parent=31 // pred_check
              _
            $region38: #{detector_backbone_with_fpn_forward.9} parent=31 // pred_check_branch
              %191 = sbr.rel target = $region40
            $region39: #{detector_backbone_with_fpn_forward.9} parent=31 // pred_region
              loop: start=0, step=1, limit=1
              $region41: #{detector_backbone_with_fpn_forward.9} parent=39 // loop_pre_header
                _
              $region42: #{detector_backbone_with_fpn_forward.9} parent=39 // loop_header
                %s194 = sphi 0, %s198
                %p195 = scmp.ge.s32.totalorder %s194, 1
                %s199 = sphi %s185, %s185
                %s200 = sphi %s181, %s181
              $region43: #{detector_backbone_with_fpn_forward.9} parent=39 // loop_header_branch
                %197 = sbr.rel (%p195) target = $region47
              $region44: #{detector_backbone_with_fpn_forward.9} parent=39 // loop_body
                %v201 = vld [vmem:[%s199] sm:$0xff]
                %202 = vst [vmem:[%s200] sm:$0xff] %v201
                %v203 = vld [vmem:[%s199 + $0x10] sm:$0xff]
                %204 = vst [vmem:[%s200 + $0x8] sm:$0xff] %v203
                %v205 = vld [vmem:[%s199 + $0x20] sm:$0xff]
                %206 = vst [vmem:[%s200 + $0x10] sm:$0xff] %v205
                %v207 = vld [vmem:[%s199 + $0x30] sm:$0xff]
                %208 = vst [vmem:[%s200 + $0x18] sm:$0xff] %v207
                %v209 = vld [vmem:[%s199 + $0x40] sm:$0xff]
                %210 = vst [vmem:[%s200 + $0x20] sm:$0xff] %v209
                %v211 = vld [vmem:[%s199 + $0x50] sm:$0xff]
                %212 = vst [vmem:[%s200 + $0x28] sm:$0xff] %v211
                %v213 = vld [vmem:[%s199 + $0x60] sm:$0xff]
                %214 = vst [vmem:[%s200 + $0x30] sm:$0xff] %v213
                %v215 = vld [vmem:[%s199 + $0x70] sm:$0xff]
                %216 = vst [vmem:[%s200 + $0x38] sm:$0xff] %v215
              $region45: #{detector_backbone_with_fpn_forward.9} parent=39 // loop_footer
                %s198 = sadd.s32 1, %s194
              $region46: #{detector_backbone_with_fpn_forward.9} parent=39 // loop_footer_branch
                %193 = sbr.rel target = $region42
              $region47: #{detector_backbone_with_fpn_forward.9} parent=39 // loop_exit
                _
            $region40: #{detector_backbone_with_fpn_forward.9} parent=31 // pred_fallthru
              _
          $region32: #{detector_backbone_with_fpn_forward.9} parent=27 // pred_fallthru
            _
          %245 = vnop
        $region28: #{detector_backbone_with_fpn_forward.9} parent=23 // pred_fallthru
          _
        // Predicated region
        $region63: #{detector_backbone_with_fpn_forward.9} parent=23 // pred_check
          %p246 = pneg %p74
        $region64: #{detector_backbone_with_fpn_forward.9} parent=23 // pred_check_branch
          %248 = sbr.rel (%p246) target = $region66
        $region65: #{detector_backbone_with_fpn_forward.9} parent=23 // pred_region
          %s249 = sand.u32 %s64, 1
          %s250 = sand.u32 %s64, 1
          %s251 = smul.addr %s250, 64
          %s252 = scalar_lea.vmem [#allocation4], %s251
          %s253 = sadd.s32 %s18, 1
          %s254 = smul.addr %s17, 16
          %s255 = sadd.s32 %s253, %s254
          %s256 = smul.addr %s255, 8
          %s257 = scalar_lea.vmem %s1, %s256
          // Predicated region
          $region67: #{detector_backbone_with_fpn_forward.9} parent=65 // pred_check
            _
          $region68: #{detector_backbone_with_fpn_forward.9} parent=65 // pred_check_branch
            %259 = sbr.rel (0) target = $region70
          $region69: #{detector_backbone_with_fpn_forward.9} parent=65 // pred_region
            // Predicated region
            $region71: #{detector_backbone_with_fpn_forward.9} parent=69 // pred_check
              _
            $region72: #{detector_backbone_with_fpn_forward.9} parent=69 // pred_check_branch
              %261 = sbr.rel (0) target = $region74
            $region73: #{detector_backbone_with_fpn_forward.9} parent=69 // pred_region
              // Predicated region
              $region86: #{detector_backbone_with_fpn_forward.9} parent=73 // pred_check
                _
              $region87: #{detector_backbone_with_fpn_forward.9} parent=73 // pred_check_branch
                %290 = sbr.rel (0) target = $region89
              $region88: #{detector_backbone_with_fpn_forward.9} parent=73 // pred_region
                loop: start=0, step=1, limit=1
                $region90: #{detector_backbone_with_fpn_forward.9} parent=88 // loop_pre_header
                  _
                $region91: #{detector_backbone_with_fpn_forward.9} parent=88 // loop_header
                  %s292 = sphi 0, %s296
                  %p293 = scmp.ge.s32.totalorder %s292, 1
                  %s297 = sphi %s257, %s257
                  %s298 = sphi %s252, %s252
                $region92: #{detector_backbone_with_fpn_forward.9} parent=88 // loop_header_branch
                  %295 = sbr.rel (%p293) target = $region96
                $region93: #{detector_backbone_with_fpn_forward.9} parent=88 // loop_body
                  %v299 = vld [vmem:[%s297] sm:$0xff]
                  %300 = vst [vmem:[%s298] sm:$0xff] %v299
                  %v301 = vld [vmem:[%s297 + $0x10] sm:$0xff]
                  %302 = vst [vmem:[%s298 + $0x8] sm:$0xff] %v301
                  %v303 = vld [vmem:[%s297 + $0x20] sm:$0xff]
                  %304 = vst [vmem:[%s298 + $0x10] sm:$0xff] %v303
                  %v305 = vld [vmem:[%s297 + $0x30] sm:$0xff]
                  %306 = vst [vmem:[%s298 + $0x18] sm:$0xff] %v305
                  %v307 = vld [vmem:[%s297 + $0x40] sm:$0xff]
                  %308 = vst [vmem:[%s298 + $0x20] sm:$0xff] %v307
                  %v309 = vld [vmem:[%s297 + $0x50] sm:$0xff]
                  %310 = vst [vmem:[%s298 + $0x28] sm:$0xff] %v309
                  %v311 = vld [vmem:[%s297 + $0x60] sm:$0xff]
                  %312 = vst [vmem:[%s298 + $0x30] sm:$0xff] %v311
                  %v313 = vld [vmem:[%s297 + $0x70] sm:$0xff]
                  %314 = vst [vmem:[%s298 + $0x38] sm:$0xff] %v313
                $region94: #{detector_backbone_with_fpn_forward.9} parent=88 // loop_footer
                  %s296 = sadd.s32 1, %s292
                $region95: #{detector_backbone_with_fpn_forward.9} parent=88 // loop_footer_branch
                  %291 = sbr.rel target = $region91
                $region96: #{detector_backbone_with_fpn_forward.9} parent=88 // loop_exit
                  _
              $region89: #{detector_backbone_with_fpn_forward.9} parent=73 // pred_fallthru
                _
              // Predicated region
              $region97: #{detector_backbone_with_fpn_forward.9} parent=73 // pred_check
                _
              $region98: #{detector_backbone_with_fpn_forward.9} parent=73 // pred_check_branch
                %316 = sbr.rel target = $region100
              $region99: #{detector_backbone_with_fpn_forward.9} parent=73 // pred_region
                _
              $region100: #{detector_backbone_with_fpn_forward.9} parent=73 // pred_fallthru
                _
            $region74: #{detector_backbone_with_fpn_forward.9} parent=69 // pred_fallthru
              _
            // Predicated region
            $region75: #{detector_backbone_with_fpn_forward.9} parent=69 // pred_check
              _
            $region76: #{detector_backbone_with_fpn_forward.9} parent=69 // pred_check_branch
              %263 = sbr.rel target = $region78
            $region77: #{detector_backbone_with_fpn_forward.9} parent=69 // pred_region
              loop: start=0, step=1, limit=1
              $region79: #{detector_backbone_with_fpn_forward.9} parent=77 // loop_pre_header
                _
              $region80: #{detector_backbone_with_fpn_forward.9} parent=77 // loop_header
                %s266 = sphi 0, %s270
                %p267 = scmp.ge.s32.totalorder %s266, 1
                %s271 = sphi %s257, %s257
                %s272 = sphi %s252, %s252
              $region81: #{detector_backbone_with_fpn_forward.9} parent=77 // loop_header_branch
                %269 = sbr.rel (%p267) target = $region85
              $region82: #{detector_backbone_with_fpn_forward.9} parent=77 // loop_body
                %v273 = vld [vmem:[%s271] sm:$0xff]
                %274 = vst [vmem:[%s272] sm:$0xff] %v273
                %v275 = vld [vmem:[%s271 + $0x10] sm:$0xff]
                %276 = vst [vmem:[%s272 + $0x8] sm:$0xff] %v275
                %v277 = vld [vmem:[%s271 + $0x20] sm:$0xff]
                %278 = vst [vmem:[%s272 + $0x10] sm:$0xff] %v277
                %v279 = vld [vmem:[%s271 + $0x30] sm:$0xff]
                %280 = vst [vmem:[%s272 + $0x18] sm:$0xff] %v279
                %v281 = vld [vmem:[%s271 + $0x40] sm:$0xff]
                %282 = vst [vmem:[%s272 + $0x20] sm:$0xff] %v281
                %v283 = vld [vmem:[%s271 + $0x50] sm:$0xff]
                %284 = vst [vmem:[%s272 + $0x28] sm:$0xff] %v283
                %v285 = vld [vmem:[%s271 + $0x60] sm:$0xff]
                %286 = vst [vmem:[%s272 + $0x30] sm:$0xff] %v285
                %v287 = vld [vmem:[%s271 + $0x70] sm:$0xff]
                %288 = vst [vmem:[%s272 + $0x38] sm:$0xff] %v287
              $region83: #{detector_backbone_with_fpn_forward.9} parent=77 // loop_footer
                %s270 = sadd.s32 1, %s266
              $region84: #{detector_backbone_with_fpn_forward.9} parent=77 // loop_footer_branch
                %265 = sbr.rel target = $region80
              $region85: #{detector_backbone_with_fpn_forward.9} parent=77 // loop_exit
                _
            $region78: #{detector_backbone_with_fpn_forward.9} parent=69 // pred_fallthru
              _
          $region70: #{detector_backbone_with_fpn_forward.9} parent=65 // pred_fallthru
            _
          %317 = vnop
        $region66: #{detector_backbone_with_fpn_forward.9} parent=23 // pred_fallthru
          _
      $region24: #{detector_backbone_with_fpn_forward.9} parent=5 // pred_fallthru
        _
      %p318 = scmp.le.s32.totalorder 1, %s10
      %p319 = scmp.lt.s32.totalorder %s10, 3
      %p320 = pnand %p318, %p319
      %p321 = pneg %p320
      // Predicated region
      $region101: #{detector_backbone_with_fpn_forward.9} parent=5 // pred_check
        _
      $region102: #{detector_backbone_with_fpn_forward.9} parent=5 // pred_check_branch
        %323 = sbr.rel (%p320) target = $region104
      $region103: #{detector_backbone_with_fpn_forward.9} parent=5 // pred_region
        %s324 = ssub.s32 %s10, 1
        %s325 = sand.u32 %s37, 1
        %s326 = sand.u32 %s37, 1
        %s327 = smul.addr %s326, 64
        %s328 = scalar_lea.vmem [#allocation3], %s327
        // Predicated region
        $region105: #{detector_backbone_with_fpn_forward.9} parent=103 // pred_check
          %p329 = pneg %p50
        $region106: #{detector_backbone_with_fpn_forward.9} parent=103 // pred_check_branch
          %331 = sbr.rel (%p329) target = $region108
        $region107: #{detector_backbone_with_fpn_forward.9} parent=103 // pred_region
          _
        $region108: #{detector_backbone_with_fpn_forward.9} parent=103 // pred_fallthru
          _
        %s332 = sand.u32 %s67, 1
        %s333 = sand.u32 %s67, 1
        %s334 = smul.addr %s333, 64
        %s335 = scalar_lea.vmem [#allocation4], %s334
        // Predicated region
        $region109: #{detector_backbone_with_fpn_forward.9} parent=103 // pred_check
          %p336 = pneg %p80
        $region110: #{detector_backbone_with_fpn_forward.9} parent=103 // pred_check_branch
          %338 = sbr.rel (%p336) target = $region112
        $region111: #{detector_backbone_with_fpn_forward.9} parent=103 // pred_region
          _
        $region112: #{detector_backbone_with_fpn_forward.9} parent=103 // pred_fallthru
          _
        %s339 = sand.u32 %s37, 1
        %s340 = sand.u32 %s37, 1
        %s341 = smul.addr %s340, 64
        %s342 = scalar_lea.vmem [#allocation3], %s341
        %p343 = pneg %p50
        %p344 = pneg %p47
        %s345 = sand.u32 %s67, 1
        %s346 = sand.u32 %s67, 1
        %s347 = smul.addr %s346, 64
        %s348 = scalar_lea.vmem [#allocation4], %s347
        %p349 = pneg %p80
        %p350 = pneg %p77
        %p351 = pneg %p101
        %p352 = pneg %p98
        %p353 = pneg %p122
        %p354 = pneg %p119
        %p355 = pneg %p150
        %p356 = pneg %p147
        %p357 = scmp.lt.s32.totalorder %s19, 1
        %s358 = scalar_select %p357, %s19, 1
        %p359 = scmp.lt.s32.totalorder %s20, 0
        %s360 = scalar_select %p359, %s20, 0
        %s361 = smul.addr %s358, 8
        %s362 = sadd.s32 %s360, %s361
        %s363 = smul.addr %s362, 8
        %s364 = scalar_lea.vmem %s4, %s363
        %s365 = sadd.s32 %s20, 1
        %p366 = scmp.lt.s32.totalorder %s19, 1
        %s367 = scalar_select %p366, %s19, 1
        %p368 = scmp.lt.s32.totalorder %s20, 0
        %s369 = scalar_select %p368, %s20, 0
        %s370 = smul.addr %s367, 8
        %s371 = sadd.s32 %s369, %s370
        %s372 = smul.addr %s371, 8
        %s373 = scalar_lea.vmem %s4, %s372
        %v375 = vld [vmem:[%s328] sm:$0xff]
        %v376 = vld [vmem:[%s328 + $0x8] sm:$0xff]
        %v377 = vld [vmem:[%s328 + $0x10] sm:$0xff]
        %v378 = vld [vmem:[%s328 + $0x18] sm:$0xff]
        %v379 = vld [vmem:[%s328 + $0x20] sm:$0xff]
        %v380 = vld [vmem:[%s328 + $0x28] sm:$0xff]
        %v381 = vld [vmem:[%s328 + $0x30] sm:$0xff]
        %v382 = vld [vmem:[%s328 + $0x38] sm:$0xff]
        %v383 = vld [vmem:[%s335] sm:$0xff]
        %v384 = vld [vmem:[%s335 + $0x8] sm:$0xff]
        %v385 = vld [vmem:[%s335 + $0x10] sm:$0xff]
        %v386 = vld [vmem:[%s335 + $0x18] sm:$0xff]
        %v387 = vld [vmem:[%s335 + $0x20] sm:$0xff]
        %v388 = vld [vmem:[%s335 + $0x28] sm:$0xff]
        %v389 = vld [vmem:[%s335 + $0x30] sm:$0xff]
        %v390 = vld [vmem:[%s335 + $0x38] sm:$0xff]
        %v391 = vpack.c.bf16 %v376, %v375
        %v392 = vpack.c.bf16 %v384, %v383
        %v393 = vpack.c.bf16 %v378, %v377
        %v394 = vpack.c.bf16 %v386, %v385
        %v395 = vpack.c.bf16 %v380, %v379
        %v396 = vpack.c.bf16 %v388, %v387
        %v397 = vpack.c.bf16 %v382, %v381
        %v398 = vpack.c.bf16 %v390, %v389
        %399 = vst [vmem:[#allocation2] sm:$0xff] %v391
        %400 = vst [vmem:[#allocation2 + $0x8] sm:$0xff] %v393
        %401 = vst [vmem:[#allocation2 + $0x10] sm:$0xff] %v395
        %402 = vst [vmem:[#allocation2 + $0x18] sm:$0xff] %v397
        %411 = vrot.lane.b32.xlu0 %v391, 127
        %v412 = vpop.permute.xlu0 %411
        %413 = vrot.lane.b32.xlu0 %v392, 127
        %v414 = vpop.permute.xlu0 %413
        %415 = vrot.lane.b32.xlu0 %v393, 127
        %v416 = vpop.permute.xlu0 %415
        %417 = vrot.lane.b32.xlu0 %v394, 127
        %v418 = vpop.permute.xlu0 %417
        %419 = vrot.lane.b32.xlu0 %v395, 127
        %v420 = vpop.permute.xlu0 %419
        %421 = vrot.lane.b32.xlu0 %v396, 127
        %v422 = vpop.permute.xlu0 %421
        %423 = vrot.lane.b32.xlu0 %v397, 127
        %v424 = vpop.permute.xlu0 %423
        %425 = vrot.lane.b32.xlu0 %v398, 127
        %v426 = vpop.permute.xlu0 %425
        %vm427 = vcmask 1039360
        %v428 = vsel %vm427, %v412, %v414
        %v429 = vsel %vm427, %v416, %v418
        %v430 = vsel %vm427, %v420, %v422
        %v431 = vsel %vm427, %v424, %v426
        %436 = vst [vmem:[#allocation2 + $0x20] sm:$0xff] %v428
        %437 = vst [vmem:[#allocation2 + $0x28] sm:$0xff] %v429
        %438 = vst [vmem:[#allocation2 + $0x30] sm:$0xff] %v430
        %439 = vst [vmem:[#allocation2 + $0x38] sm:$0xff] %v431
        %440 = vrot.lane.b32.xlu0 %v391, 126
        %v441 = vpop.permute.xlu0 %440
        %442 = vrot.lane.b32.xlu0 %v392, 126
        %v443 = vpop.permute.xlu0 %442
        %444 = vrot.lane.b32.xlu0 %v393, 126
        %v445 = vpop.permute.xlu0 %444
        %446 = vrot.lane.b32.xlu0 %v394, 126
        %v447 = vpop.permute.xlu0 %446
        %448 = vrot.lane.b32.xlu0 %v395, 126
        %v449 = vpop.permute.xlu0 %448
        %450 = vrot.lane.b32.xlu0 %v396, 126
        %v451 = vpop.permute.xlu0 %450
        %452 = vrot.lane.b32.xlu0 %v397, 126
        %v453 = vpop.permute.xlu0 %452
        %454 = vrot.lane.b32.xlu0 %v398, 126
        %v455 = vpop.permute.xlu0 %454
        %vm456 = vcmask 1031168
        %v457 = vsel %vm456, %v441, %v443
        %v458 = vsel %vm456, %v445, %v447
        %v459 = vsel %vm456, %v449, %v451
        %v460 = vsel %vm456, %v453, %v455
        %465 = vst [vmem:[#allocation2 + $0x40] sm:$0xff] %v457
        %466 = vst [vmem:[#allocation2 + $0x48] sm:$0xff] %v458
        %467 = vst [vmem:[#allocation2 + $0x50] sm:$0xff] %v459
        %468 = vst [vmem:[#allocation2 + $0x58] sm:$0xff] %v460
        %469 = vrot.lane.b32.xlu0 %v391, 122
        %v470 = vpop.permute.xlu0 %469
        %471 = vrot.lane.b32.xlu0 %v392, 122
        %v472 = vpop.permute.xlu0 %471
        %473 = vrot.lane.b32.xlu0 %v393, 122
        %v474 = vpop.permute.xlu0 %473
        %475 = vrot.lane.b32.xlu0 %v394, 122
        %v476 = vpop.permute.xlu0 %475
        %477 = vrot.lane.b32.xlu0 %v395, 122
        %v478 = vpop.permute.xlu0 %477
        %479 = vrot.lane.b32.xlu0 %v396, 122
        %v480 = vpop.permute.xlu0 %479
        %481 = vrot.lane.b32.xlu0 %v397, 122
        %v482 = vpop.permute.xlu0 %481
        %483 = vrot.lane.b32.xlu0 %v398, 122
        %v484 = vpop.permute.xlu0 %483
        %vm485 = vcmask 998400
        %v486 = vsel %vm485, %v470, %v472
        %v487 = vsel %vm485, %v474, %v476
        %v488 = vsel %vm485, %v478, %v480
        %v489 = vsel %vm485, %v482, %v484
        %494 = vst [vmem:[#allocation2 + $0x60] sm:$0xff] %v486
        %495 = vst [vmem:[#allocation2 + $0x68] sm:$0xff] %v487
        %496 = vst [vmem:[#allocation2 + $0x70] sm:$0xff] %v488
        %497 = vst [vmem:[#allocation2 + $0x78] sm:$0xff] %v489
        %498 = vrot.lane.b32.xlu0 %v391, 121
        %v499 = vpop.permute.xlu0 %498
        %500 = vrot.lane.b32.xlu0 %v392, 121
        %v501 = vpop.permute.xlu0 %500
        %502 = vrot.lane.b32.xlu0 %v393, 121
        %v503 = vpop.permute.xlu0 %502
        %504 = vrot.lane.b32.xlu0 %v394, 121
        %v505 = vpop.permute.xlu0 %504
        %506 = vrot.lane.b32.xlu0 %v395, 121
        %v507 = vpop.permute.xlu0 %506
        %508 = vrot.lane.b32.xlu0 %v396, 121
        %v509 = vpop.permute.xlu0 %508
        %510 = vrot.lane.b32.xlu0 %v397, 121
        %v511 = vpop.permute.xlu0 %510
        %512 = vrot.lane.b32.xlu0 %v398, 121
        %v513 = vpop.permute.xlu0 %512
        %vm514 = vcmask 990208
        %v515 = vsel %vm514, %v499, %v501
        %v516 = vsel %vm514, %v503, %v505
        %v517 = vsel %vm514, %v507, %v509
        %v518 = vsel %vm514, %v511, %v513
        %523 = vst [vmem:[#allocation2 + $0x80] sm:$0xff] %v515
        %524 = vst [vmem:[#allocation2 + $0x88] sm:$0xff] %v516
        %525 = vst [vmem:[#allocation2 + $0x90] sm:$0xff] %v517
        %526 = vst [vmem:[#allocation2 + $0x98] sm:$0xff] %v518
        %527 = vrot.lane.b32.xlu0 %v391, 120
        %v528 = vpop.permute.xlu0 %527
        %529 = vrot.lane.b32.xlu0 %v392, 120
        %v530 = vpop.permute.xlu0 %529
        %531 = vrot.lane.b32.xlu0 %v393, 120
        %v532 = vpop.permute.xlu0 %531
        %533 = vrot.lane.b32.xlu0 %v394, 120
        %v534 = vpop.permute.xlu0 %533
        %535 = vrot.lane.b32.xlu0 %v395, 120
        %v536 = vpop.permute.xlu0 %535
        %537 = vrot.lane.b32.xlu0 %v396, 120
        %v538 = vpop.permute.xlu0 %537
        %539 = vrot.lane.b32.xlu0 %v397, 120
        %v540 = vpop.permute.xlu0 %539
        %541 = vrot.lane.b32.xlu0 %v398, 120
        %v542 = vpop.permute.xlu0 %541
        %vm543 = vcmask 982016
        %v544 = vsel %vm543, %v528, %v530
        %v545 = vsel %vm543, %v532, %v534
        %v546 = vsel %vm543, %v536, %v538
        %v547 = vsel %vm543, %v540, %v542
        %552 = vst [vmem:[#allocation2 + $0xa0] sm:$0xff] %v544
        %553 = vst [vmem:[#allocation2 + $0xa8] sm:$0xff] %v545
        %554 = vst [vmem:[#allocation2 + $0xb0] sm:$0xff] %v546
        %555 = vst [vmem:[#allocation2 + $0xb8] sm:$0xff] %v547
        %556 = vrot.lane.b32.xlu0 %v391, 116
        %v557 = vpop.permute.xlu0 %556
        %558 = vrot.lane.b32.xlu0 %v392, 116
        %v559 = vpop.permute.xlu0 %558
        %560 = vrot.lane.b32.xlu0 %v393, 116
        %v561 = vpop.permute.xlu0 %560
        %562 = vrot.lane.b32.xlu0 %v394, 116
        %v563 = vpop.permute.xlu0 %562
        %564 = vrot.lane.b32.xlu0 %v395, 116
        %v565 = vpop.permute.xlu0 %564
        %566 = vrot.lane.b32.xlu0 %v396, 116
        %v567 = vpop.permute.xlu0 %566
        %568 = vrot.lane.b32.xlu0 %v397, 116
        %v569 = vpop.permute.xlu0 %568
        %570 = vrot.lane.b32.xlu0 %v398, 116
        %v571 = vpop.permute.xlu0 %570
        %vm572 = vcmask 949248
        %v573 = vsel %vm572, %v557, %v559
        %v574 = vsel %vm572, %v561, %v563
        %v575 = vsel %vm572, %v565, %v567
        %v576 = vsel %vm572, %v569, %v571
        %581 = vst [vmem:[#allocation2 + $0xc0] sm:$0xff] %v573
        %582 = vst [vmem:[#allocation2 + $0xc8] sm:$0xff] %v574
        %583 = vst [vmem:[#allocation2 + $0xd0] sm:$0xff] %v575
        %584 = vst [vmem:[#allocation2 + $0xd8] sm:$0xff] %v576
        %585 = vrot.lane.b32.xlu0 %v391, 115
        %v586 = vpop.permute.xlu0 %585
        %587 = vrot.lane.b32.xlu0 %v392, 115
        %v588 = vpop.permute.xlu0 %587
        %589 = vrot.lane.b32.xlu0 %v393, 115
        %v590 = vpop.permute.xlu0 %589
        %591 = vrot.lane.b32.xlu0 %v394, 115
        %v592 = vpop.permute.xlu0 %591
        %593 = vrot.lane.b32.xlu0 %v395, 115
        %v594 = vpop.permute.xlu0 %593
        %595 = vrot.lane.b32.xlu0 %v396, 115
        %v596 = vpop.permute.xlu0 %595
        %597 = vrot.lane.b32.xlu0 %v397, 115
        %v598 = vpop.permute.xlu0 %597
        %599 = vrot.lane.b32.xlu0 %v398, 115
        %v600 = vpop.permute.xlu0 %599
        %vm601 = vcmask 941056
        %v602 = vsel %vm601, %v586, %v588
        %v603 = vsel %vm601, %v590, %v592
        %v604 = vsel %vm601, %v594, %v596
        %v605 = vsel %vm601, %v598, %v600
        %610 = vst [vmem:[#allocation2 + $0xe0] sm:$0xff] %v602
        %611 = vst [vmem:[#allocation2 + $0xe8] sm:$0xff] %v603
        %612 = vst [vmem:[#allocation2 + $0xf0] sm:$0xff] %v604
        %613 = vst [vmem:[#allocation2 + $0xf8] sm:$0xff] %v605
        %614 = vrot.lane.b32.xlu0 %v391, 114
        %v615 = vpop.permute.xlu0 %614
        %616 = vrot.lane.b32.xlu0 %v392, 114
        %v617 = vpop.permute.xlu0 %616
        %618 = vrot.lane.b32.xlu0 %v393, 114
        %v619 = vpop.permute.xlu0 %618
        %620 = vrot.lane.b32.xlu0 %v394, 114
        %v621 = vpop.permute.xlu0 %620
        %622 = vrot.lane.b32.xlu0 %v395, 114
        %v623 = vpop.permute.xlu0 %622
        %624 = vrot.lane.b32.xlu0 %v396, 114
        %v625 = vpop.permute.xlu0 %624
        %626 = vrot.lane.b32.xlu0 %v397, 114
        %v627 = vpop.permute.xlu0 %626
        %628 = vrot.lane.b32.xlu0 %v398, 114
        %v629 = vpop.permute.xlu0 %628
        %vm630 = vcmask 932864
        %v631 = vsel %vm630, %v615, %v617
        %v632 = vsel %vm630, %v619, %v621
        %v633 = vsel %vm630, %v623, %v625
        %v634 = vsel %vm630, %v627, %v629
        %639 = vst [vmem:[#allocation2 + $0x100] sm:$0xff] %v631
        %640 = vst [vmem:[#allocation2 + $0x108] sm:$0xff] %v632
        %641 = vst [vmem:[#allocation2 + $0x110] sm:$0xff] %v633
        %642 = vst [vmem:[#allocation2 + $0x118] sm:$0xff] %v634
        %v643 = vld [vmem:[%s2] sm:$0xff]
        %v644 = vld [vmem:[%s2 + $0x8] sm:$0xff]
        %v645 = vld [vmem:[%s2 + $0x10] sm:$0xf]
        %v646 = vld [vmem:[%s2 + $0x14] sm:$0xff]
        %v647 = vld [vmem:[%s2 + $0x1c] sm:$0xff]
        %v648 = vld [vmem:[%s2 + $0x24] sm:$0xf]
        %v649 = vld [vmem:[%s2 + $0x28] sm:$0xff]
        %v650 = vld [vmem:[%s2 + $0x30] sm:$0xff]
        %v651 = vld [vmem:[%s2 + $0x38] sm:$0xf]
        %v652 = vld [vmem:[%s2 + $0x3c] sm:$0xff]
        %v653 = vld [vmem:[%s2 + $0x44] sm:$0xff]
        %v654 = vld [vmem:[%s2 + $0x4c] sm:$0xf]
        %v655 = vld [vmem:[%s2 + $0x50] sm:$0xff]
        %v656 = vld [vmem:[%s2 + $0x58] sm:$0xff]
        %v657 = vld [vmem:[%s2 + $0x60] sm:$0xf]
        %v658 = vld [vmem:[%s2 + $0x64] sm:$0xff]
        %v659 = vld [vmem:[%s2 + $0x6c] sm:$0xff]
        %v660 = vld [vmem:[%s2 + $0x74] sm:$0xf]
        %v661 = vld [vmem:[%s2 + $0x78] sm:$0xff]
        %v662 = vld [vmem:[%s2 + $0x80] sm:$0xff]
        %v663 = vld [vmem:[%s2 + $0x88] sm:$0xf]
        %v664 = vld [vmem:[%s2 + $0x8c] sm:$0xff]
        %v665 = vld [vmem:[%s2 + $0x94] sm:$0xff]
        %v666 = vld [vmem:[%s2 + $0x9c] sm:$0xf]
        %v667 = vld [vmem:[#allocation2] sm:$0xff]
        %v668 = vld [vmem:[#allocation2 + $0x8] sm:$0xff]
        %v669 = vld [vmem:[#allocation2 + $0x10] sm:$0xff]
        %v670 = vld [vmem:[#allocation2 + $0x18] sm:$0xff]
        %v671 = vld [vmem:[#allocation2 + $0x20] sm:$0xff]
        %v672 = vld [vmem:[#allocation2 + $0x28] sm:$0xff]
        %v673 = vld [vmem:[#allocation2 + $0x30] sm:$0xff]
        %v674 = vld [vmem:[#allocation2 + $0x38] sm:$0xff]
        %v675 = vld [vmem:[#allocation2 + $0x40] sm:$0xff]
        %v676 = vld [vmem:[#allocation2 + $0x48] sm:$0xff]
        %v677 = vld [vmem:[#allocation2 + $0x50] sm:$0xff]
        %v678 = vld [vmem:[#allocation2 + $0x58] sm:$0xff]
        %v679 = vld [vmem:[#allocation2 + $0x60] sm:$0xff]
        %v680 = vld [vmem:[#allocation2 + $0x68] sm:$0xff]
        %v681 = vld [vmem:[#allocation2 + $0x70] sm:$0xff]
        %v682 = vld [vmem:[#allocation2 + $0x78] sm:$0xff]
        %v683 = vld [vmem:[#allocation2 + $0x80] sm:$0xff]
        %v684 = vld [vmem:[#allocation2 + $0x88] sm:$0xff]
        %v685 = vld [vmem:[#allocation2 + $0x90] sm:$0xff]
        %v686 = vld [vmem:[#allocation2 + $0x98] sm:$0xff]
        %v687 = vld [vmem:[#allocation2 + $0xa0] sm:$0xff]
        %v688 = vld [vmem:[#allocation2 + $0xa8] sm:$0xff]
        %v689 = vld [vmem:[#allocation2 + $0xb0] sm:$0xff]
        %v690 = vld [vmem:[#allocation2 + $0xb8] sm:$0xff]
        %v691 = vld [vmem:[#allocation2 + $0xc0] sm:$0xff]
        %v692 = vld [vmem:[#allocation2 + $0xc8] sm:$0xff]
        %v693 = vld [vmem:[#allocation2 + $0xd0] sm:$0xff]
        %v694 = vld [vmem:[#allocation2 + $0xd8] sm:$0xff]
        %v695 = vld [vmem:[#allocation2 + $0xe0] sm:$0xff]
        %v696 = vld [vmem:[#allocation2 + $0xe8] sm:$0xff]
        %v697 = vld [vmem:[#allocation2 + $0xf0] sm:$0xff]
        %v698 = vld [vmem:[#allocation2 + $0xf8] sm:$0xff]
        %v699 = vld [vmem:[#allocation2 + $0x100] sm:$0xff]
        %v700 = vld [vmem:[#allocation2 + $0x108] sm:$0xff]
        %v701 = vld [vmem:[#allocation2 + $0x110] sm:$0xff]
        %v702 = vld [vmem:[#allocation2 + $0x118] sm:$0xff]
        %v703 = vld [vmem:[%s3] sm:$0xff]
        %v704 = vld [vmem:[%s3 + $0x8] sm:$0xff]
        %v705 = vld [vmem:[%s3 + $0x10] sm:$0xff]
        %v706 = vld [vmem:[%s3 + $0x18] sm:$0xff]
        %v707 = vld [vmem:[%s3 + $0x20] sm:$0xff]
        %v708 = vld [vmem:[%s3 + $0x28] sm:$0xff]
        %v709 = vld [vmem:[%s3 + $0x30] sm:$0xff]
        %v710 = vld [vmem:[%s3 + $0x38] sm:$0xff]
        %712 = vset.pattern.permute.xlu0 0
        %713 = vperm.xlu0 %712, %v703
        %v714 = vpop.permute.xlu0 %713
        %717 = vset.pattern.permute.xlu0 0
        %718 = vperm.xlu0 %717, %v704
        %v719 = vpop.permute.xlu0 %718
        %722 = vset.pattern.permute.xlu0 0
        %723 = vperm.xlu0 %722, %v705
        %v724 = vpop.permute.xlu0 %723
        %727 = vset.pattern.permute.xlu0 0
        %728 = vperm.xlu0 %727, %v706
        %v729 = vpop.permute.xlu0 %728
        %732 = vset.pattern.permute.xlu0 0
        %733 = vperm.xlu0 %732, %v707
        %v734 = vpop.permute.xlu0 %733
        %737 = vset.pattern.permute.xlu0 0
        %738 = vperm.xlu0 %737, %v708
        %v739 = vpop.permute.xlu0 %738
        %742 = vset.pattern.permute.xlu0 0
        %743 = vperm.xlu0 %742, %v709
        %v744 = vpop.permute.xlu0 %743
        %747 = vset.pattern.permute.xlu0 0
        %748 = vperm.xlu0 %747, %v710
        %v749 = vpop.permute.xlu0 %748
        %v775 = vunpack.c.l.b16 %v643
        %v776 = vunpack.c.h.b16 %v643
        %v777 = vunpack.c.l.b16 %v644
        %v778 = vunpack.c.h.b16 %v644
        %v779 = vunpack.c.l.b16 %v645
        %v780 = vunpack.c.l.b16 %v646
        %v781 = vunpack.c.h.b16 %v646
        %v782 = vunpack.c.l.b16 %v647
        %v783 = vunpack.c.h.b16 %v647
        %v784 = vunpack.c.l.b16 %v648
        %v785 = vunpack.c.l.b16 %v649
        %v786 = vunpack.c.h.b16 %v649
        %v787 = vunpack.c.l.b16 %v650
        %v788 = vunpack.c.h.b16 %v650
        %v789 = vunpack.c.l.b16 %v651
        %v790 = vunpack.c.l.b16 %v652
        %v791 = vunpack.c.h.b16 %v652
        %v792 = vunpack.c.l.b16 %v653
        %v793 = vunpack.c.h.b16 %v653
        %v794 = vunpack.c.l.b16 %v654
        %v795 = vunpack.c.l.b16 %v655
        %v796 = vunpack.c.h.b16 %v655
        %v797 = vunpack.c.l.b16 %v656
        %v798 = vunpack.c.h.b16 %v656
        %v799 = vunpack.c.l.b16 %v657
        %v800 = vunpack.c.l.b16 %v658
        %v801 = vunpack.c.h.b16 %v658
        %v802 = vunpack.c.l.b16 %v659
        %v803 = vunpack.c.h.b16 %v659
        %v804 = vunpack.c.l.b16 %v660
        %v805 = vunpack.c.l.b16 %v661
        %v806 = vunpack.c.h.b16 %v661
        %v807 = vunpack.c.l.b16 %v662
        %v808 = vunpack.c.h.b16 %v662
        %v809 = vunpack.c.l.b16 %v663
        %v810 = vunpack.c.l.b16 %v664
        %v811 = vunpack.c.h.b16 %v664
        %v812 = vunpack.c.l.b16 %v665
        %v813 = vunpack.c.h.b16 %v665
        %v814 = vunpack.c.l.b16 %v666
        %v815 = vpack.c.b16 %v780, %v775
        %v816 = vpack.c.b16 %v781, %v776
        %v817 = vpack.c.b16 %v782, %v777
        %v818 = vpack.c.b16 %v783, %v778
        %v819 = vpack.c.b16 %v784, %v779
        %v820 = vpack.c.b16 %v790, %v785
        %v821 = vpack.c.b16 %v791, %v786
        %v822 = vpack.c.b16 %v792, %v787
        %v823 = vpack.c.b16 %v793, %v788
        %v824 = vpack.c.b16 %v794, %v789
        %v825 = vpack.c.b16 %v800, %v795
        %v826 = vpack.c.b16 %v801, %v796
        %v827 = vpack.c.b16 %v802, %v797
        %v828 = vpack.c.b16 %v803, %v798
        %v829 = vpack.c.b16 %v804, %v799
        %v830 = vpack.c.b16 %v810, %v805
        %v831 = vpack.c.b16 %v811, %v806
        %v832 = vpack.c.b16 %v812, %v807
        %v833 = vpack.c.b16 %v813, %v808
        %v834 = vpack.c.b16 %v814, %v809
        %vm851 = vcmask 523264
        %v853 = vsel %vm851, %v819, 0
        %v856 = vsel %vm851, %v824, 0
        %v859 = vsel %vm851, %v829, 0
        %v862 = vsel %vm851, %v834, 0
        %864 = vmatprep.subr.bf16.mxu0 0
        %865 = vmatpush1.bf16.msra.mxu0 %v667
        %866 = vmatprep.subr.bf16.mxu0 0
        %867 = vmatpush1.bf16.msra.mxu0 %v668
        %868 = vmatprep.subr.bf16.mxu0 0
        %869 = vmatpush1.bf16.msra.mxu0 %v669
        %870 = vmatprep.subr.bf16.mxu0 0
        %871 = vmatpush1.bf16.msra.mxu0 %v670
        %872 = vmatprep.subr.bf16.mxu0 0
        %873 = vmatpush1.bf16.msra.mxu0 %v671
        %874 = vmatprep.subr.bf16.mxu0 0
        %875 = vmatpush1.bf16.msra.mxu0 %v672
        %876 = vmatprep.subr.bf16.mxu0 0
        %877 = vmatpush1.bf16.msra.mxu0 %v673
        %878 = vmatprep.subr.bf16.mxu0 0
        %879 = vmatpush1.bf16.msra.mxu0 %v674
        %880 = vmatprep.subr.bf16.mxu0 0
        %881 = vmatpush1.bf16.msra.mxu0 %v675
        %882 = vmatprep.subr.bf16.mxu0 0
        %883 = vmatpush1.bf16.msra.mxu0 %v676
        %884 = vmatprep.subr.bf16.mxu0 0
        %885 = vmatpush1.bf16.msra.mxu0 %v677
        %886 = vmatprep.subr.bf16.mxu0 0
        %887 = vmatpush1.bf16.msra.mxu0 %v678
        %888 = vmatprep.subr.bf16.mxu0 0
        %889 = vmatpush1.bf16.msra.mxu0 %v679
        %890 = vmatprep.subr.bf16.mxu0 0
        %891 = vmatpush1.bf16.msra.mxu0 %v680
        %892 = vmatprep.subr.bf16.mxu0 0
        %893 = vmatpush1.bf16.msra.mxu0 %v681
        %894 = vmatprep.subr.bf16.mxu0 0
        %895 = vmatpush1.bf16.msra.mxu0 %v682
        %896 = vmatprep.mubr.bf16.mxu0 %v816
        %897 = vmatmul.mubr.bf16.gmra.mrb[0].mxu0 %v815
        %v898 = vpop.f32.mrb[0].mxu0
        %v899 = vadd.f32 %v714, %v898
        %v900 = vpop.f32.mrb[0].mxu0
        %v901 = vpop.f32.mrb[0].mxu0
        %v902 = vadd.f32 %v719, %v901
        %v903 = vpop.f32.mrb[0].mxu0
        %904 = vmatprep.mubr.bf16.mxu0 %v821
        %905 = vmatmul.mubr.bf16.gmra.mrb[0].mxu0 %v820
        %v906 = vpop.f32.mrb[0].mxu0
        %v907 = vadd.f32 %v724, %v906
        %v908 = vpop.f32.mrb[0].mxu0
        %v909 = vpop.f32.mrb[0].mxu0
        %v910 = vadd.f32 %v729, %v909
        %v911 = vpop.f32.mrb[0].mxu0
        %912 = vmatprep.mubr.bf16.mxu0 %v826
        %913 = vmatmul.mubr.bf16.gmra.mrb[0].mxu0 %v825
        %v914 = vpop.f32.mrb[0].mxu0
        %v915 = vadd.f32 %v734, %v914
        %v916 = vpop.f32.mrb[0].mxu0
        %v917 = vpop.f32.mrb[0].mxu0
        %v918 = vadd.f32 %v739, %v917
        %v919 = vpop.f32.mrb[0].mxu0
        %920 = vmatprep.mubr.bf16.mxu0 %v831
        %921 = vmatmul.mubr.bf16.gmra.mrb[0].mxu0 %v830
        %v922 = vpop.f32.mrb[0].mxu0
        %v923 = vadd.f32 %v744, %v922
        %v924 = vpop.f32.mrb[0].mxu0
        %v925 = vpop.f32.mrb[0].mxu0
        %v926 = vadd.f32 %v749, %v925
        %v927 = vpop.f32.mrb[0].mxu0
        %928 = vdwg.mxu0
        %929 = vmatprep.subr.bf16.mxu0 0
        %930 = vmatpush1.bf16.msra.mxu0 %v683
        %931 = vmatprep.subr.bf16.mxu0 0
        %932 = vmatpush1.bf16.msra.mxu0 %v684
        %933 = vmatprep.subr.bf16.mxu0 0
        %934 = vmatpush1.bf16.msra.mxu0 %v685
        %935 = vmatprep.subr.bf16.mxu0 0
        %936 = vmatpush1.bf16.msra.mxu0 %v686
        %937 = vmatprep.subr.bf16.mxu0 0
        %938 = vmatpush1.bf16.msra.mxu0 %v687
        %939 = vmatprep.subr.bf16.mxu0 0
        %940 = vmatpush1.bf16.msra.mxu0 %v688
        %941 = vmatprep.subr.bf16.mxu0 0
        %942 = vmatpush1.bf16.msra.mxu0 %v689
        %943 = vmatprep.subr.bf16.mxu0 0
        %944 = vmatpush1.bf16.msra.mxu0 %v690
        %945 = vmatprep.subr.bf16.mxu0 0
        %946 = vmatpush1.bf16.msra.mxu0 %v691
        %947 = vmatprep.subr.bf16.mxu0 0
        %948 = vmatpush1.bf16.msra.mxu0 %v692
        %949 = vmatprep.subr.bf16.mxu0 0
        %950 = vmatpush1.bf16.msra.mxu0 %v693
        %951 = vmatprep.subr.bf16.mxu0 0
        %952 = vmatpush1.bf16.msra.mxu0 %v694
        %953 = vmatprep.subr.bf16.mxu0 0
        %954 = vmatpush1.bf16.msra.mxu0 %v695
        %955 = vmatprep.subr.bf16.mxu0 0
        %956 = vmatpush1.bf16.msra.mxu0 %v696
        %957 = vmatprep.subr.bf16.mxu0 0
        %958 = vmatpush1.bf16.msra.mxu0 %v697
        %959 = vmatprep.subr.bf16.mxu0 0
        %960 = vmatpush1.bf16.msra.mxu0 %v698
        %961 = vmatprep.mubr.bf16.mxu0 %v818
        %962 = vmatmul.mubr.bf16.gmra.mrb[0].mxu0 %v817
        %v963 = vpop.f32.mrb[0].mxu0
        %v964 = vadd.f32 %v899, %v963
        %v965 = vpop.f32.mrb[0].mxu0
        %v966 = vpop.f32.mrb[0].mxu0
        %v967 = vadd.f32 %v902, %v966
        %v968 = vpop.f32.mrb[0].mxu0
        %969 = vmatprep.mubr.bf16.mxu0 %v823
        %970 = vmatmul.mubr.bf16.gmra.mrb[0].mxu0 %v822
        %v971 = vpop.f32.mrb[0].mxu0
        %v972 = vadd.f32 %v907, %v971
        %v973 = vpop.f32.mrb[0].mxu0
        %v974 = vpop.f32.mrb[0].mxu0
        %v975 = vadd.f32 %v910, %v974
        %v976 = vpop.f32.mrb[0].mxu0
        %977 = vmatprep.mubr.bf16.mxu0 %v828
        %978 = vmatmul.mubr.bf16.gmra.mrb[0].mxu0 %v827
        %v979 = vpop.f32.mrb[0].mxu0
        %v980 = vadd.f32 %v915, %v979
        %v981 = vpop.f32.mrb[0].mxu0
        %v982 = vpop.f32.mrb[0].mxu0
        %v983 = vadd.f32 %v918, %v982
        %v984 = vpop.f32.mrb[0].mxu0
        %985 = vmatprep.mubr.bf16.mxu0 %v833
        %986 = vmatmul.mubr.bf16.gmra.mrb[0].mxu0 %v832
        %v987 = vpop.f32.mrb[0].mxu0
        %v988 = vadd.f32 %v923, %v987
        %v989 = vpop.f32.mrb[0].mxu0
        %v990 = vpop.f32.mrb[0].mxu0
        %v991 = vadd.f32 %v926, %v990
        %v992 = vpop.f32.mrb[0].mxu0
        %993 = vdwg.mxu0
        %994 = vmatprep.subr.bf16.mxu0 0
        %995 = vmatpush1.bf16.msra.mxu0 %v699
        %996 = vmatprep.subr.bf16.mxu0 0
        %997 = vmatpush1.bf16.msra.mxu0 %v700
        %998 = vmatprep.subr.bf16.mxu0 0
        %999 = vmatpush1.bf16.msra.mxu0 %v701
        %1000 = vmatprep.subr.bf16.mxu0 0
        %1001 = vmatpush1.bf16.msra.mxu0 %v702
        %1002 = vmatprep.subr.bf16.mxu0 0
        %1003 = vmatpush1.bf16.msra.mxu0 0
        %1004 = vmatprep.subr.bf16.mxu0 0
        %1005 = vmatpush1.bf16.msra.mxu0 0
        %1006 = vmatprep.subr.bf16.mxu0 0
        %1007 = vmatpush1.bf16.msra.mxu0 0
        %1008 = vmatprep.subr.bf16.mxu0 0
        %1009 = vmatpush1.bf16.msra.mxu0 0
        %1010 = vmatprep.subr.bf16.mxu0 0
        %1011 = vmatpush1.bf16.msra.mxu0 0
        %1012 = vmatprep.subr.bf16.mxu0 0
        %1013 = vmatpush1.bf16.msra.mxu0 0
        %1014 = vmatprep.subr.bf16.mxu0 0
        %1015 = vmatpush1.bf16.msra.mxu0 0
        %1016 = vmatprep.subr.bf16.mxu0 0
        %1017 = vmatpush1.bf16.msra.mxu0 0
        %1018 = vmatprep.subr.bf16.mxu0 0
        %1019 = vmatpush1.bf16.msra.mxu0 0
        %1020 = vmatprep.subr.bf16.mxu0 0
        %1021 = vmatpush1.bf16.msra.mxu0 0
        %1022 = vmatprep.subr.bf16.mxu0 0
        %1023 = vmatpush1.bf16.msra.mxu0 0
        %1024 = vmatprep.subr.bf16.mxu0 0
        %1025 = vmatpush1.bf16.msra.mxu0 0
        %1026 = vmatprep.mubr.bf16.mxu0 0
        %1027 = vmatmul.mubr.bf16.gmra.mrb[0].mxu0 %v853
        %v1028 = vpop.f32.mrb[0].mxu0
        %v1029 = vadd.f32 %v964, %v1028
        %v1030 = vpop.f32.mrb[0].mxu0
        %v1031 = vpop.f32.mrb[0].mxu0
        %v1032 = vadd.f32 %v967, %v1031
        %v1033 = vpop.f32.mrb[0].mxu0
        %1034 = vmatprep.mubr.bf16.mxu0 0
        %1035 = vmatmul.mubr.bf16.gmra.mrb[0].mxu0 %v856
        %v1036 = vpop.f32.mrb[0].mxu0
        %v1037 = vadd.f32 %v972, %v1036
        %v1038 = vpop.f32.mrb[0].mxu0
        %v1039 = vpop.f32.mrb[0].mxu0
        %v1040 = vadd.f32 %v975, %v1039
        %v1041 = vpop.f32.mrb[0].mxu0
        %1042 = vmatprep.mubr.bf16.mxu0 0
        %1043 = vmatmul.mubr.bf16.gmra.mrb[0].mxu0 %v859
        %v1044 = vpop.f32.mrb[0].mxu0
        %v1045 = vadd.f32 %v980, %v1044
        %v1046 = vpop.f32.mrb[0].mxu0
        %v1047 = vpop.f32.mrb[0].mxu0
        %v1048 = vadd.f32 %v983, %v1047
        %v1049 = vpop.f32.mrb[0].mxu0
        %1050 = vmatprep.mubr.bf16.mxu0 0
        %1051 = vmatmul.mubr.bf16.gmra.mrb[0].mxu0 %v862
        %v1052 = vpop.f32.mrb[0].mxu0
        %v1053 = vadd.f32 %v988, %v1052
        %v1054 = vpop.f32.mrb[0].mxu0
        %v1055 = vpop.f32.mrb[0].mxu0
        %v1056 = vadd.f32 %v991, %v1055
        %v1057 = vpop.f32.mrb[0].mxu0
        %1058 = vdwg.mxu0
        %1059 = vst [vmem:[%s373] sm:$0xff] %v1029
        %1060 = vst [vmem:[%s373 + $0x8] sm:$0xff] %v1032
        %1061 = vst [vmem:[%s373 + $0x10] sm:$0xff] %v1037
        %1062 = vst [vmem:[%s373 + $0x18] sm:$0xff] %v1040
        %1063 = vst [vmem:[%s373 + $0x20] sm:$0xff] %v1045
        %1064 = vst [vmem:[%s373 + $0x28] sm:$0xff] %v1048
        %1065 = vst [vmem:[%s373 + $0x30] sm:$0xff] %v1053
        %1066 = vst [vmem:[%s373 + $0x38] sm:$0xff] %v1056
        %p1067 = scmp.lt.s32.totalorder %s19, 1
        %s1068 = scalar_select %p1067, %s19, 1
        %p1069 = scmp.lt.s32.totalorder %s20, 0
        %s1070 = scalar_select %p1069, %s20, 0
        %s1071 = smul.addr %s1068, 8
        %s1072 = sadd.s32 %s1070, %s1071
        %s1073 = smul.addr %s1072, 8
        %s1074 = scalar_lea.vmem %s4, %s1073
        // Predicated region
        $region113: #{detector_backbone_with_fpn_forward.9} parent=103 // pred_check
          %p1075 = pneg %p147
        $region114: #{detector_backbone_with_fpn_forward.9} parent=103 // pred_check_branch
          %1077 = sbr.rel (%p1075) target = $region116
        $region115: #{detector_backbone_with_fpn_forward.9} parent=103 // pred_region
          _
        $region116: #{detector_backbone_with_fpn_forward.9} parent=103 // pred_fallthru
          _
      $region104: #{detector_backbone_with_fpn_forward.9} parent=5 // pred_fallthru
        _
      %p1078 = scmp.le.s32.totalorder 2, %s10
      // Predicated region
      $region117: #{detector_backbone_with_fpn_forward.9} parent=5 // pred_check
        %p1079 = pneg %p1078
      $region118: #{detector_backbone_with_fpn_forward.9} parent=5 // pred_check_branch
        %1081 = sbr.rel (%p1079) target = $region120
      $region119: #{detector_backbone_with_fpn_forward.9} parent=5 // pred_region
        %s1082 = ssub.s32 %s10, 2
        // Predicated region
        $region121: #{detector_backbone_with_fpn_forward.9} parent=119 // pred_check
          %p1083 = pneg %p153
        $region122: #{detector_backbone_with_fpn_forward.9} parent=119 // pred_check_branch
          %1085 = sbr.rel (%p1083) target = $region124
        $region123: #{detector_backbone_with_fpn_forward.9} parent=119 // pred_region
          %p1086 = scmp.lt.s32.totalorder %s21, 1
          %s1087 = scalar_select %p1086, %s21, 1
          %p1088 = scmp.lt.s32.totalorder %s22, 0
          %s1089 = scalar_select %p1088, %s22, 0
          %s1090 = smul.addr %s1087, 8
          %s1091 = sadd.s32 %s1089, %s1090
          %s1092 = smul.addr %s1091, 8
          %s1093 = scalar_lea.vmem %s4, %s1092
        $region124: #{detector_backbone_with_fpn_forward.9} parent=119 // pred_fallthru
          _
      $region120: #{detector_backbone_with_fpn_forward.9} parent=5 // pred_fallthru
        _
    $region6: #{detector_backbone_with_fpn_forward.9} parent=1 // loop_footer
      %s14 = sadd.s32 1, %s10
    $region7: #{detector_backbone_with_fpn_forward.9} parent=1 // loop_footer_branch
      %9 = sbr.rel target = $region3
    $region8: #{detector_backbone_with_fpn_forward.9} parent=1 // loop_exit
      _

// kernel: detector_backbone_with_fpn_forward.7
$region0: #{detector_backbone_with_fpn_forward.7}
  #allocation0 [shape = 'u32[]', space=smem, size = 0x4, offset = 0x4, fixed_abs, tag = 'smem constant byte address 0x4 - core index']
  #allocation1 [shape = 'u32[144,128]{1,0:T(1,128)}', space=vmem, size = 0x12000, scoped, tag = 'internal scratch']
  #allocation2 [shape = 'bf16[576,128]{1,0:T(16,128)(2,1)}', space=vmem, size = 0x24000, scoped, tag = 'scratch operand']
  %s0 = inlined_call_operand.vmem [shape: f32[2,64,256], index: 0, kind: input, shape index: {}, may-alias: {0,1}]
  %s1 = inlined_call_operand.vmem [shape: f32[2,64,256], index: 1, kind: input, shape index: {}, may-alias: {0,1}]
  %s2 = inlined_call_operand.vmem [shape: bf16[64,576], index: 2, kind: input, shape index: {}]
  %s3 = inlined_call_operand.vmem [shape: f32[64,1], index: 3, kind: input, shape index: {}]
  %s4 = inlined_call_operand.vmem [shape: f32[2,64,128], index: 4, kind: output, shape index: {}]
  %s5 = sld [smem:[#allocation0]]
  $region125: #{detector_backbone_with_fpn_forward.7} parent=0
    _
  %s7 = ssub.s32 1, %s5
  %s8 = scalar_select 0, %s7, %s5
  $region1: #{detector_backbone_with_fpn_forward.7} parent=0
    #allocation3 [shape = 'u8[65536]{0}', space=vmem, size = 0x10000, scoped, tag = 'input window, operand 0']
    #allocation4 [shape = 'u8[65536]{0}', space=vmem, size = 0x10000, scoped, tag = 'input window, operand 1']
    loop: start=0, step=1, limit=4
    $region2: #{detector_backbone_with_fpn_forward.7} parent=1 // loop_pre_header
      _
    $region3: #{detector_backbone_with_fpn_forward.7} parent=1 // loop_header
      %s10 = sphi 0, %s14
      %p11 = scmp.ge.s32.totalorder %s10, 4
      %s17 = sphi 0, %s29
      %s18 = sphi 0, %s25
      %s19 = sphi 0, %s17
      %s20 = sphi 0, %s18
      %s21 = sphi 0, %s19
      %s22 = sphi 0, %s20
      %s34 = sphi 0, %s36
      %s37 = sphi 0, %s34
      %s38 = sphi 0, %s37
      %s54 = sphi 0, %s38
      %s64 = sphi 0, %s66
      %s67 = sphi 0, %s64
      %s68 = sphi 0, %s67
      %s84 = sphi 0, %s68
      %s88 = sphi 0, %s88
      %s90 = sphi 0, %s88
      %s91 = sphi 0, %s90
      %s105 = sphi 0, %s91
      %s109 = sphi 0, %s109
      %s111 = sphi 0, %s109
      %s112 = sphi 0, %s111
      %s126 = sphi 0, %s112
      %s134 = sphi 0, %s136
      %s137 = sphi 0, %s134
      %s138 = sphi 0, %s137
      %s154 = sphi 0, %s138
    $region4: #{detector_backbone_with_fpn_forward.7} parent=1 // loop_header_branch
      %13 = sbr.rel (%p11) target = $region8
    $region5: #{detector_backbone_with_fpn_forward.7} parent=1 // loop_body
      %s15 = ssub.s32 %s10, 1
      %s16 = ssub.s32 %s10, 2
      %s23 = sadd.s32 1, %s18
      %p24 = scmp.ge.s32.totalorder %s23, 1
      %s25 = scalar_select %p24, 0, %s23
      %s26 = sadd.s32 1, %s17
      %s27 = scalar_select %p24, %s26, %s17
      %p28 = scmp.ge.s32.totalorder %s27, 2
      %s29 = scalar_select %p28, 0, %s27
      %s30 = ssub.s32 %s17, %s29
      %s31 = ssub.s32 %s18, %s25
      %s32 = sor.u32 %s30, %s31
      %p33 = scmp.eq.s32.totalorder %s32, 0
      %s35 = sadd.s32 %s34, 1
      %s36 = scalar_select %p33, %s34, %s35
      %p39 = pneg %p33
      %p40 = scmp.eq.s32.totalorder %s10, 1
      %p41 = por %p39, %p40
      %p42 = scmp.ne.s32.totalorder %s34, %s37
      %p43 = scmp.eq.s32.totalorder %s10, 0
      %p44 = por %p42, %p43
      %p45 = scmp.ne.s32.totalorder %s34, %s37
      %p46 = scmp.eq.s32.totalorder %s15, 1
      %p47 = por %p45, %p46
      %p48 = scmp.ne.s32.totalorder %s37, %s38
      %p49 = scmp.eq.s32.totalorder %s15, 0
      %p50 = por %p48, %p49
      %p51 = scmp.ne.s32.totalorder %s37, %s38
      %p52 = scmp.eq.s32.totalorder %s16, 1
      %p53 = por %p51, %p52
      %p55 = scmp.ne.s32.totalorder %s38, %s54
      %p56 = scmp.eq.s32.totalorder %s16, 0
      %p57 = por %p55, %p56
      %s58 = sadd.s32 %s18, 1
      %s59 = sadd.s32 %s25, 1
      %s60 = ssub.s32 %s17, %s29
      %s61 = ssub.s32 %s58, %s59
      %s62 = sor.u32 %s60, %s61
      %p63 = scmp.eq.s32.totalorder %s62, 0
      %s65 = sadd.s32 %s64, 1
      %s66 = scalar_select %p63, %s64, %s65
      %p69 = pneg %p63
      %p70 = scmp.eq.s32.totalorder %s10, 1
      %p71 = por %p69, %p70
      %p72 = scmp.ne.s32.totalorder %s64, %s67
      %p73 = scmp.eq.s32.totalorder %s10, 0
      %p74 = por %p72, %p73
      %p75 = scmp.ne.s32.totalorder %s64, %s67
      %p76 = scmp.eq.s32.totalorder %s15, 1
      %p77 = por %p75, %p76
      %p78 = scmp.ne.s32.totalorder %s67, %s68
      %p79 = scmp.eq.s32.totalorder %s15, 0
      %p80 = por %p78, %p79
      %p81 = scmp.ne.s32.totalorder %s67, %s68
      %p82 = scmp.eq.s32.totalorder %s16, 1
      %p83 = por %p81, %p82
      %p85 = scmp.ne.s32.totalorder %s68, %s84
      %p86 = scmp.eq.s32.totalorder %s16, 0
      %p87 = por %p85, %p86
      %s89 = sadd.s32 %s88, 1
      %p92 = scmp.eq.s32.totalorder %s10, 1
      %p93 = scmp.ne.s32.totalorder %s88, %s90
      %p94 = scmp.eq.s32.totalorder %s10, 0
      %p95 = por %p93, %p94
      %p96 = scmp.ne.s32.totalorder %s88, %s90
      %p97 = scmp.eq.s32.totalorder %s15, 1
      %p98 = por %p96, %p97
      %p99 = scmp.ne.s32.totalorder %s90, %s91
      %p100 = scmp.eq.s32.totalorder %s15, 0
      %p101 = por %p99, %p100
      %p102 = scmp.ne.s32.totalorder %s90, %s91
      %p103 = scmp.eq.s32.totalorder %s16, 1
      %p104 = por %p102, %p103
      %p106 = scmp.ne.s32.totalorder %s91, %s105
      %p107 = scmp.eq.s32.totalorder %s16, 0
      %p108 = por %p106, %p107
      %s110 = sadd.s32 %s109, 1
      %p113 = scmp.eq.s32.totalorder %s10, 1
      %p114 = scmp.ne.s32.totalorder %s109, %s111
      %p115 = scmp.eq.s32.totalorder %s10, 0
      %p116 = por %p114, %p115
      %p117 = scmp.ne.s32.totalorder %s109, %s111
      %p118 = scmp.eq.s32.totalorder %s15, 1
      %p119 = por %p117, %p118
      %p120 = scmp.ne.s32.totalorder %s111, %s112
      %p121 = scmp.eq.s32.totalorder %s15, 0
      %p122 = por %p120, %p121
      %p123 = scmp.ne.s32.totalorder %s111, %s112
      %p124 = scmp.eq.s32.totalorder %s16, 1
      %p125 = por %p123, %p124
      %p127 = scmp.ne.s32.totalorder %s112, %s126
      %p128 = scmp.eq.s32.totalorder %s16, 0
      %p129 = por %p127, %p128
      %s130 = ssub.s32 %s17, %s29
      %s131 = ssub.s32 %s18, %s25
      %s132 = sor.u32 %s130, %s131
      %p133 = scmp.eq.s32.totalorder %s132, 0
      %s135 = sadd.s32 %s134, 1
      %s136 = scalar_select %p133, %s134, %s135
      %p139 = pneg %p133
      %p140 = scmp.eq.s32.totalorder %s10, 1
      %p141 = por %p139, %p140
      %p142 = scmp.ne.s32.totalorder %s134, %s137
      %p143 = scmp.eq.s32.totalorder %s10, 0
      %p144 = por %p142, %p143
      %p145 = scmp.ne.s32.totalorder %s134, %s137
      %p146 = scmp.eq.s32.totalorder %s15, 1
      %p147 = por %p145, %p146
      %p148 = scmp.ne.s32.totalorder %s137, %s138
      %p149 = scmp.eq.s32.totalorder %s15, 0
      %p150 = por %p148, %p149
      %p151 = scmp.ne.s32.totalorder %s137, %s138
      %p152 = scmp.eq.s32.totalorder %s16, 1
      %p153 = por %p151, %p152
      %p155 = scmp.ne.s32.totalorder %s138, %s154
      %p156 = scmp.eq.s32.totalorder %s16, 0
      %p157 = por %p155, %p156
      %p158 = scmp.le.s32.totalorder 1, %s10
      %p159 = scmp.lt.s32.totalorder %s10, 3
      %p160 = pnand %p158, %p159
      %p161 = pneg %p160
      // Predicated region
      $region9: #{detector_backbone_with_fpn_forward.7} parent=5 // pred_check
        _
      $region10: #{detector_backbone_with_fpn_forward.7} parent=5 // pred_check_branch
        %163 = sbr.rel (%p160) target = $region12
      $region11: #{detector_backbone_with_fpn_forward.7} parent=5 // pred_region
        %s164 = ssub.s32 %s10, 1
        // Predicated region
        $region13: #{detector_backbone_with_fpn_forward.7} parent=11 // pred_check
          %p165 = pneg %p101
        $region14: #{detector_backbone_with_fpn_forward.7} parent=11 // pred_check_branch
          %167 = sbr.rel (%p165) target = $region16
        $region15: #{detector_backbone_with_fpn_forward.7} parent=11 // pred_region
          _
        $region16: #{detector_backbone_with_fpn_forward.7} parent=11 // pred_fallthru
          _
        // Predicated region
        $region17: #{detector_backbone_with_fpn_forward.7} parent=11 // pred_check
          %p168 = pneg %p122
        $region18: #{detector_backbone_with_fpn_forward.7} parent=11 // pred_check_branch
          %170 = sbr.rel (%p168) target = $region20
        $region19: #{detector_backbone_with_fpn_forward.7} parent=11 // pred_region
          _
        $region20: #{detector_backbone_with_fpn_forward.7} parent=11 // pred_fallthru
          _
      $region12: #{detector_backbone_with_fpn_forward.7} parent=5 // pred_fallthru
        _
      %p171 = scmp.lt.s32.totalorder %s10, 2
      // Predicated region
      $region21: #{detector_backbone_with_fpn_forward.7} parent=5 // pred_check
        %p172 = pneg %p171
      $region22: #{detector_backbone_with_fpn_forward.7} parent=5 // pred_check_branch
        %174 = sbr.rel (%p172) target = $region24
      $region23: #{detector_backbone_with_fpn_forward.7} parent=5 // pred_region
        // Predicated region
        $region25: #{detector_backbone_with_fpn_forward.7} parent=23 // pred_check
          %p175 = pneg %p44
        $region26: #{detector_backbone_with_fpn_forward.7} parent=23 // pred_check_branch
          %177 = sbr.rel (%p175) target = $region28
        $region27: #{detector_backbone_with_fpn_forward.7} parent=23 // pred_region
          %s178 = sand.u32 %s34, 1
          %s179 = sand.u32 %s34, 1
          %s180 = smul.addr %s179, 64
          %s181 = scalar_lea.vmem [#allocation3], %s180
          %s182 = smul.addr %s17, 16
          %s183 = sadd.s32 %s18, %s182
          %s184 = smul.addr %s183, 8
          %s185 = scalar_lea.vmem %s0, %s184
          // Predicated region
          $region29: #{detector_backbone_with_fpn_forward.7} parent=27 // pred_check
            _
          $region30: #{detector_backbone_with_fpn_forward.7} parent=27 // pred_check_branch
            %187 = sbr.rel (0) target = $region32
          $region31: #{detector_backbone_with_fpn_forward.7} parent=27 // pred_region
            // Predicated region
            $region33: #{detector_backbone_with_fpn_forward.7} parent=31 // pred_check
              _
            $region34: #{detector_backbone_with_fpn_forward.7} parent=31 // pred_check_branch
              %189 = sbr.rel (0) target = $region36
            $region35: #{detector_backbone_with_fpn_forward.7} parent=31 // pred_region
              // Predicated region
              $region48: #{detector_backbone_with_fpn_forward.7} parent=35 // pred_check
                _
              $region49: #{detector_backbone_with_fpn_forward.7} parent=35 // pred_check_branch
                %218 = sbr.rel (0) target = $region51
              $region50: #{detector_backbone_with_fpn_forward.7} parent=35 // pred_region
                loop: start=0, step=1, limit=1
                $region52: #{detector_backbone_with_fpn_forward.7} parent=50 // loop_pre_header
                  _
                $region53: #{detector_backbone_with_fpn_forward.7} parent=50 // loop_header
                  %s220 = sphi 0, %s224
                  %p221 = scmp.ge.s32.totalorder %s220, 1
                  %s225 = sphi %s185, %s185
                  %s226 = sphi %s181, %s181
                $region54: #{detector_backbone_with_fpn_forward.7} parent=50 // loop_header_branch
                  %223 = sbr.rel (%p221) target = $region58
                $region55: #{detector_backbone_with_fpn_forward.7} parent=50 // loop_body
                  %v227 = vld [vmem:[%s225] sm:$0xff]
                  %228 = vst [vmem:[%s226] sm:$0xff] %v227
                  %v229 = vld [vmem:[%s225 + $0x10] sm:$0xff]
                  %230 = vst [vmem:[%s226 + $0x8] sm:$0xff] %v229
                  %v231 = vld [vmem:[%s225 + $0x20] sm:$0xff]
                  %232 = vst [vmem:[%s226 + $0x10] sm:$0xff] %v231
                  %v233 = vld [vmem:[%s225 + $0x30] sm:$0xff]
                  %234 = vst [vmem:[%s226 + $0x18] sm:$0xff] %v233
                  %v235 = vld [vmem:[%s225 + $0x40] sm:$0xff]
                  %236 = vst [vmem:[%s226 + $0x20] sm:$0xff] %v235
                  %v237 = vld [vmem:[%s225 + $0x50] sm:$0xff]
                  %238 = vst [vmem:[%s226 + $0x28] sm:$0xff] %v237
                  %v239 = vld [vmem:[%s225 + $0x60] sm:$0xff]
                  %240 = vst [vmem:[%s226 + $0x30] sm:$0xff] %v239
                  %v241 = vld [vmem:[%s225 + $0x70] sm:$0xff]
                  %242 = vst [vmem:[%s226 + $0x38] sm:$0xff] %v241
                $region56: #{detector_backbone_with_fpn_forward.7} parent=50 // loop_footer
                  %s224 = sadd.s32 1, %s220
                $region57: #{detector_backbone_with_fpn_forward.7} parent=50 // loop_footer_branch
                  %219 = sbr.rel target = $region53
                $region58: #{detector_backbone_with_fpn_forward.7} parent=50 // loop_exit
                  _
              $region51: #{detector_backbone_with_fpn_forward.7} parent=35 // pred_fallthru
                _
              // Predicated region
              $region59: #{detector_backbone_with_fpn_forward.7} parent=35 // pred_check
                _
              $region60: #{detector_backbone_with_fpn_forward.7} parent=35 // pred_check_branch
                %244 = sbr.rel target = $region62
              $region61: #{detector_backbone_with_fpn_forward.7} parent=35 // pred_region
                _
              $region62: #{detector_backbone_with_fpn_forward.7} parent=35 // pred_fallthru
                _
            $region36: #{detector_backbone_with_fpn_forward.7} parent=31 // pred_fallthru
              _
            // Predicated region
            $region37: #{detector_backbone_with_fpn_forward.7} parent=31 // pred_check
              _
            $region38: #{detector_backbone_with_fpn_forward.7} parent=31 // pred_check_branch
              %191 = sbr.rel target = $region40
            $region39: #{detector_backbone_with_fpn_forward.7} parent=31 // pred_region
              loop: start=0, step=1, limit=1
              $region41: #{detector_backbone_with_fpn_forward.7} parent=39 // loop_pre_header
                _
              $region42: #{detector_backbone_with_fpn_forward.7} parent=39 // loop_header
                %s194 = sphi 0, %s198
                %p195 = scmp.ge.s32.totalorder %s194, 1
                %s199 = sphi %s185, %s185
                %s200 = sphi %s181, %s181
              $region43: #{detector_backbone_with_fpn_forward.7} parent=39 // loop_header_branch
                %197 = sbr.rel (%p195) target = $region47
              $region44: #{detector_backbone_with_fpn_forward.7} parent=39 // loop_body
                %v201 = vld [vmem:[%s199] sm:$0xff]
                %202 = vst [vmem:[%s200] sm:$0xff] %v201
                %v203 = vld [vmem:[%s199 + $0x10] sm:$0xff]
                %204 = vst [vmem:[%s200 + $0x8] sm:$0xff] %v203
                %v205 = vld [vmem:[%s199 + $0x20] sm:$0xff]
                %206 = vst [vmem:[%s200 + $0x10] sm:$0xff] %v205
                %v207 = vld [vmem:[%s199 + $0x30] sm:$0xff]
                %208 = vst [vmem:[%s200 + $0x18] sm:$0xff] %v207
                %v209 = vld [vmem:[%s199 + $0x40] sm:$0xff]
                %210 = vst [vmem:[%s200 + $0x20] sm:$0xff] %v209
                %v211 = vld [vmem:[%s199 + $0x50] sm:$0xff]
                %212 = vst [vmem:[%s200 + $0x28] sm:$0xff] %v211
                %v213 = vld [vmem:[%s199 + $0x60] sm:$0xff]
                %214 = vst [vmem:[%s200 + $0x30] sm:$0xff] %v213
                %v215 = vld [vmem:[%s199 + $0x70] sm:$0xff]
                %216 = vst [vmem:[%s200 + $0x38] sm:$0xff] %v215
              $region45: #{detector_backbone_with_fpn_forward.7} parent=39 // loop_footer
                %s198 = sadd.s32 1, %s194
              $region46: #{detector_backbone_with_fpn_forward.7} parent=39 // loop_footer_branch
                %193 = sbr.rel target = $region42
              $region47: #{detector_backbone_with_fpn_forward.7} parent=39 // loop_exit
                _
            $region40: #{detector_backbone_with_fpn_forward.7} parent=31 // pred_fallthru
              _
          $region32: #{detector_backbone_with_fpn_forward.7} parent=27 // pred_fallthru
            _
          %245 = vnop
        $region28: #{detector_backbone_with_fpn_forward.7} parent=23 // pred_fallthru
          _
        // Predicated region
        $region63: #{detector_backbone_with_fpn_forward.7} parent=23 // pred_check
          %p246 = pneg %p74
        $region64: #{detector_backbone_with_fpn_forward.7} parent=23 // pred_check_branch
          %248 = sbr.rel (%p246) target = $region66
        $region65: #{detector_backbone_with_fpn_forward.7} parent=23 // pred_region
          %s249 = sand.u32 %s64, 1
          %s250 = sand.u32 %s64, 1
          %s251 = smul.addr %s250, 64
          %s252 = scalar_lea.vmem [#allocation4], %s251
          %s253 = sadd.s32 %s18, 1
          %s254 = smul.addr %s17, 16
          %s255 = sadd.s32 %s253, %s254
          %s256 = smul.addr %s255, 8
          %s257 = scalar_lea.vmem %s1, %s256
          // Predicated region
          $region67: #{detector_backbone_with_fpn_forward.7} parent=65 // pred_check
            _
          $region68: #{detector_backbone_with_fpn_forward.7} parent=65 // pred_check_branch
            %259 = sbr.rel (0) target = $region70
          $region69: #{detector_backbone_with_fpn_forward.7} parent=65 // pred_region
            // Predicated region
            $region71: #{detector_backbone_with_fpn_forward.7} parent=69 // pred_check
              _
            $region72: #{detector_backbone_with_fpn_forward.7} parent=69 // pred_check_branch
              %261 = sbr.rel (0) target = $region74
            $region73: #{detector_backbone_with_fpn_forward.7} parent=69 // pred_region
              // Predicated region
              $region86: #{detector_backbone_with_fpn_forward.7} parent=73 // pred_check
                _
              $region87: #{detector_backbone_with_fpn_forward.7} parent=73 // pred_check_branch
                %290 = sbr.rel (0) target = $region89
              $region88: #{detector_backbone_with_fpn_forward.7} parent=73 // pred_region
                loop: start=0, step=1, limit=1
                $region90: #{detector_backbone_with_fpn_forward.7} parent=88 // loop_pre_header
                  _
                $region91: #{detector_backbone_with_fpn_forward.7} parent=88 // loop_header
                  %s292 = sphi 0, %s296
                  %p293 = scmp.ge.s32.totalorder %s292, 1
                  %s297 = sphi %s257, %s257
                  %s298 = sphi %s252, %s252
                $region92: #{detector_backbone_with_fpn_forward.7} parent=88 // loop_header_branch
                  %295 = sbr.rel (%p293) target = $region96
                $region93: #{detector_backbone_with_fpn_forward.7} parent=88 // loop_body
                  %v299 = vld [vmem:[%s297] sm:$0xff]
                  %300 = vst [vmem:[%s298] sm:$0xff] %v299
                  %v301 = vld [vmem:[%s297 + $0x10] sm:$0xff]
                  %302 = vst [vmem:[%s298 + $0x8] sm:$0xff] %v301
                  %v303 = vld [vmem:[%s297 + $0x20] sm:$0xff]
                  %304 = vst [vmem:[%s298 + $0x10] sm:$0xff] %v303
                  %v305 = vld [vmem:[%s297 + $0x30] sm:$0xff]
                  %306 = vst [vmem:[%s298 + $0x18] sm:$0xff] %v305
                  %v307 = vld [vmem:[%s297 + $0x40] sm:$0xff]
                  %308 = vst [vmem:[%s298 + $0x20] sm:$0xff] %v307
                  %v309 = vld [vmem:[%s297 + $0x50] sm:$0xff]
                  %310 = vst [vmem:[%s298 + $0x28] sm:$0xff] %v309
                  %v311 = vld [vmem:[%s297 + $0x60] sm:$0xff]
                  %312 = vst [vmem:[%s298 + $0x30] sm:$0xff] %v311
                  %v313 = vld [vmem:[%s297 + $0x70] sm:$0xff]
                  %314 = vst [vmem:[%s298 + $0x38] sm:$0xff] %v313
                $region94: #{detector_backbone_with_fpn_forward.7} parent=88 // loop_footer
                  %s296 = sadd.s32 1, %s292
                $region95: #{detector_backbone_with_fpn_forward.7} parent=88 // loop_footer_branch
                  %291 = sbr.rel target = $region91
                $region96: #{detector_backbone_with_fpn_forward.7} parent=88 // loop_exit
                  _
              $region89: #{detector_backbone_with_fpn_forward.7} parent=73 // pred_fallthru
                _
              // Predicated region
              $region97: #{detector_backbone_with_fpn_forward.7} parent=73 // pred_check
                _
              $region98: #{detector_backbone_with_fpn_forward.7} parent=73 // pred_check_branch
                %316 = sbr.rel target = $region100
              $region99: #{detector_backbone_with_fpn_forward.7} parent=73 // pred_region
                _
              $region100: #{detector_backbone_with_fpn_forward.7} parent=73 // pred_fallthru
                _
            $region74: #{detector_backbone_with_fpn_forward.7} parent=69 // pred_fallthru
              _
            // Predicated region
            $region75: #{detector_backbone_with_fpn_forward.7} parent=69 // pred_check
              _
            $region76: #{detector_backbone_with_fpn_forward.7} parent=69 // pred_check_branch
              %263 = sbr.rel target = $region78
            $region77: #{detector_backbone_with_fpn_forward.7} parent=69 // pred_region
              loop: start=0, step=1, limit=1
              $region79: #{detector_backbone_with_fpn_forward.7} parent=77 // loop_pre_header
                _
              $region80: #{detector_backbone_with_fpn_forward.7} parent=77 // loop_header
                %s266 = sphi 0, %s270
                %p267 = scmp.ge.s32.totalorder %s266, 1
                %s271 = sphi %s257, %s257
                %s272 = sphi %s252, %s252
              $region81: #{detector_backbone_with_fpn_forward.7} parent=77 // loop_header_branch
                %269 = sbr.rel (%p267) target = $region85
              $region82: #{detector_backbone_with_fpn_forward.7} parent=77 // loop_body
                %v273 = vld [vmem:[%s271] sm:$0xff]
                %274 = vst [vmem:[%s272] sm:$0xff] %v273
                %v275 = vld [vmem:[%s271 + $0x10] sm:$0xff]
                %276 = vst [vmem:[%s272 + $0x8] sm:$0xff] %v275
                %v277 = vld [vmem:[%s271 + $0x20] sm:$0xff]
                %278 = vst [vmem:[%s272 + $0x10] sm:$0xff] %v277
                %v279 = vld [vmem:[%s271 + $0x30] sm:$0xff]
                %280 = vst [vmem:[%s272 + $0x18] sm:$0xff] %v279
                %v281 = vld [vmem:[%s271 + $0x40] sm:$0xff]
                %282 = vst [vmem:[%s272 + $0x20] sm:$0xff] %v281
                %v283 = vld [vmem:[%s271 + $0x50] sm:$0xff]
                %284 = vst [vmem:[%s272 + $0x28] sm:$0xff] %v283
                %v285 = vld [vmem:[%s271 + $0x60] sm:$0xff]
                %286 = vst [vmem:[%s272 + $0x30] sm:$0xff] %v285
                %v287 = vld [vmem:[%s271 + $0x70] sm:$0xff]
                %288 = vst [vmem:[%s272 + $0x38] sm:$0xff] %v287
              $region83: #{detector_backbone_with_fpn_forward.7} parent=77 // loop_footer
                %s270 = sadd.s32 1, %s266
              $region84: #{detector_backbone_with_fpn_forward.7} parent=77 // loop_footer_branch
                %265 = sbr.rel target = $region80
              $region85: #{detector_backbone_with_fpn_forward.7} parent=77 // loop_exit
                _
            $region78: #{detector_backbone_with_fpn_forward.7} parent=69 // pred_fallthru
              _
          $region70: #{detector_backbone_with_fpn_forward.7} parent=65 // pred_fallthru
            _
          %317 = vnop
        $region66: #{detector_backbone_with_fpn_forward.7} parent=23 // pred_fallthru
          _
      $region24: #{detector_backbone_with_fpn_forward.7} parent=5 // pred_fallthru
        _
      %p318 = scmp.le.s32.totalorder 1, %s10
      %p319 = scmp.lt.s32.totalorder %s10, 3
      %p320 = pnand %p318, %p319
      %p321 = pneg %p320
      // Predicated region
      $region101: #{detector_backbone_with_fpn_forward.7} parent=5 // pred_check
        _
      $region102: #{detector_backbone_with_fpn_forward.7} parent=5 // pred_check_branch
        %323 = sbr.rel (%p320) target = $region104
      $region103: #{detector_backbone_with_fpn_forward.7} parent=5 // pred_region
        %s324 = ssub.s32 %s10, 1
        %s325 = sand.u32 %s37, 1
        %s326 = sand.u32 %s37, 1
        %s327 = smul.addr %s326, 64
        %s328 = scalar_lea.vmem [#allocation3], %s327
        // Predicated region
        $region105: #{detector_backbone_with_fpn_forward.7} parent=103 // pred_check
          %p329 = pneg %p50
        $region106: #{detector_backbone_with_fpn_forward.7} parent=103 // pred_check_branch
          %331 = sbr.rel (%p329) target = $region108
        $region107: #{detector_backbone_with_fpn_forward.7} parent=103 // pred_region
          _
        $region108: #{detector_backbone_with_fpn_forward.7} parent=103 // pred_fallthru
          _
        %s332 = sand.u32 %s67, 1
        %s333 = sand.u32 %s67, 1
        %s334 = smul.addr %s333, 64
        %s335 = scalar_lea.vmem [#allocation4], %s334
        // Predicated region
        $region109: #{detector_backbone_with_fpn_forward.7} parent=103 // pred_check
          %p336 = pneg %p80
        $region110: #{detector_backbone_with_fpn_forward.7} parent=103 // pred_check_branch
          %338 = sbr.rel (%p336) target = $region112
        $region111: #{detector_backbone_with_fpn_forward.7} parent=103 // pred_region
          _
        $region112: #{detector_backbone_with_fpn_forward.7} parent=103 // pred_fallthru
          _
        %s339 = sand.u32 %s37, 1
        %s340 = sand.u32 %s37, 1
        %s341 = smul.addr %s340, 64
        %s342 = scalar_lea.vmem [#allocation3], %s341
        %p343 = pneg %p50
        %p344 = pneg %p47
        %s345 = sand.u32 %s67, 1
        %s346 = sand.u32 %s67, 1
        %s347 = smul.addr %s346, 64
        %s348 = scalar_lea.vmem [#allocation4], %s347
        %p349 = pneg %p80
        %p350 = pneg %p77
        %p351 = pneg %p101
        %p352 = pneg %p98
        %p353 = pneg %p122
        %p354 = pneg %p119
        %p355 = pneg %p150
        %p356 = pneg %p147
        %p357 = scmp.lt.s32.totalorder %s19, 1
        %s358 = scalar_select %p357, %s19, 1
        %p359 = scmp.lt.s32.totalorder %s20, 0
        %s360 = scalar_select %p359, %s20, 0
        %s361 = smul.addr %s358, 8
        %s362 = sadd.s32 %s360, %s361
        %s363 = smul.addr %s362, 8
        %s364 = scalar_lea.vmem %s4, %s363
        %s365 = sadd.s32 %s20, 1
        %p366 = scmp.lt.s32.totalorder %s19, 1
        %s367 = scalar_select %p366, %s19, 1
        %p368 = scmp.lt.s32.totalorder %s20, 0
        %s369 = scalar_select %p368, %s20, 0
        %s370 = smul.addr %s367, 8
        %s371 = sadd.s32 %s369, %s370
        %s372 = smul.addr %s371, 8
        %s373 = scalar_lea.vmem %s4, %s372
        %v375 = vld [vmem:[%s328] sm:$0xff]
        %v376 = vld [vmem:[%s328 + $0x8] sm:$0xff]
        %v377 = vld [vmem:[%s328 + $0x10] sm:$0xff]
        %v378 = vld [vmem:[%s328 + $0x18] sm:$0xff]
        %v379 = vld [vmem:[%s328 + $0x20] sm:$0xff]
        %v380 = vld [vmem:[%s328 + $0x28] sm:$0xff]
        %v381 = vld [vmem:[%s328 + $0x30] sm:$0xff]
        %v382 = vld [vmem:[%s328 + $0x38] sm:$0xff]
        %v383 = vld [vmem:[%s335] sm:$0xff]
        %v384 = vld [vmem:[%s335 + $0x8] sm:$0xff]
        %v385 = vld [vmem:[%s335 + $0x10] sm:$0xff]
        %v386 = vld [vmem:[%s335 + $0x18] sm:$0xff]
        %v387 = vld [vmem:[%s335 + $0x20] sm:$0xff]
        %v388 = vld [vmem:[%s335 + $0x28] sm:$0xff]
        %v389 = vld [vmem:[%s335 + $0x30] sm:$0xff]
        %v390 = vld [vmem:[%s335 + $0x38] sm:$0xff]
        %v391 = vpack.c.bf16 %v376, %v375
        %v392 = vpack.c.bf16 %v384, %v383
        %v393 = vpack.c.bf16 %v378, %v377
        %v394 = vpack.c.bf16 %v386, %v385
        %v395 = vpack.c.bf16 %v380, %v379
        %v396 = vpack.c.bf16 %v388, %v387
        %v397 = vpack.c.bf16 %v382, %v381
        %v398 = vpack.c.bf16 %v390, %v389
        %399 = vst [vmem:[#allocation2] sm:$0xff] %v391
        %400 = vst [vmem:[#allocation2 + $0x8] sm:$0xff] %v393
        %401 = vst [vmem:[#allocation2 + $0x10] sm:$0xff] %v395
        %402 = vst [vmem:[#allocation2 + $0x18] sm:$0xff] %v397
        %411 = vrot.lane.b32.xlu0 %v391, 127
        %v412 = vpop.permute.xlu0 %411
        %413 = vrot.lane.b32.xlu0 %v392, 127
        %v414 = vpop.permute.xlu0 %413
        %415 = vrot.lane.b32.xlu0 %v393, 127
        %v416 = vpop.permute.xlu0 %415
        %417 = vrot.lane.b32.xlu0 %v394, 127
        %v418 = vpop.permute.xlu0 %417
        %419 = vrot.lane.b32.xlu0 %v395, 127
        %v420 = vpop.permute.xlu0 %419
        %421 = vrot.lane.b32.xlu0 %v396, 127
        %v422 = vpop.permute.xlu0 %421
        %423 = vrot.lane.b32.xlu0 %v397, 127
        %v424 = vpop.permute.xlu0 %423
        %425 = vrot.lane.b32.xlu0 %v398, 127
        %v426 = vpop.permute.xlu0 %425
        %vm427 = vcmask 1039360
        %v428 = vsel %vm427, %v412, %v414
        %v429 = vsel %vm427, %v416, %v418
        %v430 = vsel %vm427, %v420, %v422
        %v431 = vsel %vm427, %v424, %v426
        %436 = vst [vmem:[#allocation2 + $0x20] sm:$0xff] %v428
        %437 = vst [vmem:[#allocation2 + $0x28] sm:$0xff] %v429
        %438 = vst [vmem:[#allocation2 + $0x30] sm:$0xff] %v430
        %439 = vst [vmem:[#allocation2 + $0x38] sm:$0xff] %v431
        %440 = vrot.lane.b32.xlu0 %v391, 126
        %v441 = vpop.permute.xlu0 %440
        %442 = vrot.lane.b32.xlu0 %v392, 126
        %v443 = vpop.permute.xlu0 %442
        %444 = vrot.lane.b32.xlu0 %v393, 126
        %v445 = vpop.permute.xlu0 %444
        %446 = vrot.lane.b32.xlu0 %v394, 126
        %v447 = vpop.permute.xlu0 %446
        %448 = vrot.lane.b32.xlu0 %v395, 126
        %v449 = vpop.permute.xlu0 %448
        %450 = vrot.lane.b32.xlu0 %v396, 126
        %v451 = vpop.permute.xlu0 %450
        %452 = vrot.lane.b32.xlu0 %v397, 126
        %v453 = vpop.permute.xlu0 %452
        %454 = vrot.lane.b32.xlu0 %v398, 126
        %v455 = vpop.permute.xlu0 %454
        %vm456 = vcmask 1031168
        %v457 = vsel %vm456, %v441, %v443
        %v458 = vsel %vm456, %v445, %v447
        %v459 = vsel %vm456, %v449, %v451
        %v460 = vsel %vm456, %v453, %v455
        %465 = vst [vmem:[#allocation2 + $0x40] sm:$0xff] %v457
        %466 = vst [vmem:[#allocation2 + $0x48] sm:$0xff] %v458
        %467 = vst [vmem:[#allocation2 + $0x50] sm:$0xff] %v459
        %468 = vst [vmem:[#allocation2 + $0x58] sm:$0xff] %v460
        %469 = vrot.lane.b32.xlu0 %v391, 124
        %v470 = vpop.permute.xlu0 %469
        %471 = vrot.lane.b32.xlu0 %v392, 124
        %v472 = vpop.permute.xlu0 %471
        %473 = vrot.lane.b32.xlu0 %v393, 124
        %v474 = vpop.permute.xlu0 %473
        %475 = vrot.lane.b32.xlu0 %v394, 124
        %v476 = vpop.permute.xlu0 %475
        %477 = vrot.lane.b32.xlu0 %v395, 124
        %v478 = vpop.permute.xlu0 %477
        %479 = vrot.lane.b32.xlu0 %v396, 124
        %v480 = vpop.permute.xlu0 %479
        %481 = vrot.lane.b32.xlu0 %v397, 124
        %v482 = vpop.permute.xlu0 %481
        %483 = vrot.lane.b32.xlu0 %v398, 124
        %v484 = vpop.permute.xlu0 %483
        %vm485 = vcmask 1014784
        %v486 = vsel %vm485, %v470, %v472
        %v487 = vsel %vm485, %v474, %v476
        %v488 = vsel %vm485, %v478, %v480
        %v489 = vsel %vm485, %v482, %v484
        %494 = vst [vmem:[#allocation2 + $0x60] sm:$0xff] %v486
        %495 = vst [vmem:[#allocation2 + $0x68] sm:$0xff] %v487
        %496 = vst [vmem:[#allocation2 + $0x70] sm:$0xff] %v488
        %497 = vst [vmem:[#allocation2 + $0x78] sm:$0xff] %v489
        %498 = vrot.lane.b32.xlu0 %v391, 123
        %v499 = vpop.permute.xlu0 %498
        %500 = vrot.lane.b32.xlu0 %v392, 123
        %v501 = vpop.permute.xlu0 %500
        %502 = vrot.lane.b32.xlu0 %v393, 123
        %v503 = vpop.permute.xlu0 %502
        %504 = vrot.lane.b32.xlu0 %v394, 123
        %v505 = vpop.permute.xlu0 %504
        %506 = vrot.lane.b32.xlu0 %v395, 123
        %v507 = vpop.permute.xlu0 %506
        %508 = vrot.lane.b32.xlu0 %v396, 123
        %v509 = vpop.permute.xlu0 %508
        %510 = vrot.lane.b32.xlu0 %v397, 123
        %v511 = vpop.permute.xlu0 %510
        %512 = vrot.lane.b32.xlu0 %v398, 123
        %v513 = vpop.permute.xlu0 %512
        %vm514 = vcmask 1006592
        %v515 = vsel %vm514, %v499, %v501
        %v516 = vsel %vm514, %v503, %v505
        %v517 = vsel %vm514, %v507, %v509
        %v518 = vsel %vm514, %v511, %v513
        %523 = vst [vmem:[#allocation2 + $0x80] sm:$0xff] %v515
        %524 = vst [vmem:[#allocation2 + $0x88] sm:$0xff] %v516
        %525 = vst [vmem:[#allocation2 + $0x90] sm:$0xff] %v517
        %526 = vst [vmem:[#allocation2 + $0x98] sm:$0xff] %v518
        %527 = vrot.lane.b32.xlu0 %v391, 122
        %v528 = vpop.permute.xlu0 %527
        %529 = vrot.lane.b32.xlu0 %v392, 122
        %v530 = vpop.permute.xlu0 %529
        %531 = vrot.lane.b32.xlu0 %v393, 122
        %v532 = vpop.permute.xlu0 %531
        %533 = vrot.lane.b32.xlu0 %v394, 122
        %v534 = vpop.permute.xlu0 %533
        %535 = vrot.lane.b32.xlu0 %v395, 122
        %v536 = vpop.permute.xlu0 %535
        %537 = vrot.lane.b32.xlu0 %v396, 122
        %v538 = vpop.permute.xlu0 %537
        %539 = vrot.lane.b32.xlu0 %v397, 122
        %v540 = vpop.permute.xlu0 %539
        %541 = vrot.lane.b32.xlu0 %v398, 122
        %v542 = vpop.permute.xlu0 %541
        %vm543 = vcmask 998400
        %v544 = vsel %vm543, %v528, %v530
        %v545 = vsel %vm543, %v532, %v534
        %v546 = vsel %vm543, %v536, %v538
        %v547 = vsel %vm543, %v540, %v542
        %552 = vst [vmem:[#allocation2 + $0xa0] sm:$0xff] %v544
        %553 = vst [vmem:[#allocation2 + $0xa8] sm:$0xff] %v545
        %554 = vst [vmem:[#allocation2 + $0xb0] sm:$0xff] %v546
        %555 = vst [vmem:[#allocation2 + $0xb8] sm:$0xff] %v547
        %556 = vrot.lane.b32.xlu0 %v391, 120
        %v557 = vpop.permute.xlu0 %556
        %558 = vrot.lane.b32.xlu0 %v392, 120
        %v559 = vpop.permute.xlu0 %558
        %560 = vrot.lane.b32.xlu0 %v393, 120
        %v561 = vpop.permute.xlu0 %560
        %562 = vrot.lane.b32.xlu0 %v394, 120
        %v563 = vpop.permute.xlu0 %562
        %564 = vrot.lane.b32.xlu0 %v395, 120
        %v565 = vpop.permute.xlu0 %564
        %566 = vrot.lane.b32.xlu0 %v396, 120
        %v567 = vpop.permute.xlu0 %566
        %568 = vrot.lane.b32.xlu0 %v397, 120
        %v569 = vpop.permute.xlu0 %568
        %570 = vrot.lane.b32.xlu0 %v398, 120
        %v571 = vpop.permute.xlu0 %570
        %vm572 = vcmask 982016
        %v573 = vsel %vm572, %v557, %v559
        %v574 = vsel %vm572, %v561, %v563
        %v575 = vsel %vm572, %v565, %v567
        %v576 = vsel %vm572, %v569, %v571
        %581 = vst [vmem:[#allocation2 + $0xc0] sm:$0xff] %v573
        %582 = vst [vmem:[#allocation2 + $0xc8] sm:$0xff] %v574
        %583 = vst [vmem:[#allocation2 + $0xd0] sm:$0xff] %v575
        %584 = vst [vmem:[#allocation2 + $0xd8] sm:$0xff] %v576
        %585 = vrot.lane.b32.xlu0 %v391, 119
        %v586 = vpop.permute.xlu0 %585
        %587 = vrot.lane.b32.xlu0 %v392, 119
        %v588 = vpop.permute.xlu0 %587
        %589 = vrot.lane.b32.xlu0 %v393, 119
        %v590 = vpop.permute.xlu0 %589
        %591 = vrot.lane.b32.xlu0 %v394, 119
        %v592 = vpop.permute.xlu0 %591
        %593 = vrot.lane.b32.xlu0 %v395, 119
        %v594 = vpop.permute.xlu0 %593
        %595 = vrot.lane.b32.xlu0 %v396, 119
        %v596 = vpop.permute.xlu0 %595
        %597 = vrot.lane.b32.xlu0 %v397, 119
        %v598 = vpop.permute.xlu0 %597
        %599 = vrot.lane.b32.xlu0 %v398, 119
        %v600 = vpop.permute.xlu0 %599
        %vm601 = vcmask 973824
        %v602 = vsel %vm601, %v586, %v588
        %v603 = vsel %vm601, %v590, %v592
        %v604 = vsel %vm601, %v594, %v596
        %v605 = vsel %vm601, %v598, %v600
        %610 = vst [vmem:[#allocation2 + $0xe0] sm:$0xff] %v602
        %611 = vst [vmem:[#allocation2 + $0xe8] sm:$0xff] %v603
        %612 = vst [vmem:[#allocation2 + $0xf0] sm:$0xff] %v604
        %613 = vst [vmem:[#allocation2 + $0xf8] sm:$0xff] %v605
        %614 = vrot.lane.b32.xlu0 %v391, 118
        %v615 = vpop.permute.xlu0 %614
        %616 = vrot.lane.b32.xlu0 %v392, 118
        %v617 = vpop.permute.xlu0 %616
        %618 = vrot.lane.b32.xlu0 %v393, 118
        %v619 = vpop.permute.xlu0 %618
        %620 = vrot.lane.b32.xlu0 %v394, 118
        %v621 = vpop.permute.xlu0 %620
        %622 = vrot.lane.b32.xlu0 %v395, 118
        %v623 = vpop.permute.xlu0 %622
        %624 = vrot.lane.b32.xlu0 %v396, 118
        %v625 = vpop.permute.xlu0 %624
        %626 = vrot.lane.b32.xlu0 %v397, 118
        %v627 = vpop.permute.xlu0 %626
        %628 = vrot.lane.b32.xlu0 %v398, 118
        %v629 = vpop.permute.xlu0 %628
        %vm630 = vcmask 965632
        %v631 = vsel %vm630, %v615, %v617
        %v632 = vsel %vm630, %v619, %v621
        %v633 = vsel %vm630, %v623, %v625
        %v634 = vsel %vm630, %v627, %v629
        %639 = vst [vmem:[#allocation2 + $0x100] sm:$0xff] %v631
        %640 = vst [vmem:[#allocation2 + $0x108] sm:$0xff] %v632
        %641 = vst [vmem:[#allocation2 + $0x110] sm:$0xff] %v633
        %642 = vst [vmem:[#allocation2 + $0x118] sm:$0xff] %v634
        %v643 = vld [vmem:[%s2] sm:$0xff]
        %v644 = vld [vmem:[%s2 + $0x8] sm:$0xff]
        %v645 = vld [vmem:[%s2 + $0x10] sm:$0xf]
        %v646 = vld [vmem:[%s2 + $0x14] sm:$0xff]
        %v647 = vld [vmem:[%s2 + $0x1c] sm:$0xff]
        %v648 = vld [vmem:[%s2 + $0x24] sm:$0xf]
        %v649 = vld [vmem:[%s2 + $0x28] sm:$0xff]
        %v650 = vld [vmem:[%s2 + $0x30] sm:$0xff]
        %v651 = vld [vmem:[%s2 + $0x38] sm:$0xf]
        %v652 = vld [vmem:[%s2 + $0x3c] sm:$0xff]
        %v653 = vld [vmem:[%s2 + $0x44] sm:$0xff]
        %v654 = vld [vmem:[%s2 + $0x4c] sm:$0xf]
        %v655 = vld [vmem:[%s2 + $0x50] sm:$0xff]
        %v656 = vld [vmem:[%s2 + $0x58] sm:$0xff]
        %v657 = vld [vmem:[%s2 + $0x60] sm:$0xf]
        %v658 = vld [vmem:[%s2 + $0x64] sm:$0xff]
        %v659 = vld [vmem:[%s2 + $0x6c] sm:$0xff]
        %v660 = vld [vmem:[%s2 + $0x74] sm:$0xf]
        %v661 = vld [vmem:[%s2 + $0x78] sm:$0xff]
        %v662 = vld [vmem:[%s2 + $0x80] sm:$0xff]
        %v663 = vld [vmem:[%s2 + $0x88] sm:$0xf]
        %v664 = vld [vmem:[%s2 + $0x8c] sm:$0xff]
        %v665 = vld [vmem:[%s2 + $0x94] sm:$0xff]
        %v666 = vld [vmem:[%s2 + $0x9c] sm:$0xf]
        %v667 = vld [vmem:[#allocation2] sm:$0xff]
        %v668 = vld [vmem:[#allocation2 + $0x8] sm:$0xff]
        %v669 = vld [vmem:[#allocation2 + $0x10] sm:$0xff]
        %v670 = vld [vmem:[#allocation2 + $0x18] sm:$0xff]
        %v671 = vld [vmem:[#allocation2 + $0x20] sm:$0xff]
        %v672 = vld [vmem:[#allocation2 + $0x28] sm:$0xff]
        %v673 = vld [vmem:[#allocation2 + $0x30] sm:$0xff]
        %v674 = vld [vmem:[#allocation2 + $0x38] sm:$0xff]
        %v675 = vld [vmem:[#allocation2 + $0x40] sm:$0xff]
        %v676 = vld [vmem:[#allocation2 + $0x48] sm:$0xff]
        %v677 = vld [vmem:[#allocation2 + $0x50] sm:$0xff]
        %v678 = vld [vmem:[#allocation2 + $0x58] sm:$0xff]
        %v679 = vld [vmem:[#allocation2 + $0x60] sm:$0xff]
        %v680 = vld [vmem:[#allocation2 + $0x68] sm:$0xff]
        %v681 = vld [vmem:[#allocation2 + $0x70] sm:$0xff]
        %v682 = vld [vmem:[#allocation2 + $0x78] sm:$0xff]
        %v683 = vld [vmem:[#allocation2 + $0x80] sm:$0xff]
        %v684 = vld [vmem:[#allocation2 + $0x88] sm:$0xff]
        %v685 = vld [vmem:[#allocation2 + $0x90] sm:$0xff]
        %v686 = vld [vmem:[#allocation2 + $0x98] sm:$0xff]
        %v687 = vld [vmem:[#allocation2 + $0xa0] sm:$0xff]
        %v688 = vld [vmem:[#allocation2 + $0xa8] sm:$0xff]
        %v689 = vld [vmem:[#allocation2 + $0xb0] sm:$0xff]
        %v690 = vld [vmem:[#allocation2 + $0xb8] sm:$0xff]
        %v691 = vld [vmem:[#allocation2 + $0xc0] sm:$0xff]
        %v692 = vld [vmem:[#allocation2 + $0xc8] sm:$0xff]
        %v693 = vld [vmem:[#allocation2 + $0xd0] sm:$0xff]
        %v694 = vld [vmem:[#allocation2 + $0xd8] sm:$0xff]
        %v695 = vld [vmem:[#allocation2 + $0xe0] sm:$0xff]
        %v696 = vld [vmem:[#allocation2 + $0xe8] sm:$0xff]
        %v697 = vld [vmem:[#allocation2 + $0xf0] sm:$0xff]
        %v698 = vld [vmem:[#allocation2 + $0xf8] sm:$0xff]
        %v699 = vld [vmem:[#allocation2 + $0x100] sm:$0xff]
        %v700 = vld [vmem:[#allocation2 + $0x108] sm:$0xff]
        %v701 = vld [vmem:[#allocation2 + $0x110] sm:$0xff]
        %v702 = vld [vmem:[#allocation2 + $0x118] sm:$0xff]
        %v703 = vld [vmem:[%s3] sm:$0xff]
        %v704 = vld [vmem:[%s3 + $0x8] sm:$0xff]
        %v705 = vld [vmem:[%s3 + $0x10] sm:$0xff]
        %v706 = vld [vmem:[%s3 + $0x18] sm:$0xff]
        %v707 = vld [vmem:[%s3 + $0x20] sm:$0xff]
        %v708 = vld [vmem:[%s3 + $0x28] sm:$0xff]
        %v709 = vld [vmem:[%s3 + $0x30] sm:$0xff]
        %v710 = vld [vmem:[%s3 + $0x38] sm:$0xff]
        %712 = vset.pattern.permute.xlu0 0
        %713 = vperm.xlu0 %712, %v703
        %v714 = vpop.permute.xlu0 %713
        %717 = vset.pattern.permute.xlu0 0
        %718 = vperm.xlu0 %717, %v704
        %v719 = vpop.permute.xlu0 %718
        %722 = vset.pattern.permute.xlu0 0
        %723 = vperm.xlu0 %722, %v705
        %v724 = vpop.permute.xlu0 %723
        %727 = vset.pattern.permute.xlu0 0
        %728 = vperm.xlu0 %727, %v706
        %v729 = vpop.permute.xlu0 %728
        %732 = vset.pattern.permute.xlu0 0
        %733 = vperm.xlu0 %732, %v707
        %v734 = vpop.permute.xlu0 %733
        %737 = vset.pattern.permute.xlu0 0
        %738 = vperm.xlu0 %737, %v708
        %v739 = vpop.permute.xlu0 %738
        %742 = vset.pattern.permute.xlu0 0
        %743 = vperm.xlu0 %742, %v709
        %v744 = vpop.permute.xlu0 %743
        %747 = vset.pattern.permute.xlu0 0
        %748 = vperm.xlu0 %747, %v710
        %v749 = vpop.permute.xlu0 %748
        %v775 = vunpack.c.l.b16 %v643
        %v776 = vunpack.c.h.b16 %v643
        %v777 = vunpack.c.l.b16 %v644
        %v778 = vunpack.c.h.b16 %v644
        %v779 = vunpack.c.l.b16 %v645
        %v780 = vunpack.c.l.b16 %v646
        %v781 = vunpack.c.h.b16 %v646
        %v782 = vunpack.c.l.b16 %v647
        %v783 = vunpack.c.h.b16 %v647
        %v784 = vunpack.c.l.b16 %v648
        %v785 = vunpack.c.l.b16 %v649
        %v786 = vunpack.c.h.b16 %v649
        %v787 = vunpack.c.l.b16 %v650
        %v788 = vunpack.c.h.b16 %v650
        %v789 = vunpack.c.l.b16 %v651
        %v790 = vunpack.c.l.b16 %v652
        %v791 = vunpack.c.h.b16 %v652
        %v792 = vunpack.c.l.b16 %v653
        %v793 = vunpack.c.h.b16 %v653
        %v794 = vunpack.c.l.b16 %v654
        %v795 = vunpack.c.l.b16 %v655
        %v796 = vunpack.c.h.b16 %v655
        %v797 = vunpack.c.l.b16 %v656
        %v798 = vunpack.c.h.b16 %v656
        %v799 = vunpack.c.l.b16 %v657
        %v800 = vunpack.c.l.b16 %v658
        %v801 = vunpack.c.h.b16 %v658
        %v802 = vunpack.c.l.b16 %v659
        %v803 = vunpack.c.h.b16 %v659
        %v804 = vunpack.c.l.b16 %v660
        %v805 = vunpack.c.l.b16 %v661
        %v806 = vunpack.c.h.b16 %v661
        %v807 = vunpack.c.l.b16 %v662
        %v808 = vunpack.c.h.b16 %v662
        %v809 = vunpack.c.l.b16 %v663
        %v810 = vunpack.c.l.b16 %v664
        %v811 = vunpack.c.h.b16 %v664
        %v812 = vunpack.c.l.b16 %v665
        %v813 = vunpack.c.h.b16 %v665
        %v814 = vunpack.c.l.b16 %v666
        %v815 = vpack.c.b16 %v780, %v775
        %v816 = vpack.c.b16 %v781, %v776
        %v817 = vpack.c.b16 %v782, %v777
        %v818 = vpack.c.b16 %v783, %v778
        %v819 = vpack.c.b16 %v784, %v779
        %v820 = vpack.c.b16 %v790, %v785
        %v821 = vpack.c.b16 %v791, %v786
        %v822 = vpack.c.b16 %v792, %v787
        %v823 = vpack.c.b16 %v793, %v788
        %v824 = vpack.c.b16 %v794, %v789
        %v825 = vpack.c.b16 %v800, %v795
        %v826 = vpack.c.b16 %v801, %v796
        %v827 = vpack.c.b16 %v802, %v797
        %v828 = vpack.c.b16 %v803, %v798
        %v829 = vpack.c.b16 %v804, %v799
        %v830 = vpack.c.b16 %v810, %v805
        %v831 = vpack.c.b16 %v811, %v806
        %v832 = vpack.c.b16 %v812, %v807
        %v833 = vpack.c.b16 %v813, %v808
        %v834 = vpack.c.b16 %v814, %v809
        %vm851 = vcmask 523264
        %v853 = vsel %vm851, %v819, 0
        %v856 = vsel %vm851, %v824, 0
        %v859 = vsel %vm851, %v829, 0
        %v862 = vsel %vm851, %v834, 0
        %864 = vmatprep.subr.bf16.mxu0 0
        %865 = vmatpush1.bf16.msra.mxu0 %v667
        %866 = vmatprep.subr.bf16.mxu0 0
        %867 = vmatpush1.bf16.msra.mxu0 %v668
        %868 = vmatprep.subr.bf16.mxu0 0
        %869 = vmatpush1.bf16.msra.mxu0 %v669
        %870 = vmatprep.subr.bf16.mxu0 0
        %871 = vmatpush1.bf16.msra.mxu0 %v670
        %872 = vmatprep.subr.bf16.mxu0 0
        %873 = vmatpush1.bf16.msra.mxu0 %v671
        %874 = vmatprep.subr.bf16.mxu0 0
        %875 = vmatpush1.bf16.msra.mxu0 %v672
        %876 = vmatprep.subr.bf16.mxu0 0
        %877 = vmatpush1.bf16.msra.mxu0 %v673
        %878 = vmatprep.subr.bf16.mxu0 0
        %879 = vmatpush1.bf16.msra.mxu0 %v674
        %880 = vmatprep.subr.bf16.mxu0 0
        %881 = vmatpush1.bf16.msra.mxu0 %v675
        %882 = vmatprep.subr.bf16.mxu0 0
        %883 = vmatpush1.bf16.msra.mxu0 %v676
        %884 = vmatprep.subr.bf16.mxu0 0
        %885 = vmatpush1.bf16.msra.mxu0 %v677
        %886 = vmatprep.subr.bf16.mxu0 0
        %887 = vmatpush1.bf16.msra.mxu0 %v678
        %888 = vmatprep.subr.bf16.mxu0 0
        %889 = vmatpush1.bf16.msra.mxu0 %v679
        %890 = vmatprep.subr.bf16.mxu0 0
        %891 = vmatpush1.bf16.msra.mxu0 %v680
        %892 = vmatprep.subr.bf16.mxu0 0
        %893 = vmatpush1.bf16.msra.mxu0 %v681
        %894 = vmatprep.subr.bf16.mxu0 0
        %895 = vmatpush1.bf16.msra.mxu0 %v682
        %896 = vmatprep.mubr.bf16.mxu0 %v816
        %897 = vmatmul.mubr.bf16.gmra.mrb[0].mxu0 %v815
        %v898 = vpop.f32.mrb[0].mxu0
        %v899 = vadd.f32 %v714, %v898
        %v900 = vpop.f32.mrb[0].mxu0
        %v901 = vpop.f32.mrb[0].mxu0
        %v902 = vadd.f32 %v719, %v901
        %v903 = vpop.f32.mrb[0].mxu0
        %904 = vmatprep.mubr.bf16.mxu0 %v821
        %905 = vmatmul.mubr.bf16.gmra.mrb[0].mxu0 %v820
        %v906 = vpop.f32.mrb[0].mxu0
        %v907 = vadd.f32 %v724, %v906
        %v908 = vpop.f32.mrb[0].mxu0
        %v909 = vpop.f32.mrb[0].mxu0
        %v910 = vadd.f32 %v729, %v909
        %v911 = vpop.f32.mrb[0].mxu0
        %912 = vmatprep.mubr.bf16.mxu0 %v826
        %913 = vmatmul.mubr.bf16.gmra.mrb[0].mxu0 %v825
        %v914 = vpop.f32.mrb[0].mxu0
        %v915 = vadd.f32 %v734, %v914
        %v916 = vpop.f32.mrb[0].mxu0
        %v917 = vpop.f32.mrb[0].mxu0
        %v918 = vadd.f32 %v739, %v917
        %v919 = vpop.f32.mrb[0].mxu0
        %920 = vmatprep.mubr.bf16.mxu0 %v831
        %921 = vmatmul.mubr.bf16.gmra.mrb[0].mxu0 %v830
        %v922 = vpop.f32.mrb[0].mxu0
        %v923 = vadd.f32 %v744, %v922
        %v924 = vpop.f32.mrb[0].mxu0
        %v925 = vpop.f32.mrb[0].mxu0
        %v926 = vadd.f32 %v749, %v925
        %v927 = vpop.f32.mrb[0].mxu0
        %928 = vdwg.mxu0
        %929 = vmatprep.subr.bf16.mxu0 0
        %930 = vmatpush1.bf16.msra.mxu0 %v683
        %931 = vmatprep.subr.bf16.mxu0 0
        %932 = vmatpush1.bf16.msra.mxu0 %v684
        %933 = vmatprep.subr.bf16.mxu0 0
        %934 = vmatpush1.bf16.msra.mxu0 %v685
        %935 = vmatprep.subr.bf16.mxu0 0
        %936 = vmatpush1.bf16.msra.mxu0 %v686
        %937 = vmatprep.subr.bf16.mxu0 0
        %938 = vmatpush1.bf16.msra.mxu0 %v687
        %939 = vmatprep.subr.bf16.mxu0 0
        %940 = vmatpush1.bf16.msra.mxu0 %v688
        %941 = vmatprep.subr.bf16.mxu0 0
        %942 = vmatpush1.bf16.msra.mxu0 %v689
        %943 = vmatprep.subr.bf16.mxu0 0
        %944 = vmatpush1.bf16.msra.mxu0 %v690
        %945 = vmatprep.subr.bf16.mxu0 0
        %946 = vmatpush1.bf16.msra.mxu0 %v691
        %947 = vmatprep.subr.bf16.mxu0 0
        %948 = vmatpush1.bf16.msra.mxu0 %v692
        %949 = vmatprep.subr.bf16.mxu0 0
        %950 = vmatpush1.bf16.msra.mxu0 %v693
        %951 = vmatprep.subr.bf16.mxu0 0
        %952 = vmatpush1.bf16.msra.mxu0 %v694
        %953 = vmatprep.subr.bf16.mxu0 0
        %954 = vmatpush1.bf16.msra.mxu0 %v695
        %955 = vmatprep.subr.bf16.mxu0 0
        %956 = vmatpush1.bf16.msra.mxu0 %v696
        %957 = vmatprep.subr.bf16.mxu0 0
        %958 = vmatpush1.bf16.msra.mxu0 %v697
        %959 = vmatprep.subr.bf16.mxu0 0
        %960 = vmatpush1.bf16.msra.mxu0 %v698
        %961 = vmatprep.mubr.bf16.mxu0 %v818
        %962 = vmatmul.mubr.bf16.gmra.mrb[0].mxu0 %v817
        %v963 = vpop.f32.mrb[0].mxu0
        %v964 = vadd.f32 %v899, %v963
        %v965 = vpop.f32.mrb[0].mxu0
        %v966 = vpop.f32.mrb[0].mxu0
        %v967 = vadd.f32 %v902, %v966
        %v968 = vpop.f32.mrb[0].mxu0
        %969 = vmatprep.mubr.bf16.mxu0 %v823
        %970 = vmatmul.mubr.bf16.gmra.mrb[0].mxu0 %v822
        %v971 = vpop.f32.mrb[0].mxu0
        %v972 = vadd.f32 %v907, %v971
        %v973 = vpop.f32.mrb[0].mxu0
        %v974 = vpop.f32.mrb[0].mxu0
        %v975 = vadd.f32 %v910, %v974
        %v976 = vpop.f32.mrb[0].mxu0
        %977 = vmatprep.mubr.bf16.mxu0 %v828
        %978 = vmatmul.mubr.bf16.gmra.mrb[0].mxu0 %v827
        %v979 = vpop.f32.mrb[0].mxu0
        %v980 = vadd.f32 %v915, %v979
        %v981 = vpop.f32.mrb[0].mxu0
        %v982 = vpop.f32.mrb[0].mxu0
        %v983 = vadd.f32 %v918, %v982
        %v984 = vpop.f32.mrb[0].mxu0
        %985 = vmatprep.mubr.bf16.mxu0 %v833
        %986 = vmatmul.mubr.bf16.gmra.mrb[0].mxu0 %v832
        %v987 = vpop.f32.mrb[0].mxu0
        %v988 = vadd.f32 %v923, %v987
        %v989 = vpop.f32.mrb[0].mxu0
        %v990 = vpop.f32.mrb[0].mxu0
        %v991 = vadd.f32 %v926, %v990
        %v992 = vpop.f32.mrb[0].mxu0
        %993 = vdwg.mxu0
        %994 = vmatprep.subr.bf16.mxu0 0
        %995 = vmatpush1.bf16.msra.mxu0 %v699
        %996 = vmatprep.subr.bf16.mxu0 0
        %997 = vmatpush1.bf16.msra.mxu0 %v700
        %998 = vmatprep.subr.bf16.mxu0 0
        %999 = vmatpush1.bf16.msra.mxu0 %v701
        %1000 = vmatprep.subr.bf16.mxu0 0
        %1001 = vmatpush1.bf16.msra.mxu0 %v702
        %1002 = vmatprep.subr.bf16.mxu0 0
        %1003 = vmatpush1.bf16.msra.mxu0 0
        %1004 = vmatprep.subr.bf16.mxu0 0
        %1005 = vmatpush1.bf16.msra.mxu0 0
        %1006 = vmatprep.subr.bf16.mxu0 0
        %1007 = vmatpush1.bf16.msra.mxu0 0
        %1008 = vmatprep.subr.bf16.mxu0 0
        %1009 = vmatpush1.bf16.msra.mxu0 0
        %1010 = vmatprep.subr.bf16.mxu0 0
        %1011 = vmatpush1.bf16.msra.mxu0 0
        %1012 = vmatprep.subr.bf16.mxu0 0
        %1013 = vmatpush1.bf16.msra.mxu0 0
        %1014 = vmatprep.subr.bf16.mxu0 0
        %1015 = vmatpush1.bf16.msra.mxu0 0
        %1016 = vmatprep.subr.bf16.mxu0 0
        %1017 = vmatpush1.bf16.msra.mxu0 0
        %1018 = vmatprep.subr.bf16.mxu0 0
        %1019 = vmatpush1.bf16.msra.mxu0 0
        %1020 = vmatprep.subr.bf16.mxu0 0
        %1021 = vmatpush1.bf16.msra.mxu0 0
        %1022 = vmatprep.subr.bf16.mxu0 0
        %1023 = vmatpush1.bf16.msra.mxu0 0
        %1024 = vmatprep.subr.bf16.mxu0 0
        %1025 = vmatpush1.bf16.msra.mxu0 0
        %1026 = vmatprep.mubr.bf16.mxu0 0
        %1027 = vmatmul.mubr.bf16.gmra.mrb[0].mxu0 %v853
        %v1028 = vpop.f32.mrb[0].mxu0
        %v1029 = vadd.f32 %v964, %v1028
        %v1030 = vpop.f32.mrb[0].mxu0
        %v1031 = vpop.f32.mrb[0].mxu0
        %v1032 = vadd.f32 %v967, %v1031
        %v1033 = vpop.f32.mrb[0].mxu0
        %1034 = vmatprep.mubr.bf16.mxu0 0
        %1035 = vmatmul.mubr.bf16.gmra.mrb[0].mxu0 %v856
        %v1036 = vpop.f32.mrb[0].mxu0
        %v1037 = vadd.f32 %v972, %v1036
        %v1038 = vpop.f32.mrb[0].mxu0
        %v1039 = vpop.f32.mrb[0].mxu0
        %v1040 = vadd.f32 %v975, %v1039
        %v1041 = vpop.f32.mrb[0].mxu0
        %1042 = vmatprep.mubr.bf16.mxu0 0
        %1043 = vmatmul.mubr.bf16.gmra.mrb[0].mxu0 %v859
        %v1044 = vpop.f32.mrb[0].mxu0
        %v1045 = vadd.f32 %v980, %v1044
        %v1046 = vpop.f32.mrb[0].mxu0
        %v1047 = vpop.f32.mrb[0].mxu0
        %v1048 = vadd.f32 %v983, %v1047
        %v1049 = vpop.f32.mrb[0].mxu0
        %1050 = vmatprep.mubr.bf16.mxu0 0
        %1051 = vmatmul.mubr.bf16.gmra.mrb[0].mxu0 %v862
        %v1052 = vpop.f32.mrb[0].mxu0
        %v1053 = vadd.f32 %v988, %v1052
        %v1054 = vpop.f32.mrb[0].mxu0
        %v1055 = vpop.f32.mrb[0].mxu0
        %v1056 = vadd.f32 %v991, %v1055
        %v1057 = vpop.f32.mrb[0].mxu0
        %1058 = vdwg.mxu0
        %1059 = vst [vmem:[%s373] sm:$0xff] %v1029
        %1060 = vst [vmem:[%s373 + $0x8] sm:$0xff] %v1032
        %1061 = vst [vmem:[%s373 + $0x10] sm:$0xff] %v1037
        %1062 = vst [vmem:[%s373 + $0x18] sm:$0xff] %v1040
        %1063 = vst [vmem:[%s373 + $0x20] sm:$0xff] %v1045
        %1064 = vst [vmem:[%s373 + $0x28] sm:$0xff] %v1048
        %1065 = vst [vmem:[%s373 + $0x30] sm:$0xff] %v1053
        %1066 = vst [vmem:[%s373 + $0x38] sm:$0xff] %v1056
        %p1067 = scmp.lt.s32.totalorder %s19, 1
        %s1068 = scalar_select %p1067, %s19, 1
        %p1069 = scmp.lt.s32.totalorder %s20, 0
        %s1070 = scalar_select %p1069, %s20, 0
        %s1071 = smul.addr %s1068, 8
        %s1072 = sadd.s32 %s1070, %s1071
        %s1073 = smul.addr %s1072, 8
        %s1074 = scalar_lea.vmem %s4, %s1073
        // Predicated region
        $region113: #{detector_backbone_with_fpn_forward.7} parent=103 // pred_check
          %p1075 = pneg %p147
        $region114: #{detector_backbone_with_fpn_forward.7} parent=103 // pred_check_branch
          %1077 = sbr.rel (%p1075) target = $region116
        $region115: #{detector_backbone_with_fpn_forward.7} parent=103 // pred_region
          _
        $region116: #{detector_backbone_with_fpn_forward.7} parent=103 // pred_fallthru
          _
      $region104: #{detector_backbone_with_fpn_forward.7} parent=5 // pred_fallthru
        _
      %p1078 = scmp.le.s32.totalorder 2, %s10
      // Predicated region
      $region117: #{detector_backbone_with_fpn_forward.7} parent=5 // pred_check
        %p1079 = pneg %p1078
      $region118: #{detector_backbone_with_fpn_forward.7} parent=5 // pred_check_branch
        %1081 = sbr.rel (%p1079) target = $region120
      $region119: #{detector_backbone_with_fpn_forward.7} parent=5 // pred_region
        %s1082 = ssub.s32 %s10, 2
        // Predicated region
        $region121: #{detector_backbone_with_fpn_forward.7} parent=119 // pred_check
          %p1083 = pneg %p153
        $region122: #{detector_backbone_with_fpn_forward.7} parent=119 // pred_check_branch
          %1085 = sbr.rel (%p1083) target = $region124
        $region123: #{detector_backbone_with_fpn_forward.7} parent=119 // pred_region
          %p1086 = scmp.lt.s32.totalorder %s21, 1
          %s1087 = scalar_select %p1086, %s21, 1
          %p1088 = scmp.lt.s32.totalorder %s22, 0
          %s1089 = scalar_select %p1088, %s22, 0
          %s1090 = smul.addr %s1087, 8
          %s1091 = sadd.s32 %s1089, %s1090
          %s1092 = smul.addr %s1091, 8
          %s1093 = scalar_lea.vmem %s4, %s1092
        $region124: #{detector_backbone_with_fpn_forward.7} parent=119 // pred_fallthru
          _
      $region120: #{detector_backbone_with_fpn_forward.7} parent=5 // pred_fallthru
        _
    $region6: #{detector_backbone_with_fpn_forward.7} parent=1 // loop_footer
      %s14 = sadd.s32 1, %s10
    $region7: #{detector_backbone_with_fpn_forward.7} parent=1 // loop_footer_branch
      %9 = sbr.rel target = $region3
    $region8: #{detector_backbone_with_fpn_forward.7} parent=1 // loop_exit
      _

</llo_original>
